<compile_context>
chip_gen: v6e
topology: v6e:2x2x1
jax: 0.10.0
libtpu: 0.0.40
codegen_flags: <defaults>
</compile_context>

<pallas_src>
import numpy as np

import jax
import jax.numpy as jnp
from jax.experimental import pallas as pl
from jax.experimental.pallas import tpu as pltpu


# ----------------------------------------------------------------------------
# Shift-validity masks for the 9 taps of a 3x3 "same" conv on a flattened
# (H*W,) plane.  mask[k] kills the elements that wrapped around the row/array
# boundary when rolling by (dy-1)*W + (dx-1).
# ----------------------------------------------------------------------------
def build_shift_masks(H, W):
    HW = H * W
    yy, xx = np.meshgrid(np.arange(H), np.arange(W), indexing="ij")
    masks = np.zeros((9, HW), np.float32)
    for dy in range(3):
        for dx in range(3):
            sy, sx = dy - 1, dx - 1
            valid = ((yy + sy >= 0) & (yy + sy < H) &
                     (xx + sx >= 0) & (xx + sx < W))
            masks[dy * 3 + dx] = valid.reshape(-1).astype(np.float32)
    return jnp.asarray(masks)


# ----------------------------------------------------------------------------
# Fully fused ODE forward kernel (one grid step == one batch element)
# ----------------------------------------------------------------------------
def make_ode_kernel(C, H, W):
    HW = H * W
    inv_hw = 1.0 / float(HW)

    def kernel(x_ref, masks_ref,
               w1a_ref, b1a_ref, w1b_ref, b1b_ref,
               w2a_ref, b2a_ref, w2b_ref, b2b_ref,
               wfc1a_ref, wfc1b_ref, wfc2_ref,
               o_ref):
        # x_ref/o_ref : (1, C, HW) VMEM
        # masks_ref   : (9, HW)    VMEM  (0/1 boundary masks)
        # wX_ref      : (C, C*9)   VMEM  (torch OIHW weight reshaped)
        # bX_ref      : (C, 1)     VMEM
        # wfc1a/b_ref : (C, C)     VMEM  (Wfc1[:, :C].T / Wfc1[:, C:].T)
        # wfc2_ref    : (1, C)     VMEM
        x = x_ref[0]                       # (C, HW)
        masks = masks_ref[...]             # (9, HW)

        def conv3x3(inp, w_ref, b_ref, relu):
            w = w_ref[...]                 # (C, C*9)
            b = b_ref[...]                 # (C, 1)
            # 9 shifted copies of all C input planes at once (roll = XLU).
            taps = []
            for dy in range(3):
                for dx in range(3):
                    k = dy * 3 + dx
                    s = (dy - 1) * W + (dx - 1)
                    if s == 0:
                        rolled = inp
                    else:
                        rolled = pltpu.roll(inp, shift=(-s) % HW, axis=1)
                    taps.append(rolled * masks[k:k + 1, :])   # zero OOB taps
            # out[co] = sum_{ci,k} w[co, ci*9+k] * tap_k[ci]  (broadcast MACs)
            acc = jnp.zeros((C, HW), jnp.float32)
            for ci in range(C):
                for k in range(9):
                    j = ci * 9 + k
                    acc = acc + w[:, j:j + 1] * taps[k][ci:ci + 1, :]
            acc = acc + b
            if relu:
                acc = jnp.maximum(acc, 0.0)
            return acc

        # F1
        h1 = conv3x3(x, w1a_ref, b1a_ref, relu=True)
        f1 = conv3x3(h1, w1b_ref, b1b_ref, relu=False)
        # F2 on (f1 + x)  -- residual add fused, no extra kernel
        g = f1 + x
        h2 = conv3x3(g, w2a_ref, b2a_ref, relu=True)
        f2 = conv3x3(h2, w2b_ref, b2b_ref, relu=False)

        # getAlpha( cat([f1, f2], dim=1) ): channel pools -> fc1 -> relu ->
        # fc2 -> sigmoid, vectorized (no scalar MAC chains).
        f1_avg = jnp.sum(f1, axis=1, keepdims=True) * inv_hw   # (C, 1)
        f2_avg = jnp.sum(f2, axis=1, keepdims=True) * inv_hw
        f1_max = jnp.max(f1, axis=1, keepdims=True)
        f2_max = jnp.max(f2, axis=1, keepdims=True)

        wfc1a = wfc1a_ref[...]   # (C, C), rows = f1-channel inputs
        wfc1b = wfc1b_ref[...]   # (C, C), rows = f2-channel inputs
        wfc2 = wfc2_ref[...]     # (1, C)

        def head(v1, v2):
            hidden = (jnp.sum(wfc1a * v1, axis=0, keepdims=True)
                      + jnp.sum(wfc1b * v2, axis=0, keepdims=True))   # (1, C)
            hidden = jnp.maximum(hidden, 0.0)
            return jnp.sum(hidden * wfc2, axis=1, keepdims=True)      # (1, 1)

        z = head(f1_avg, f2_avg) + head(f1_max, f2_max)               # (1, 1)
        alpha = 1.0 / (1.0 + jnp.exp(-z))                             # sigmoid

        o_ref[0] = x + f1 * alpha + f2 * (1.0 - alpha)

    return kernel


def _full_spec(shape):
    zeros = (0,) * len(shape)
    return pl.BlockSpec(shape, lambda n: zeros)


# ----------------------------------------------------------------------------
# ODE forward using the single fused Pallas kernel
# ----------------------------------------------------------------------------
def ode_forward(x, p):
    N, C, H, W = x.shape
    HW = H * W

    xf = x.reshape(N, C, HW)                 # lane-dense: last dim = H*W
    masks = build_shift_masks(H, W)          # (9, HW)

    def wmat(w):                             # (C, C, 3, 3) -> (C, C*9)
        return w.reshape(C, C * 9)

    def bcol(b):                             # (C,) -> (C, 1)
        return b.reshape(C, 1)

    wfc1a = p["Wfc1"][:, :C].T               # (C, C)  -- f1-channel part
    wfc1b = p["Wfc1"][:, C:].T               # (C, C)  -- f2-channel part
    wfc2 = p["Wfc2"].reshape(1, C)           # (1, C)

    out = pl.pallas_call(
        make_ode_kernel(C, H, W),
        out_shape=jax.ShapeDtypeStruct((N, C, HW), jnp.float32),
        grid=(N,),
        in_specs=[
            pl.BlockSpec((1, C, HW), lambda n: (n, 0, 0)),    # x
            _full_spec((9, HW)),                              # masks
            _full_spec((C, C * 9)), _full_spec((C, 1)),       # W1a, b1a
            _full_spec((C, C * 9)), _full_spec((C, 1)),       # W1b, b1b
            _full_spec((C, C * 9)), _full_spec((C, 1)),       # W2a, b2a
            _full_spec((C, C * 9)), _full_spec((C, 1)),       # W2b, b2b
            _full_spec((C, C)), _full_spec((C, C)),           # Wfc1 halves
            _full_spec((1, C)),                               # Wfc2
        ],
        out_specs=pl.BlockSpec((1, C, HW), lambda n: (n, 0, 0)),
        compiler_params=pltpu.CompilerParams(
            dimension_semantics=("parallel",)),               # megacore on v7x
    )(xf, masks,
      wmat(p["W1a"]), bcol(p["b1a"]), wmat(p["W1b"]), bcol(p["b1b"]),
      wmat(p["W2a"]), bcol(p["b2a"]), wmat(p["W2b"]), bcol(p["b2b"]),
      wfc1a, wfc1b, wfc2)

    return out.reshape(N, C, H, W)


# ----------------------------------------------------------------------------
# Pure-JAX reference (mirrors the PyTorch module exactly) for verification
# ----------------------------------------------------------------------------
def _ref_conv(x, w, b):
    out = jax.lax.conv_general_dilated(
        x, w, (1, 1), ((1, 1), (1, 1)), dimension_numbers=("NCHW", "OIHW", "NCHW")
    )
    return out + b[None, :, None, None]


def ode_reference(x, p):
    f1 = _ref_conv(jnp.maximum(_ref_conv(x, p["W1a"], p["b1a"]), 0.0),
                   p["W1b"], p["b1b"])
    f2 = _ref_conv(jnp.maximum(_ref_conv(f1 + x, p["W2a"], p["b2a"]), 0.0),
                   p["W2b"], p["b2b"])
    cat = jnp.concatenate([f1, f2], axis=1)
    avg = jnp.mean(cat, axis=(2, 3))  # (N, 2C)
    mxp = jnp.max(cat, axis=(2, 3))   # (N, 2C)

    def head(v):
        h = jnp.maximum(v @ p["Wfc1"].T, 0.0)  # (N, C)
        return h @ p["Wfc2"].T                 # (N, 1)

    alpha = jax.nn.sigmoid(head(avg) + head(mxp))[:, :, None, None]
    return x + f1 * alpha + f2 * (1.0 - alpha)


if __name__ == "__main__":
    N, C, H, W = 2, 4, 16, 16
    key = jax.random.PRNGKey(0)
    ks = jax.random.split(key, 12)

    def init(k, shape, scale=0.2):
        return scale * jax.random.normal(k, shape, jnp.float32)

    x = jax.random.normal(ks[0], (N, C, H, W), jnp.float32)
    params = {
        # F1: Conv3x3 -> ReLU -> Conv3x3
        "W1a": init(ks[1], (C, C, 3, 3)), "b1a": init(ks[2], (C,)),
        "W1b": init(ks[3], (C, C, 3, 3)), "b1b": init(ks[4], (C,)),
        # F2: Conv3x3 -> ReLU -> Conv3x3
        "W2a": init(ks[5], (C, C, 3, 3)), "b2a": init(ks[6], (C,)),
        "W2b": init(ks[7], (C, C, 3, 3)), "b2b": init(ks[8], (C,)),
        # getAlpha: fc1 (2C -> C, no bias), fc2 (C -> 1, no bias)
        "Wfc1": init(ks[9], (C, 2 * C)),
        "Wfc2": init(ks[10], (1, C)),
    }

    out = ode_forward(x, params)
    jax.block_until_ready(out)

    ref = ode_reference(x, params)
    err = float(jnp.max(jnp.abs(out - ref)))
    assert out.shape == (N, C, H, W)
    assert err < 1e-3, f"mismatch vs reference: max abs err = {err}"
    print("KERNEL_OK")
</pallas_src>

<mosaic_0001>
module attributes {stable_mosaic.version = 11 : i64} {
  func.func @kernel(%arg0: i32, %arg1: memref<1x4x256xf32, #tpu.memory_space<vmem>>, %arg2: memref<9x256xf32, #tpu.memory_space<vmem>>, %arg3: memref<4x36xf32, #tpu.memory_space<vmem>>, %arg4: memref<4x1xf32, #tpu.memory_space<vmem>>, %arg5: memref<4x36xf32, #tpu.memory_space<vmem>>, %arg6: memref<4x1xf32, #tpu.memory_space<vmem>>, %arg7: memref<4x36xf32, #tpu.memory_space<vmem>>, %arg8: memref<4x1xf32, #tpu.memory_space<vmem>>, %arg9: memref<4x36xf32, #tpu.memory_space<vmem>>, %arg10: memref<4x1xf32, #tpu.memory_space<vmem>>, %arg11: memref<4x4xf32, #tpu.memory_space<vmem>>, %arg12: memref<4x4xf32, #tpu.memory_space<vmem>>, %arg13: memref<1x4xf32, #tpu.memory_space<vmem>>, %arg14: memref<1x4x256xf32, #tpu.memory_space<vmem>>) attributes {dimension_semantics = [#tpu.dimension_semantics<parallel>], iteration_bounds = array<i64: 2>, scalar_prefetch = 0 : i64, scratch_operands = 0 : i64, tpu.core_type = #tpu.core_type<tc>, window_params = [{transform_indices = @transform_0, window_bounds = array<i64: 1, 4, 256>}, {pipeline_mode = #tpu.pipeline_mode<synchronous>, transform_indices = @transform_1, window_bounds = array<i64: 9, 256>}, {pipeline_mode = #tpu.pipeline_mode<synchronous>, transform_indices = @transform_2, window_bounds = array<i64: 4, 36>}, {pipeline_mode = #tpu.pipeline_mode<synchronous>, transform_indices = @transform_3, window_bounds = array<i64: 4, 1>}, {pipeline_mode = #tpu.pipeline_mode<synchronous>, transform_indices = @transform_4, window_bounds = array<i64: 4, 36>}, {pipeline_mode = #tpu.pipeline_mode<synchronous>, transform_indices = @transform_5, window_bounds = array<i64: 4, 1>}, {pipeline_mode = #tpu.pipeline_mode<synchronous>, transform_indices = @transform_6, window_bounds = array<i64: 4, 36>}, {pipeline_mode = #tpu.pipeline_mode<synchronous>, transform_indices = @transform_7, window_bounds = array<i64: 4, 1>}, {pipeline_mode = #tpu.pipeline_mode<synchronous>, transform_indices = @transform_8, window_bounds = array<i64: 4, 36>}, {pipeline_mode = #tpu.pipeline_mode<synchronous>, transform_indices = @transform_9, window_bounds = array<i64: 4, 1>}, {pipeline_mode = #tpu.pipeline_mode<synchronous>, transform_indices = @transform_10, window_bounds = array<i64: 4, 4>}, {pipeline_mode = #tpu.pipeline_mode<synchronous>, transform_indices = @transform_11, window_bounds = array<i64: 4, 4>}, {pipeline_mode = #tpu.pipeline_mode<synchronous>, transform_indices = @transform_12, window_bounds = array<i64: 1, 4>}, {transform_indices = @transform_13, window_bounds = array<i64: 1, 4, 256>}]} {
    %c0 = arith.constant 0 : index
    %c0_0 = arith.constant 0 : index
    %c0_1 = arith.constant 0 : index
    %0 = vector.load %arg1[%c0, %c0_0, %c0_1] : memref<1x4x256xf32, #tpu.memory_space<vmem>>, vector<1x4x256xf32>
    %1 = vector.shape_cast %0 : vector<1x4x256xf32> to vector<4x256xf32>
    %c0_2 = arith.constant 0 : index
    %c0_3 = arith.constant 0 : index
    %2 = vector.load %arg2[%c0_2, %c0_3] : memref<9x256xf32, #tpu.memory_space<vmem>>, vector<9x256xf32>
    %c0_4 = arith.constant 0 : index
    %c0_5 = arith.constant 0 : index
    %3 = vector.load %arg3[%c0_4, %c0_5] : memref<4x36xf32, #tpu.memory_space<vmem>>, vector<4x36xf32>
    %c0_6 = arith.constant 0 : index
    %c0_7 = arith.constant 0 : index
    %4 = vector.load %arg4[%c0_6, %c0_7] : memref<4x1xf32, #tpu.memory_space<vmem>>, vector<4x1xf32>
    %c17_i32 = arith.constant 17 : i32
    %5 = tpu.dynamic_rotate %1 by %c17_i32 dim 1 : vector<4x256xf32>, i32 -> vector<4x256xf32>
    %6 = vector.extract_strided_slice %2 {offsets = [0, 0], sizes = [1, 256], strides = [1, 1]} : vector<9x256xf32> to vector<1x256xf32>
    %7 = vector.broadcast %6 : vector<1x256xf32> to vector<4x256xf32>
    %8 = arith.mulf %5, %7 : vector<4x256xf32>
    %c16_i32 = arith.constant 16 : i32
    %9 = tpu.dynamic_rotate %1 by %c16_i32 dim 1 : vector<4x256xf32>, i32 -> vector<4x256xf32>
    %10 = vector.extract_strided_slice %2 {offsets = [1, 0], sizes = [1, 256], strides = [1, 1]} : vector<9x256xf32> to vector<1x256xf32>
    %11 = vector.broadcast %10 : vector<1x256xf32> to vector<4x256xf32>
    %12 = arith.mulf %9, %11 : vector<4x256xf32>
    %c15_i32 = arith.constant 15 : i32
    %13 = tpu.dynamic_rotate %1 by %c15_i32 dim 1 : vector<4x256xf32>, i32 -> vector<4x256xf32>
    %14 = vector.extract_strided_slice %2 {offsets = [2, 0], sizes = [1, 256], strides = [1, 1]} : vector<9x256xf32> to vector<1x256xf32>
    %15 = vector.broadcast %14 : vector<1x256xf32> to vector<4x256xf32>
    %16 = arith.mulf %13, %15 : vector<4x256xf32>
    %c1_i32 = arith.constant 1 : i32
    %17 = tpu.dynamic_rotate %1 by %c1_i32 dim 1 : vector<4x256xf32>, i32 -> vector<4x256xf32>
    %18 = vector.extract_strided_slice %2 {offsets = [3, 0], sizes = [1, 256], strides = [1, 1]} : vector<9x256xf32> to vector<1x256xf32>
    %19 = vector.broadcast %18 : vector<1x256xf32> to vector<4x256xf32>
    %20 = arith.mulf %17, %19 : vector<4x256xf32>
    %21 = vector.extract_strided_slice %2 {offsets = [4, 0], sizes = [1, 256], strides = [1, 1]} : vector<9x256xf32> to vector<1x256xf32>
    %22 = vector.broadcast %21 : vector<1x256xf32> to vector<4x256xf32>
    %23 = arith.mulf %1, %22 : vector<4x256xf32>
    %c255_i32 = arith.constant 255 : i32
    %24 = tpu.dynamic_rotate %1 by %c255_i32 dim 1 : vector<4x256xf32>, i32 -> vector<4x256xf32>
    %25 = vector.extract_strided_slice %2 {offsets = [5, 0], sizes = [1, 256], strides = [1, 1]} : vector<9x256xf32> to vector<1x256xf32>
    %26 = vector.broadcast %25 : vector<1x256xf32> to vector<4x256xf32>
    %27 = arith.mulf %24, %26 : vector<4x256xf32>
    %c241_i32 = arith.constant 241 : i32
    %28 = tpu.dynamic_rotate %1 by %c241_i32 dim 1 : vector<4x256xf32>, i32 -> vector<4x256xf32>
    %29 = vector.extract_strided_slice %2 {offsets = [6, 0], sizes = [1, 256], strides = [1, 1]} : vector<9x256xf32> to vector<1x256xf32>
    %30 = vector.broadcast %29 : vector<1x256xf32> to vector<4x256xf32>
    %31 = arith.mulf %28, %30 : vector<4x256xf32>
    %c240_i32 = arith.constant 240 : i32
    %32 = tpu.dynamic_rotate %1 by %c240_i32 dim 1 : vector<4x256xf32>, i32 -> vector<4x256xf32>
    %33 = vector.extract_strided_slice %2 {offsets = [7, 0], sizes = [1, 256], strides = [1, 1]} : vector<9x256xf32> to vector<1x256xf32>
    %34 = vector.broadcast %33 : vector<1x256xf32> to vector<4x256xf32>
    %35 = arith.mulf %32, %34 : vector<4x256xf32>
    %c239_i32 = arith.constant 239 : i32
    %36 = tpu.dynamic_rotate %1 by %c239_i32 dim 1 : vector<4x256xf32>, i32 -> vector<4x256xf32>
    %37 = vector.extract_strided_slice %2 {offsets = [8, 0], sizes = [1, 256], strides = [1, 1]} : vector<9x256xf32> to vector<1x256xf32>
    %38 = vector.broadcast %37 : vector<1x256xf32> to vector<4x256xf32>
    %39 = arith.mulf %36, %38 : vector<4x256xf32>
    %cst = arith.constant 0.000000e+00 : f32
    %40 = vector.broadcast %cst : f32 to vector<4x256xf32>
    %41 = vector.extract_strided_slice %3 {offsets = [0, 0], sizes = [4, 1], strides = [1, 1]} : vector<4x36xf32> to vector<4x1xf32>
    %42 = vector.extract_strided_slice %8 {offsets = [0, 0], sizes = [1, 256], strides = [1, 1]} : vector<4x256xf32> to vector<1x256xf32>
    %43 = vector.broadcast %41 : vector<4x1xf32> to vector<4x256xf32>
    %44 = vector.broadcast %42 : vector<1x256xf32> to vector<4x256xf32>
    %45 = arith.mulf %43, %44 : vector<4x256xf32>
    %46 = arith.addf %40, %45 : vector<4x256xf32>
    %47 = vector.extract_strided_slice %3 {offsets = [0, 1], sizes = [4, 1], strides = [1, 1]} : vector<4x36xf32> to vector<4x1xf32>
    %48 = vector.extract_strided_slice %12 {offsets = [0, 0], sizes = [1, 256], strides = [1, 1]} : vector<4x256xf32> to vector<1x256xf32>
    %49 = vector.broadcast %47 : vector<4x1xf32> to vector<4x256xf32>
    %50 = vector.broadcast %48 : vector<1x256xf32> to vector<4x256xf32>
    %51 = arith.mulf %49, %50 : vector<4x256xf32>
    %52 = arith.addf %46, %51 : vector<4x256xf32>
    %53 = vector.extract_strided_slice %3 {offsets = [0, 2], sizes = [4, 1], strides = [1, 1]} : vector<4x36xf32> to vector<4x1xf32>
    %54 = vector.extract_strided_slice %16 {offsets = [0, 0], sizes = [1, 256], strides = [1, 1]} : vector<4x256xf32> to vector<1x256xf32>
    %55 = vector.broadcast %53 : vector<4x1xf32> to vector<4x256xf32>
    %56 = vector.broadcast %54 : vector<1x256xf32> to vector<4x256xf32>
    %57 = arith.mulf %55, %56 : vector<4x256xf32>
    %58 = arith.addf %52, %57 : vector<4x256xf32>
    %59 = vector.extract_strided_slice %3 {offsets = [0, 3], sizes = [4, 1], strides = [1, 1]} : vector<4x36xf32> to vector<4x1xf32>
    %60 = vector.extract_strided_slice %20 {offsets = [0, 0], sizes = [1, 256], strides = [1, 1]} : vector<4x256xf32> to vector<1x256xf32>
    %61 = vector.broadcast %59 : vector<4x1xf32> to vector<4x256xf32>
    %62 = vector.broadcast %60 : vector<1x256xf32> to vector<4x256xf32>
    %63 = arith.mulf %61, %62 : vector<4x256xf32>
    %64 = arith.addf %58, %63 : vector<4x256xf32>
    %65 = vector.extract_strided_slice %3 {offsets = [0, 4], sizes = [4, 1], strides = [1, 1]} : vector<4x36xf32> to vector<4x1xf32>
    %66 = vector.extract_strided_slice %23 {offsets = [0, 0], sizes = [1, 256], strides = [1, 1]} : vector<4x256xf32> to vector<1x256xf32>
    %67 = vector.broadcast %65 : vector<4x1xf32> to vector<4x256xf32>
    %68 = vector.broadcast %66 : vector<1x256xf32> to vector<4x256xf32>
    %69 = arith.mulf %67, %68 : vector<4x256xf32>
    %70 = arith.addf %64, %69 : vector<4x256xf32>
    %71 = vector.extract_strided_slice %3 {offsets = [0, 5], sizes = [4, 1], strides = [1, 1]} : vector<4x36xf32> to vector<4x1xf32>
    %72 = vector.extract_strided_slice %27 {offsets = [0, 0], sizes = [1, 256], strides = [1, 1]} : vector<4x256xf32> to vector<1x256xf32>
    %73 = vector.broadcast %71 : vector<4x1xf32> to vector<4x256xf32>
    %74 = vector.broadcast %72 : vector<1x256xf32> to vector<4x256xf32>
    %75 = arith.mulf %73, %74 : vector<4x256xf32>
    %76 = arith.addf %70, %75 : vector<4x256xf32>
    %77 = vector.extract_strided_slice %3 {offsets = [0, 6], sizes = [4, 1], strides = [1, 1]} : vector<4x36xf32> to vector<4x1xf32>
    %78 = vector.extract_strided_slice %31 {offsets = [0, 0], sizes = [1, 256], strides = [1, 1]} : vector<4x256xf32> to vector<1x256xf32>
    %79 = vector.broadcast %77 : vector<4x1xf32> to vector<4x256xf32>
    %80 = vector.broadcast %78 : vector<1x256xf32> to vector<4x256xf32>
    %81 = arith.mulf %79, %80 : vector<4x256xf32>
    %82 = arith.addf %76, %81 : vector<4x256xf32>
    %83 = vector.extract_strided_slice %3 {offsets = [0, 7], sizes = [4, 1], strides = [1, 1]} : vector<4x36xf32> to vector<4x1xf32>
    %84 = vector.extract_strided_slice %35 {offsets = [0, 0], sizes = [1, 256], strides = [1, 1]} : vector<4x256xf32> to vector<1x256xf32>
    %85 = vector.broadcast %83 : vector<4x1xf32> to vector<4x256xf32>
    %86 = vector.broadcast %84 : vector<1x256xf32> to vector<4x256xf32>
    %87 = arith.mulf %85, %86 : vector<4x256xf32>
    %88 = arith.addf %82, %87 : vector<4x256xf32>
    %89 = vector.extract_strided_slice %3 {offsets = [0, 8], sizes = [4, 1], strides = [1, 1]} : vector<4x36xf32> to vector<4x1xf32>
    %90 = vector.extract_strided_slice %39 {offsets = [0, 0], sizes = [1, 256], strides = [1, 1]} : vector<4x256xf32> to vector<1x256xf32>
    %91 = vector.broadcast %89 : vector<4x1xf32> to vector<4x256xf32>
    %92 = vector.broadcast %90 : vector<1x256xf32> to vector<4x256xf32>
    %93 = arith.mulf %91, %92 : vector<4x256xf32>
    %94 = arith.addf %88, %93 : vector<4x256xf32>
    %95 = vector.extract_strided_slice %3 {offsets = [0, 9], sizes = [4, 1], strides = [1, 1]} : vector<4x36xf32> to vector<4x1xf32>
    %96 = vector.extract_strided_slice %8 {offsets = [1, 0], sizes = [1, 256], strides = [1, 1]} : vector<4x256xf32> to vector<1x256xf32>
    %97 = vector.broadcast %95 : vector<4x1xf32> to vector<4x256xf32>
    %98 = vector.broadcast %96 : vector<1x256xf32> to vector<4x256xf32>
    %99 = arith.mulf %97, %98 : vector<4x256xf32>
    %100 = arith.addf %94, %99 : vector<4x256xf32>
    %101 = vector.extract_strided_slice %3 {offsets = [0, 10], sizes = [4, 1], strides = [1, 1]} : vector<4x36xf32> to vector<4x1xf32>
    %102 = vector.extract_strided_slice %12 {offsets = [1, 0], sizes = [1, 256], strides = [1, 1]} : vector<4x256xf32> to vector<1x256xf32>
    %103 = vector.broadcast %101 : vector<4x1xf32> to vector<4x256xf32>
    %104 = vector.broadcast %102 : vector<1x256xf32> to vector<4x256xf32>
    %105 = arith.mulf %103, %104 : vector<4x256xf32>
    %106 = arith.addf %100, %105 : vector<4x256xf32>
    %107 = vector.extract_strided_slice %3 {offsets = [0, 11], sizes = [4, 1], strides = [1, 1]} : vector<4x36xf32> to vector<4x1xf32>
    %108 = vector.extract_strided_slice %16 {offsets = [1, 0], sizes = [1, 256], strides = [1, 1]} : vector<4x256xf32> to vector<1x256xf32>
    %109 = vector.broadcast %107 : vector<4x1xf32> to vector<4x256xf32>
    %110 = vector.broadcast %108 : vector<1x256xf32> to vector<4x256xf32>
    %111 = arith.mulf %109, %110 : vector<4x256xf32>
    %112 = arith.addf %106, %111 : vector<4x256xf32>
    %113 = vector.extract_strided_slice %3 {offsets = [0, 12], sizes = [4, 1], strides = [1, 1]} : vector<4x36xf32> to vector<4x1xf32>
    %114 = vector.extract_strided_slice %20 {offsets = [1, 0], sizes = [1, 256], strides = [1, 1]} : vector<4x256xf32> to vector<1x256xf32>
    %115 = vector.broadcast %113 : vector<4x1xf32> to vector<4x256xf32>
    %116 = vector.broadcast %114 : vector<1x256xf32> to vector<4x256xf32>
    %117 = arith.mulf %115, %116 : vector<4x256xf32>
    %118 = arith.addf %112, %117 : vector<4x256xf32>
    %119 = vector.extract_strided_slice %3 {offsets = [0, 13], sizes = [4, 1], strides = [1, 1]} : vector<4x36xf32> to vector<4x1xf32>
    %120 = vector.extract_strided_slice %23 {offsets = [1, 0], sizes = [1, 256], strides = [1, 1]} : vector<4x256xf32> to vector<1x256xf32>
    %121 = vector.broadcast %119 : vector<4x1xf32> to vector<4x256xf32>
    %122 = vector.broadcast %120 : vector<1x256xf32> to vector<4x256xf32>
    %123 = arith.mulf %121, %122 : vector<4x256xf32>
    %124 = arith.addf %118, %123 : vector<4x256xf32>
    %125 = vector.extract_strided_slice %3 {offsets = [0, 14], sizes = [4, 1], strides = [1, 1]} : vector<4x36xf32> to vector<4x1xf32>
    %126 = vector.extract_strided_slice %27 {offsets = [1, 0], sizes = [1, 256], strides = [1, 1]} : vector<4x256xf32> to vector<1x256xf32>
    %127 = vector.broadcast %125 : vector<4x1xf32> to vector<4x256xf32>
    %128 = vector.broadcast %126 : vector<1x256xf32> to vector<4x256xf32>
    %129 = arith.mulf %127, %128 : vector<4x256xf32>
    %130 = arith.addf %124, %129 : vector<4x256xf32>
    %131 = vector.extract_strided_slice %3 {offsets = [0, 15], sizes = [4, 1], strides = [1, 1]} : vector<4x36xf32> to vector<4x1xf32>
    %132 = vector.extract_strided_slice %31 {offsets = [1, 0], sizes = [1, 256], strides = [1, 1]} : vector<4x256xf32> to vector<1x256xf32>
    %133 = vector.broadcast %131 : vector<4x1xf32> to vector<4x256xf32>
    %134 = vector.broadcast %132 : vector<1x256xf32> to vector<4x256xf32>
    %135 = arith.mulf %133, %134 : vector<4x256xf32>
    %136 = arith.addf %130, %135 : vector<4x256xf32>
    %137 = vector.extract_strided_slice %3 {offsets = [0, 16], sizes = [4, 1], strides = [1, 1]} : vector<4x36xf32> to vector<4x1xf32>
    %138 = vector.extract_strided_slice %35 {offsets = [1, 0], sizes = [1, 256], strides = [1, 1]} : vector<4x256xf32> to vector<1x256xf32>
    %139 = vector.broadcast %137 : vector<4x1xf32> to vector<4x256xf32>
    %140 = vector.broadcast %138 : vector<1x256xf32> to vector<4x256xf32>
    %141 = arith.mulf %139, %140 : vector<4x256xf32>
    %142 = arith.addf %136, %141 : vector<4x256xf32>
    %143 = vector.extract_strided_slice %3 {offsets = [0, 17], sizes = [4, 1], strides = [1, 1]} : vector<4x36xf32> to vector<4x1xf32>
    %144 = vector.extract_strided_slice %39 {offsets = [1, 0], sizes = [1, 256], strides = [1, 1]} : vector<4x256xf32> to vector<1x256xf32>
    %145 = vector.broadcast %143 : vector<4x1xf32> to vector<4x256xf32>
    %146 = vector.broadcast %144 : vector<1x256xf32> to vector<4x256xf32>
    %147 = arith.mulf %145, %146 : vector<4x256xf32>
    %148 = arith.addf %142, %147 : vector<4x256xf32>
    %149 = vector.extract_strided_slice %3 {offsets = [0, 18], sizes = [4, 1], strides = [1, 1]} : vector<4x36xf32> to vector<4x1xf32>
    %150 = vector.extract_strided_slice %8 {offsets = [2, 0], sizes = [1, 256], strides = [1, 1]} : vector<4x256xf32> to vector<1x256xf32>
    %151 = vector.broadcast %149 : vector<4x1xf32> to vector<4x256xf32>
    %152 = vector.broadcast %150 : vector<1x256xf32> to vector<4x256xf32>
    %153 = arith.mulf %151, %152 : vector<4x256xf32>
    %154 = arith.addf %148, %153 : vector<4x256xf32>
    %155 = vector.extract_strided_slice %3 {offsets = [0, 19], sizes = [4, 1], strides = [1, 1]} : vector<4x36xf32> to vector<4x1xf32>
    %156 = vector.extract_strided_slice %12 {offsets = [2, 0], sizes = [1, 256], strides = [1, 1]} : vector<4x256xf32> to vector<1x256xf32>
    %157 = vector.broadcast %155 : vector<4x1xf32> to vector<4x256xf32>
    %158 = vector.broadcast %156 : vector<1x256xf32> to vector<4x256xf32>
    %159 = arith.mulf %157, %158 : vector<4x256xf32>
    %160 = arith.addf %154, %159 : vector<4x256xf32>
    %161 = vector.extract_strided_slice %3 {offsets = [0, 20], sizes = [4, 1], strides = [1, 1]} : vector<4x36xf32> to vector<4x1xf32>
    %162 = vector.extract_strided_slice %16 {offsets = [2, 0], sizes = [1, 256], strides = [1, 1]} : vector<4x256xf32> to vector<1x256xf32>
    %163 = vector.broadcast %161 : vector<4x1xf32> to vector<4x256xf32>
    %164 = vector.broadcast %162 : vector<1x256xf32> to vector<4x256xf32>
    %165 = arith.mulf %163, %164 : vector<4x256xf32>
    %166 = arith.addf %160, %165 : vector<4x256xf32>
    %167 = vector.extract_strided_slice %3 {offsets = [0, 21], sizes = [4, 1], strides = [1, 1]} : vector<4x36xf32> to vector<4x1xf32>
    %168 = vector.extract_strided_slice %20 {offsets = [2, 0], sizes = [1, 256], strides = [1, 1]} : vector<4x256xf32> to vector<1x256xf32>
    %169 = vector.broadcast %167 : vector<4x1xf32> to vector<4x256xf32>
    %170 = vector.broadcast %168 : vector<1x256xf32> to vector<4x256xf32>
    %171 = arith.mulf %169, %170 : vector<4x256xf32>
    %172 = arith.addf %166, %171 : vector<4x256xf32>
    %173 = vector.extract_strided_slice %3 {offsets = [0, 22], sizes = [4, 1], strides = [1, 1]} : vector<4x36xf32> to vector<4x1xf32>
    %174 = vector.extract_strided_slice %23 {offsets = [2, 0], sizes = [1, 256], strides = [1, 1]} : vector<4x256xf32> to vector<1x256xf32>
    %175 = vector.broadcast %173 : vector<4x1xf32> to vector<4x256xf32>
    %176 = vector.broadcast %174 : vector<1x256xf32> to vector<4x256xf32>
    %177 = arith.mulf %175, %176 : vector<4x256xf32>
    %178 = arith.addf %172, %177 : vector<4x256xf32>
    %179 = vector.extract_strided_slice %3 {offsets = [0, 23], sizes = [4, 1], strides = [1, 1]} : vector<4x36xf32> to vector<4x1xf32>
    %180 = vector.extract_strided_slice %27 {offsets = [2, 0], sizes = [1, 256], strides = [1, 1]} : vector<4x256xf32> to vector<1x256xf32>
    %181 = vector.broadcast %179 : vector<4x1xf32> to vector<4x256xf32>
    %182 = vector.broadcast %180 : vector<1x256xf32> to vector<4x256xf32>
    %183 = arith.mulf %181, %182 : vector<4x256xf32>
    %184 = arith.addf %178, %183 : vector<4x256xf32>
    %185 = vector.extract_strided_slice %3 {offsets = [0, 24], sizes = [4, 1], strides = [1, 1]} : vector<4x36xf32> to vector<4x1xf32>
    %186 = vector.extract_strided_slice %31 {offsets = [2, 0], sizes = [1, 256], strides = [1, 1]} : vector<4x256xf32> to vector<1x256xf32>
    %187 = vector.broadcast %185 : vector<4x1xf32> to vector<4x256xf32>
    %188 = vector.broadcast %186 : vector<1x256xf32> to vector<4x256xf32>
    %189 = arith.mulf %187, %188 : vector<4x256xf32>
    %190 = arith.addf %184, %189 : vector<4x256xf32>
    %191 = vector.extract_strided_slice %3 {offsets = [0, 25], sizes = [4, 1], strides = [1, 1]} : vector<4x36xf32> to vector<4x1xf32>
    %192 = vector.extract_strided_slice %35 {offsets = [2, 0], sizes = [1, 256], strides = [1, 1]} : vector<4x256xf32> to vector<1x256xf32>
    %193 = vector.broadcast %191 : vector<4x1xf32> to vector<4x256xf32>
    %194 = vector.broadcast %192 : vector<1x256xf32> to vector<4x256xf32>
    %195 = arith.mulf %193, %194 : vector<4x256xf32>
    %196 = arith.addf %190, %195 : vector<4x256xf32>
    %197 = vector.extract_strided_slice %3 {offsets = [0, 26], sizes = [4, 1], strides = [1, 1]} : vector<4x36xf32> to vector<4x1xf32>
    %198 = vector.extract_strided_slice %39 {offsets = [2, 0], sizes = [1, 256], strides = [1, 1]} : vector<4x256xf32> to vector<1x256xf32>
    %199 = vector.broadcast %197 : vector<4x1xf32> to vector<4x256xf32>
    %200 = vector.broadcast %198 : vector<1x256xf32> to vector<4x256xf32>
    %201 = arith.mulf %199, %200 : vector<4x256xf32>
    %202 = arith.addf %196, %201 : vector<4x256xf32>
    %203 = vector.extract_strided_slice %3 {offsets = [0, 27], sizes = [4, 1], strides = [1, 1]} : vector<4x36xf32> to vector<4x1xf32>
    %204 = vector.extract_strided_slice %8 {offsets = [3, 0], sizes = [1, 256], strides = [1, 1]} : vector<4x256xf32> to vector<1x256xf32>
    %205 = vector.broadcast %203 : vector<4x1xf32> to vector<4x256xf32>
    %206 = vector.broadcast %204 : vector<1x256xf32> to vector<4x256xf32>
    %207 = arith.mulf %205, %206 : vector<4x256xf32>
    %208 = arith.addf %202, %207 : vector<4x256xf32>
    %209 = vector.extract_strided_slice %3 {offsets = [0, 28], sizes = [4, 1], strides = [1, 1]} : vector<4x36xf32> to vector<4x1xf32>
    %210 = vector.extract_strided_slice %12 {offsets = [3, 0], sizes = [1, 256], strides = [1, 1]} : vector<4x256xf32> to vector<1x256xf32>
    %211 = vector.broadcast %209 : vector<4x1xf32> to vector<4x256xf32>
    %212 = vector.broadcast %210 : vector<1x256xf32> to vector<4x256xf32>
    %213 = arith.mulf %211, %212 : vector<4x256xf32>
    %214 = arith.addf %208, %213 : vector<4x256xf32>
    %215 = vector.extract_strided_slice %3 {offsets = [0, 29], sizes = [4, 1], strides = [1, 1]} : vector<4x36xf32> to vector<4x1xf32>
    %216 = vector.extract_strided_slice %16 {offsets = [3, 0], sizes = [1, 256], strides = [1, 1]} : vector<4x256xf32> to vector<1x256xf32>
    %217 = vector.broadcast %215 : vector<4x1xf32> to vector<4x256xf32>
    %218 = vector.broadcast %216 : vector<1x256xf32> to vector<4x256xf32>
    %219 = arith.mulf %217, %218 : vector<4x256xf32>
    %220 = arith.addf %214, %219 : vector<4x256xf32>
    %221 = vector.extract_strided_slice %3 {offsets = [0, 30], sizes = [4, 1], strides = [1, 1]} : vector<4x36xf32> to vector<4x1xf32>
    %222 = vector.extract_strided_slice %20 {offsets = [3, 0], sizes = [1, 256], strides = [1, 1]} : vector<4x256xf32> to vector<1x256xf32>
    %223 = vector.broadcast %221 : vector<4x1xf32> to vector<4x256xf32>
    %224 = vector.broadcast %222 : vector<1x256xf32> to vector<4x256xf32>
    %225 = arith.mulf %223, %224 : vector<4x256xf32>
    %226 = arith.addf %220, %225 : vector<4x256xf32>
    %227 = vector.extract_strided_slice %3 {offsets = [0, 31], sizes = [4, 1], strides = [1, 1]} : vector<4x36xf32> to vector<4x1xf32>
    %228 = vector.extract_strided_slice %23 {offsets = [3, 0], sizes = [1, 256], strides = [1, 1]} : vector<4x256xf32> to vector<1x256xf32>
    %229 = vector.broadcast %227 : vector<4x1xf32> to vector<4x256xf32>
    %230 = vector.broadcast %228 : vector<1x256xf32> to vector<4x256xf32>
    %231 = arith.mulf %229, %230 : vector<4x256xf32>
    %232 = arith.addf %226, %231 : vector<4x256xf32>
    %233 = vector.extract_strided_slice %3 {offsets = [0, 32], sizes = [4, 1], strides = [1, 1]} : vector<4x36xf32> to vector<4x1xf32>
    %234 = vector.extract_strided_slice %27 {offsets = [3, 0], sizes = [1, 256], strides = [1, 1]} : vector<4x256xf32> to vector<1x256xf32>
    %235 = vector.broadcast %233 : vector<4x1xf32> to vector<4x256xf32>
    %236 = vector.broadcast %234 : vector<1x256xf32> to vector<4x256xf32>
    %237 = arith.mulf %235, %236 : vector<4x256xf32>
    %238 = arith.addf %232, %237 : vector<4x256xf32>
    %239 = vector.extract_strided_slice %3 {offsets = [0, 33], sizes = [4, 1], strides = [1, 1]} : vector<4x36xf32> to vector<4x1xf32>
    %240 = vector.extract_strided_slice %31 {offsets = [3, 0], sizes = [1, 256], strides = [1, 1]} : vector<4x256xf32> to vector<1x256xf32>
    %241 = vector.broadcast %239 : vector<4x1xf32> to vector<4x256xf32>
    %242 = vector.broadcast %240 : vector<1x256xf32> to vector<4x256xf32>
    %243 = arith.mulf %241, %242 : vector<4x256xf32>
    %244 = arith.addf %238, %243 : vector<4x256xf32>
    %245 = vector.extract_strided_slice %3 {offsets = [0, 34], sizes = [4, 1], strides = [1, 1]} : vector<4x36xf32> to vector<4x1xf32>
    %246 = vector.extract_strided_slice %35 {offsets = [3, 0], sizes = [1, 256], strides = [1, 1]} : vector<4x256xf32> to vector<1x256xf32>
    %247 = vector.broadcast %245 : vector<4x1xf32> to vector<4x256xf32>
    %248 = vector.broadcast %246 : vector<1x256xf32> to vector<4x256xf32>
    %249 = arith.mulf %247, %248 : vector<4x256xf32>
    %250 = arith.addf %244, %249 : vector<4x256xf32>
    %251 = vector.extract_strided_slice %3 {offsets = [0, 35], sizes = [4, 1], strides = [1, 1]} : vector<4x36xf32> to vector<4x1xf32>
    %252 = vector.extract_strided_slice %39 {offsets = [3, 0], sizes = [1, 256], strides = [1, 1]} : vector<4x256xf32> to vector<1x256xf32>
    %253 = vector.broadcast %251 : vector<4x1xf32> to vector<4x256xf32>
    %254 = vector.broadcast %252 : vector<1x256xf32> to vector<4x256xf32>
    %255 = arith.mulf %253, %254 : vector<4x256xf32>
    %256 = arith.addf %250, %255 : vector<4x256xf32>
    %257 = vector.broadcast %4 : vector<4x1xf32> to vector<4x256xf32>
    %258 = arith.addf %256, %257 : vector<4x256xf32>
    %cst_8 = arith.constant 0.000000e+00 : f32
    %259 = vector.broadcast %cst_8 : f32 to vector<4x256xf32>
    %260 = arith.maximumf %258, %259 : vector<4x256xf32>
    %c0_9 = arith.constant 0 : index
    %c0_10 = arith.constant 0 : index
    %261 = vector.load %arg5[%c0_9, %c0_10] : memref<4x36xf32, #tpu.memory_space<vmem>>, vector<4x36xf32>
    %c0_11 = arith.constant 0 : index
    %c0_12 = arith.constant 0 : index
    %262 = vector.load %arg6[%c0_11, %c0_12] : memref<4x1xf32, #tpu.memory_space<vmem>>, vector<4x1xf32>
    %c17_i32_13 = arith.constant 17 : i32
    %263 = tpu.dynamic_rotate %260 by %c17_i32_13 dim 1 : vector<4x256xf32>, i32 -> vector<4x256xf32>
    %264 = vector.extract_strided_slice %2 {offsets = [0, 0], sizes = [1, 256], strides = [1, 1]} : vector<9x256xf32> to vector<1x256xf32>
    %265 = vector.broadcast %264 : vector<1x256xf32> to vector<4x256xf32>
    %266 = arith.mulf %263, %265 : vector<4x256xf32>
    %c16_i32_14 = arith.constant 16 : i32
    %267 = tpu.dynamic_rotate %260 by %c16_i32_14 dim 1 : vector<4x256xf32>, i32 -> vector<4x256xf32>
    %268 = vector.extract_strided_slice %2 {offsets = [1, 0], sizes = [1, 256], strides = [1, 1]} : vector<9x256xf32> to vector<1x256xf32>
    %269 = vector.broadcast %268 : vector<1x256xf32> to vector<4x256xf32>
    %270 = arith.mulf %267, %269 : vector<4x256xf32>
    %c15_i32_15 = arith.constant 15 : i32
    %271 = tpu.dynamic_rotate %260 by %c15_i32_15 dim 1 : vector<4x256xf32>, i32 -> vector<4x256xf32>
    %272 = vector.extract_strided_slice %2 {offsets = [2, 0], sizes = [1, 256], strides = [1, 1]} : vector<9x256xf32> to vector<1x256xf32>
    %273 = vector.broadcast %272 : vector<1x256xf32> to vector<4x256xf32>
    %274 = arith.mulf %271, %273 : vector<4x256xf32>
    %c1_i32_16 = arith.constant 1 : i32
    %275 = tpu.dynamic_rotate %260 by %c1_i32_16 dim 1 : vector<4x256xf32>, i32 -> vector<4x256xf32>
    %276 = vector.extract_strided_slice %2 {offsets = [3, 0], sizes = [1, 256], strides = [1, 1]} : vector<9x256xf32> to vector<1x256xf32>
    %277 = vector.broadcast %276 : vector<1x256xf32> to vector<4x256xf32>
    %278 = arith.mulf %275, %277 : vector<4x256xf32>
    %279 = vector.extract_strided_slice %2 {offsets = [4, 0], sizes = [1, 256], strides = [1, 1]} : vector<9x256xf32> to vector<1x256xf32>
    %280 = vector.broadcast %279 : vector<1x256xf32> to vector<4x256xf32>
    %281 = arith.mulf %260, %280 : vector<4x256xf32>
    %c255_i32_17 = arith.constant 255 : i32
    %282 = tpu.dynamic_rotate %260 by %c255_i32_17 dim 1 : vector<4x256xf32>, i32 -> vector<4x256xf32>
    %283 = vector.extract_strided_slice %2 {offsets = [5, 0], sizes = [1, 256], strides = [1, 1]} : vector<9x256xf32> to vector<1x256xf32>
    %284 = vector.broadcast %283 : vector<1x256xf32> to vector<4x256xf32>
    %285 = arith.mulf %282, %284 : vector<4x256xf32>
    %c241_i32_18 = arith.constant 241 : i32
    %286 = tpu.dynamic_rotate %260 by %c241_i32_18 dim 1 : vector<4x256xf32>, i32 -> vector<4x256xf32>
    %287 = vector.extract_strided_slice %2 {offsets = [6, 0], sizes = [1, 256], strides = [1, 1]} : vector<9x256xf32> to vector<1x256xf32>
    %288 = vector.broadcast %287 : vector<1x256xf32> to vector<4x256xf32>
    %289 = arith.mulf %286, %288 : vector<4x256xf32>
    %c240_i32_19 = arith.constant 240 : i32
    %290 = tpu.dynamic_rotate %260 by %c240_i32_19 dim 1 : vector<4x256xf32>, i32 -> vector<4x256xf32>
    %291 = vector.extract_strided_slice %2 {offsets = [7, 0], sizes = [1, 256], strides = [1, 1]} : vector<9x256xf32> to vector<1x256xf32>
    %292 = vector.broadcast %291 : vector<1x256xf32> to vector<4x256xf32>
    %293 = arith.mulf %290, %292 : vector<4x256xf32>
    %c239_i32_20 = arith.constant 239 : i32
    %294 = tpu.dynamic_rotate %260 by %c239_i32_20 dim 1 : vector<4x256xf32>, i32 -> vector<4x256xf32>
    %295 = vector.extract_strided_slice %2 {offsets = [8, 0], sizes = [1, 256], strides = [1, 1]} : vector<9x256xf32> to vector<1x256xf32>
    %296 = vector.broadcast %295 : vector<1x256xf32> to vector<4x256xf32>
    %297 = arith.mulf %294, %296 : vector<4x256xf32>
    %cst_21 = arith.constant 0.000000e+00 : f32
    %298 = vector.broadcast %cst_21 : f32 to vector<4x256xf32>
    %299 = vector.extract_strided_slice %261 {offsets = [0, 0], sizes = [4, 1], strides = [1, 1]} : vector<4x36xf32> to vector<4x1xf32>
    %300 = vector.extract_strided_slice %266 {offsets = [0, 0], sizes = [1, 256], strides = [1, 1]} : vector<4x256xf32> to vector<1x256xf32>
    %301 = vector.broadcast %299 : vector<4x1xf32> to vector<4x256xf32>
    %302 = vector.broadcast %300 : vector<1x256xf32> to vector<4x256xf32>
    %303 = arith.mulf %301, %302 : vector<4x256xf32>
    %304 = arith.addf %298, %303 : vector<4x256xf32>
    %305 = vector.extract_strided_slice %261 {offsets = [0, 1], sizes = [4, 1], strides = [1, 1]} : vector<4x36xf32> to vector<4x1xf32>
    %306 = vector.extract_strided_slice %270 {offsets = [0, 0], sizes = [1, 256], strides = [1, 1]} : vector<4x256xf32> to vector<1x256xf32>
    %307 = vector.broadcast %305 : vector<4x1xf32> to vector<4x256xf32>
    %308 = vector.broadcast %306 : vector<1x256xf32> to vector<4x256xf32>
    %309 = arith.mulf %307, %308 : vector<4x256xf32>
    %310 = arith.addf %304, %309 : vector<4x256xf32>
    %311 = vector.extract_strided_slice %261 {offsets = [0, 2], sizes = [4, 1], strides = [1, 1]} : vector<4x36xf32> to vector<4x1xf32>
    %312 = vector.extract_strided_slice %274 {offsets = [0, 0], sizes = [1, 256], strides = [1, 1]} : vector<4x256xf32> to vector<1x256xf32>
    %313 = vector.broadcast %311 : vector<4x1xf32> to vector<4x256xf32>
    %314 = vector.broadcast %312 : vector<1x256xf32> to vector<4x256xf32>
    %315 = arith.mulf %313, %314 : vector<4x256xf32>
    %316 = arith.addf %310, %315 : vector<4x256xf32>
    %317 = vector.extract_strided_slice %261 {offsets = [0, 3], sizes = [4, 1], strides = [1, 1]} : vector<4x36xf32> to vector<4x1xf32>
    %318 = vector.extract_strided_slice %278 {offsets = [0, 0], sizes = [1, 256], strides = [1, 1]} : vector<4x256xf32> to vector<1x256xf32>
    %319 = vector.broadcast %317 : vector<4x1xf32> to vector<4x256xf32>
    %320 = vector.broadcast %318 : vector<1x256xf32> to vector<4x256xf32>
    %321 = arith.mulf %319, %320 : vector<4x256xf32>
    %322 = arith.addf %316, %321 : vector<4x256xf32>
    %323 = vector.extract_strided_slice %261 {offsets = [0, 4], sizes = [4, 1], strides = [1, 1]} : vector<4x36xf32> to vector<4x1xf32>
    %324 = vector.extract_strided_slice %281 {offsets = [0, 0], sizes = [1, 256], strides = [1, 1]} : vector<4x256xf32> to vector<1x256xf32>
    %325 = vector.broadcast %323 : vector<4x1xf32> to vector<4x256xf32>
    %326 = vector.broadcast %324 : vector<1x256xf32> to vector<4x256xf32>
    %327 = arith.mulf %325, %326 : vector<4x256xf32>
    %328 = arith.addf %322, %327 : vector<4x256xf32>
    %329 = vector.extract_strided_slice %261 {offsets = [0, 5], sizes = [4, 1], strides = [1, 1]} : vector<4x36xf32> to vector<4x1xf32>
    %330 = vector.extract_strided_slice %285 {offsets = [0, 0], sizes = [1, 256], strides = [1, 1]} : vector<4x256xf32> to vector<1x256xf32>
    %331 = vector.broadcast %329 : vector<4x1xf32> to vector<4x256xf32>
    %332 = vector.broadcast %330 : vector<1x256xf32> to vector<4x256xf32>
    %333 = arith.mulf %331, %332 : vector<4x256xf32>
    %334 = arith.addf %328, %333 : vector<4x256xf32>
    %335 = vector.extract_strided_slice %261 {offsets = [0, 6], sizes = [4, 1], strides = [1, 1]} : vector<4x36xf32> to vector<4x1xf32>
    %336 = vector.extract_strided_slice %289 {offsets = [0, 0], sizes = [1, 256], strides = [1, 1]} : vector<4x256xf32> to vector<1x256xf32>
    %337 = vector.broadcast %335 : vector<4x1xf32> to vector<4x256xf32>
    %338 = vector.broadcast %336 : vector<1x256xf32> to vector<4x256xf32>
    %339 = arith.mulf %337, %338 : vector<4x256xf32>
    %340 = arith.addf %334, %339 : vector<4x256xf32>
    %341 = vector.extract_strided_slice %261 {offsets = [0, 7], sizes = [4, 1], strides = [1, 1]} : vector<4x36xf32> to vector<4x1xf32>
    %342 = vector.extract_strided_slice %293 {offsets = [0, 0], sizes = [1, 256], strides = [1, 1]} : vector<4x256xf32> to vector<1x256xf32>
    %343 = vector.broadcast %341 : vector<4x1xf32> to vector<4x256xf32>
    %344 = vector.broadcast %342 : vector<1x256xf32> to vector<4x256xf32>
    %345 = arith.mulf %343, %344 : vector<4x256xf32>
    %346 = arith.addf %340, %345 : vector<4x256xf32>
    %347 = vector.extract_strided_slice %261 {offsets = [0, 8], sizes = [4, 1], strides = [1, 1]} : vector<4x36xf32> to vector<4x1xf32>
    %348 = vector.extract_strided_slice %297 {offsets = [0, 0], sizes = [1, 256], strides = [1, 1]} : vector<4x256xf32> to vector<1x256xf32>
    %349 = vector.broadcast %347 : vector<4x1xf32> to vector<4x256xf32>
    %350 = vector.broadcast %348 : vector<1x256xf32> to vector<4x256xf32>
    %351 = arith.mulf %349, %350 : vector<4x256xf32>
    %352 = arith.addf %346, %351 : vector<4x256xf32>
    %353 = vector.extract_strided_slice %261 {offsets = [0, 9], sizes = [4, 1], strides = [1, 1]} : vector<4x36xf32> to vector<4x1xf32>
    %354 = vector.extract_strided_slice %266 {offsets = [1, 0], sizes = [1, 256], strides = [1, 1]} : vector<4x256xf32> to vector<1x256xf32>
    %355 = vector.broadcast %353 : vector<4x1xf32> to vector<4x256xf32>
    %356 = vector.broadcast %354 : vector<1x256xf32> to vector<4x256xf32>
    %357 = arith.mulf %355, %356 : vector<4x256xf32>
    %358 = arith.addf %352, %357 : vector<4x256xf32>
    %359 = vector.extract_strided_slice %261 {offsets = [0, 10], sizes = [4, 1], strides = [1, 1]} : vector<4x36xf32> to vector<4x1xf32>
    %360 = vector.extract_strided_slice %270 {offsets = [1, 0], sizes = [1, 256], strides = [1, 1]} : vector<4x256xf32> to vector<1x256xf32>
    %361 = vector.broadcast %359 : vector<4x1xf32> to vector<4x256xf32>
    %362 = vector.broadcast %360 : vector<1x256xf32> to vector<4x256xf32>
    %363 = arith.mulf %361, %362 : vector<4x256xf32>
    %364 = arith.addf %358, %363 : vector<4x256xf32>
    %365 = vector.extract_strided_slice %261 {offsets = [0, 11], sizes = [4, 1], strides = [1, 1]} : vector<4x36xf32> to vector<4x1xf32>
    %366 = vector.extract_strided_slice %274 {offsets = [1, 0], sizes = [1, 256], strides = [1, 1]} : vector<4x256xf32> to vector<1x256xf32>
    %367 = vector.broadcast %365 : vector<4x1xf32> to vector<4x256xf32>
    %368 = vector.broadcast %366 : vector<1x256xf32> to vector<4x256xf32>
    %369 = arith.mulf %367, %368 : vector<4x256xf32>
    %370 = arith.addf %364, %369 : vector<4x256xf32>
    %371 = vector.extract_strided_slice %261 {offsets = [0, 12], sizes = [4, 1], strides = [1, 1]} : vector<4x36xf32> to vector<4x1xf32>
    %372 = vector.extract_strided_slice %278 {offsets = [1, 0], sizes = [1, 256], strides = [1, 1]} : vector<4x256xf32> to vector<1x256xf32>
    %373 = vector.broadcast %371 : vector<4x1xf32> to vector<4x256xf32>
    %374 = vector.broadcast %372 : vector<1x256xf32> to vector<4x256xf32>
    %375 = arith.mulf %373, %374 : vector<4x256xf32>
    %376 = arith.addf %370, %375 : vector<4x256xf32>
    %377 = vector.extract_strided_slice %261 {offsets = [0, 13], sizes = [4, 1], strides = [1, 1]} : vector<4x36xf32> to vector<4x1xf32>
    %378 = vector.extract_strided_slice %281 {offsets = [1, 0], sizes = [1, 256], strides = [1, 1]} : vector<4x256xf32> to vector<1x256xf32>
    %379 = vector.broadcast %377 : vector<4x1xf32> to vector<4x256xf32>
    %380 = vector.broadcast %378 : vector<1x256xf32> to vector<4x256xf32>
    %381 = arith.mulf %379, %380 : vector<4x256xf32>
    %382 = arith.addf %376, %381 : vector<4x256xf32>
    %383 = vector.extract_strided_slice %261 {offsets = [0, 14], sizes = [4, 1], strides = [1, 1]} : vector<4x36xf32> to vector<4x1xf32>
    %384 = vector.extract_strided_slice %285 {offsets = [1, 0], sizes = [1, 256], strides = [1, 1]} : vector<4x256xf32> to vector<1x256xf32>
    %385 = vector.broadcast %383 : vector<4x1xf32> to vector<4x256xf32>
    %386 = vector.broadcast %384 : vector<1x256xf32> to vector<4x256xf32>
    %387 = arith.mulf %385, %386 : vector<4x256xf32>
    %388 = arith.addf %382, %387 : vector<4x256xf32>
    %389 = vector.extract_strided_slice %261 {offsets = [0, 15], sizes = [4, 1], strides = [1, 1]} : vector<4x36xf32> to vector<4x1xf32>
    %390 = vector.extract_strided_slice %289 {offsets = [1, 0], sizes = [1, 256], strides = [1, 1]} : vector<4x256xf32> to vector<1x256xf32>
    %391 = vector.broadcast %389 : vector<4x1xf32> to vector<4x256xf32>
    %392 = vector.broadcast %390 : vector<1x256xf32> to vector<4x256xf32>
    %393 = arith.mulf %391, %392 : vector<4x256xf32>
    %394 = arith.addf %388, %393 : vector<4x256xf32>
    %395 = vector.extract_strided_slice %261 {offsets = [0, 16], sizes = [4, 1], strides = [1, 1]} : vector<4x36xf32> to vector<4x1xf32>
    %396 = vector.extract_strided_slice %293 {offsets = [1, 0], sizes = [1, 256], strides = [1, 1]} : vector<4x256xf32> to vector<1x256xf32>
    %397 = vector.broadcast %395 : vector<4x1xf32> to vector<4x256xf32>
    %398 = vector.broadcast %396 : vector<1x256xf32> to vector<4x256xf32>
    %399 = arith.mulf %397, %398 : vector<4x256xf32>
    %400 = arith.addf %394, %399 : vector<4x256xf32>
    %401 = vector.extract_strided_slice %261 {offsets = [0, 17], sizes = [4, 1], strides = [1, 1]} : vector<4x36xf32> to vector<4x1xf32>
    %402 = vector.extract_strided_slice %297 {offsets = [1, 0], sizes = [1, 256], strides = [1, 1]} : vector<4x256xf32> to vector<1x256xf32>
    %403 = vector.broadcast %401 : vector<4x1xf32> to vector<4x256xf32>
    %404 = vector.broadcast %402 : vector<1x256xf32> to vector<4x256xf32>
    %405 = arith.mulf %403, %404 : vector<4x256xf32>
    %406 = arith.addf %400, %405 : vector<4x256xf32>
    %407 = vector.extract_strided_slice %261 {offsets = [0, 18], sizes = [4, 1], strides = [1, 1]} : vector<4x36xf32> to vector<4x1xf32>
    %408 = vector.extract_strided_slice %266 {offsets = [2, 0], sizes = [1, 256], strides = [1, 1]} : vector<4x256xf32> to vector<1x256xf32>
    %409 = vector.broadcast %407 : vector<4x1xf32> to vector<4x256xf32>
    %410 = vector.broadcast %408 : vector<1x256xf32> to vector<4x256xf32>
    %411 = arith.mulf %409, %410 : vector<4x256xf32>
    %412 = arith.addf %406, %411 : vector<4x256xf32>
    %413 = vector.extract_strided_slice %261 {offsets = [0, 19], sizes = [4, 1], strides = [1, 1]} : vector<4x36xf32> to vector<4x1xf32>
    %414 = vector.extract_strided_slice %270 {offsets = [2, 0], sizes = [1, 256], strides = [1, 1]} : vector<4x256xf32> to vector<1x256xf32>
    %415 = vector.broadcast %413 : vector<4x1xf32> to vector<4x256xf32>
    %416 = vector.broadcast %414 : vector<1x256xf32> to vector<4x256xf32>
    %417 = arith.mulf %415, %416 : vector<4x256xf32>
    %418 = arith.addf %412, %417 : vector<4x256xf32>
    %419 = vector.extract_strided_slice %261 {offsets = [0, 20], sizes = [4, 1], strides = [1, 1]} : vector<4x36xf32> to vector<4x1xf32>
    %420 = vector.extract_strided_slice %274 {offsets = [2, 0], sizes = [1, 256], strides = [1, 1]} : vector<4x256xf32> to vector<1x256xf32>
    %421 = vector.broadcast %419 : vector<4x1xf32> to vector<4x256xf32>
    %422 = vector.broadcast %420 : vector<1x256xf32> to vector<4x256xf32>
    %423 = arith.mulf %421, %422 : vector<4x256xf32>
    %424 = arith.addf %418, %423 : vector<4x256xf32>
    %425 = vector.extract_strided_slice %261 {offsets = [0, 21], sizes = [4, 1], strides = [1, 1]} : vector<4x36xf32> to vector<4x1xf32>
    %426 = vector.extract_strided_slice %278 {offsets = [2, 0], sizes = [1, 256], strides = [1, 1]} : vector<4x256xf32> to vector<1x256xf32>
    %427 = vector.broadcast %425 : vector<4x1xf32> to vector<4x256xf32>
    %428 = vector.broadcast %426 : vector<1x256xf32> to vector<4x256xf32>
    %429 = arith.mulf %427, %428 : vector<4x256xf32>
    %430 = arith.addf %424, %429 : vector<4x256xf32>
    %431 = vector.extract_strided_slice %261 {offsets = [0, 22], sizes = [4, 1], strides = [1, 1]} : vector<4x36xf32> to vector<4x1xf32>
    %432 = vector.extract_strided_slice %281 {offsets = [2, 0], sizes = [1, 256], strides = [1, 1]} : vector<4x256xf32> to vector<1x256xf32>
    %433 = vector.broadcast %431 : vector<4x1xf32> to vector<4x256xf32>
    %434 = vector.broadcast %432 : vector<1x256xf32> to vector<4x256xf32>
    %435 = arith.mulf %433, %434 : vector<4x256xf32>
    %436 = arith.addf %430, %435 : vector<4x256xf32>
    %437 = vector.extract_strided_slice %261 {offsets = [0, 23], sizes = [4, 1], strides = [1, 1]} : vector<4x36xf32> to vector<4x1xf32>
    %438 = vector.extract_strided_slice %285 {offsets = [2, 0], sizes = [1, 256], strides = [1, 1]} : vector<4x256xf32> to vector<1x256xf32>
    %439 = vector.broadcast %437 : vector<4x1xf32> to vector<4x256xf32>
    %440 = vector.broadcast %438 : vector<1x256xf32> to vector<4x256xf32>
    %441 = arith.mulf %439, %440 : vector<4x256xf32>
    %442 = arith.addf %436, %441 : vector<4x256xf32>
    %443 = vector.extract_strided_slice %261 {offsets = [0, 24], sizes = [4, 1], strides = [1, 1]} : vector<4x36xf32> to vector<4x1xf32>
    %444 = vector.extract_strided_slice %289 {offsets = [2, 0], sizes = [1, 256], strides = [1, 1]} : vector<4x256xf32> to vector<1x256xf32>
    %445 = vector.broadcast %443 : vector<4x1xf32> to vector<4x256xf32>
    %446 = vector.broadcast %444 : vector<1x256xf32> to vector<4x256xf32>
    %447 = arith.mulf %445, %446 : vector<4x256xf32>
    %448 = arith.addf %442, %447 : vector<4x256xf32>
    %449 = vector.extract_strided_slice %261 {offsets = [0, 25], sizes = [4, 1], strides = [1, 1]} : vector<4x36xf32> to vector<4x1xf32>
    %450 = vector.extract_strided_slice %293 {offsets = [2, 0], sizes = [1, 256], strides = [1, 1]} : vector<4x256xf32> to vector<1x256xf32>
    %451 = vector.broadcast %449 : vector<4x1xf32> to vector<4x256xf32>
    %452 = vector.broadcast %450 : vector<1x256xf32> to vector<4x256xf32>
    %453 = arith.mulf %451, %452 : vector<4x256xf32>
    %454 = arith.addf %448, %453 : vector<4x256xf32>
    %455 = vector.extract_strided_slice %261 {offsets = [0, 26], sizes = [4, 1], strides = [1, 1]} : vector<4x36xf32> to vector<4x1xf32>
    %456 = vector.extract_strided_slice %297 {offsets = [2, 0], sizes = [1, 256], strides = [1, 1]} : vector<4x256xf32> to vector<1x256xf32>
    %457 = vector.broadcast %455 : vector<4x1xf32> to vector<4x256xf32>
    %458 = vector.broadcast %456 : vector<1x256xf32> to vector<4x256xf32>
    %459 = arith.mulf %457, %458 : vector<4x256xf32>
    %460 = arith.addf %454, %459 : vector<4x256xf32>
    %461 = vector.extract_strided_slice %261 {offsets = [0, 27], sizes = [4, 1], strides = [1, 1]} : vector<4x36xf32> to vector<4x1xf32>
    %462 = vector.extract_strided_slice %266 {offsets = [3, 0], sizes = [1, 256], strides = [1, 1]} : vector<4x256xf32> to vector<1x256xf32>
    %463 = vector.broadcast %461 : vector<4x1xf32> to vector<4x256xf32>
    %464 = vector.broadcast %462 : vector<1x256xf32> to vector<4x256xf32>
    %465 = arith.mulf %463, %464 : vector<4x256xf32>
    %466 = arith.addf %460, %465 : vector<4x256xf32>
    %467 = vector.extract_strided_slice %261 {offsets = [0, 28], sizes = [4, 1], strides = [1, 1]} : vector<4x36xf32> to vector<4x1xf32>
    %468 = vector.extract_strided_slice %270 {offsets = [3, 0], sizes = [1, 256], strides = [1, 1]} : vector<4x256xf32> to vector<1x256xf32>
    %469 = vector.broadcast %467 : vector<4x1xf32> to vector<4x256xf32>
    %470 = vector.broadcast %468 : vector<1x256xf32> to vector<4x256xf32>
    %471 = arith.mulf %469, %470 : vector<4x256xf32>
    %472 = arith.addf %466, %471 : vector<4x256xf32>
    %473 = vector.extract_strided_slice %261 {offsets = [0, 29], sizes = [4, 1], strides = [1, 1]} : vector<4x36xf32> to vector<4x1xf32>
    %474 = vector.extract_strided_slice %274 {offsets = [3, 0], sizes = [1, 256], strides = [1, 1]} : vector<4x256xf32> to vector<1x256xf32>
    %475 = vector.broadcast %473 : vector<4x1xf32> to vector<4x256xf32>
    %476 = vector.broadcast %474 : vector<1x256xf32> to vector<4x256xf32>
    %477 = arith.mulf %475, %476 : vector<4x256xf32>
    %478 = arith.addf %472, %477 : vector<4x256xf32>
    %479 = vector.extract_strided_slice %261 {offsets = [0, 30], sizes = [4, 1], strides = [1, 1]} : vector<4x36xf32> to vector<4x1xf32>
    %480 = vector.extract_strided_slice %278 {offsets = [3, 0], sizes = [1, 256], strides = [1, 1]} : vector<4x256xf32> to vector<1x256xf32>
    %481 = vector.broadcast %479 : vector<4x1xf32> to vector<4x256xf32>
    %482 = vector.broadcast %480 : vector<1x256xf32> to vector<4x256xf32>
    %483 = arith.mulf %481, %482 : vector<4x256xf32>
    %484 = arith.addf %478, %483 : vector<4x256xf32>
    %485 = vector.extract_strided_slice %261 {offsets = [0, 31], sizes = [4, 1], strides = [1, 1]} : vector<4x36xf32> to vector<4x1xf32>
    %486 = vector.extract_strided_slice %281 {offsets = [3, 0], sizes = [1, 256], strides = [1, 1]} : vector<4x256xf32> to vector<1x256xf32>
    %487 = vector.broadcast %485 : vector<4x1xf32> to vector<4x256xf32>
    %488 = vector.broadcast %486 : vector<1x256xf32> to vector<4x256xf32>
    %489 = arith.mulf %487, %488 : vector<4x256xf32>
    %490 = arith.addf %484, %489 : vector<4x256xf32>
    %491 = vector.extract_strided_slice %261 {offsets = [0, 32], sizes = [4, 1], strides = [1, 1]} : vector<4x36xf32> to vector<4x1xf32>
    %492 = vector.extract_strided_slice %285 {offsets = [3, 0], sizes = [1, 256], strides = [1, 1]} : vector<4x256xf32> to vector<1x256xf32>
    %493 = vector.broadcast %491 : vector<4x1xf32> to vector<4x256xf32>
    %494 = vector.broadcast %492 : vector<1x256xf32> to vector<4x256xf32>
    %495 = arith.mulf %493, %494 : vector<4x256xf32>
    %496 = arith.addf %490, %495 : vector<4x256xf32>
    %497 = vector.extract_strided_slice %261 {offsets = [0, 33], sizes = [4, 1], strides = [1, 1]} : vector<4x36xf32> to vector<4x1xf32>
    %498 = vector.extract_strided_slice %289 {offsets = [3, 0], sizes = [1, 256], strides = [1, 1]} : vector<4x256xf32> to vector<1x256xf32>
    %499 = vector.broadcast %497 : vector<4x1xf32> to vector<4x256xf32>
    %500 = vector.broadcast %498 : vector<1x256xf32> to vector<4x256xf32>
    %501 = arith.mulf %499, %500 : vector<4x256xf32>
    %502 = arith.addf %496, %501 : vector<4x256xf32>
    %503 = vector.extract_strided_slice %261 {offsets = [0, 34], sizes = [4, 1], strides = [1, 1]} : vector<4x36xf32> to vector<4x1xf32>
    %504 = vector.extract_strided_slice %293 {offsets = [3, 0], sizes = [1, 256], strides = [1, 1]} : vector<4x256xf32> to vector<1x256xf32>
    %505 = vector.broadcast %503 : vector<4x1xf32> to vector<4x256xf32>
    %506 = vector.broadcast %504 : vector<1x256xf32> to vector<4x256xf32>
    %507 = arith.mulf %505, %506 : vector<4x256xf32>
    %508 = arith.addf %502, %507 : vector<4x256xf32>
    %509 = vector.extract_strided_slice %261 {offsets = [0, 35], sizes = [4, 1], strides = [1, 1]} : vector<4x36xf32> to vector<4x1xf32>
    %510 = vector.extract_strided_slice %297 {offsets = [3, 0], sizes = [1, 256], strides = [1, 1]} : vector<4x256xf32> to vector<1x256xf32>
    %511 = vector.broadcast %509 : vector<4x1xf32> to vector<4x256xf32>
    %512 = vector.broadcast %510 : vector<1x256xf32> to vector<4x256xf32>
    %513 = arith.mulf %511, %512 : vector<4x256xf32>
    %514 = arith.addf %508, %513 : vector<4x256xf32>
    %515 = vector.broadcast %262 : vector<4x1xf32> to vector<4x256xf32>
    %516 = arith.addf %514, %515 : vector<4x256xf32>
    %517 = arith.addf %516, %1 : vector<4x256xf32>
    %c0_22 = arith.constant 0 : index
    %c0_23 = arith.constant 0 : index
    %518 = vector.load %arg7[%c0_22, %c0_23] : memref<4x36xf32, #tpu.memory_space<vmem>>, vector<4x36xf32>
    %c0_24 = arith.constant 0 : index
    %c0_25 = arith.constant 0 : index
    %519 = vector.load %arg8[%c0_24, %c0_25] : memref<4x1xf32, #tpu.memory_space<vmem>>, vector<4x1xf32>
    %c17_i32_26 = arith.constant 17 : i32
    %520 = tpu.dynamic_rotate %517 by %c17_i32_26 dim 1 : vector<4x256xf32>, i32 -> vector<4x256xf32>
    %521 = vector.extract_strided_slice %2 {offsets = [0, 0], sizes = [1, 256], strides = [1, 1]} : vector<9x256xf32> to vector<1x256xf32>
    %522 = vector.broadcast %521 : vector<1x256xf32> to vector<4x256xf32>
    %523 = arith.mulf %520, %522 : vector<4x256xf32>
    %c16_i32_27 = arith.constant 16 : i32
    %524 = tpu.dynamic_rotate %517 by %c16_i32_27 dim 1 : vector<4x256xf32>, i32 -> vector<4x256xf32>
    %525 = vector.extract_strided_slice %2 {offsets = [1, 0], sizes = [1, 256], strides = [1, 1]} : vector<9x256xf32> to vector<1x256xf32>
    %526 = vector.broadcast %525 : vector<1x256xf32> to vector<4x256xf32>
    %527 = arith.mulf %524, %526 : vector<4x256xf32>
    %c15_i32_28 = arith.constant 15 : i32
    %528 = tpu.dynamic_rotate %517 by %c15_i32_28 dim 1 : vector<4x256xf32>, i32 -> vector<4x256xf32>
    %529 = vector.extract_strided_slice %2 {offsets = [2, 0], sizes = [1, 256], strides = [1, 1]} : vector<9x256xf32> to vector<1x256xf32>
    %530 = vector.broadcast %529 : vector<1x256xf32> to vector<4x256xf32>
    %531 = arith.mulf %528, %530 : vector<4x256xf32>
    %c1_i32_29 = arith.constant 1 : i32
    %532 = tpu.dynamic_rotate %517 by %c1_i32_29 dim 1 : vector<4x256xf32>, i32 -> vector<4x256xf32>
    %533 = vector.extract_strided_slice %2 {offsets = [3, 0], sizes = [1, 256], strides = [1, 1]} : vector<9x256xf32> to vector<1x256xf32>
    %534 = vector.broadcast %533 : vector<1x256xf32> to vector<4x256xf32>
    %535 = arith.mulf %532, %534 : vector<4x256xf32>
    %536 = vector.extract_strided_slice %2 {offsets = [4, 0], sizes = [1, 256], strides = [1, 1]} : vector<9x256xf32> to vector<1x256xf32>
    %537 = vector.broadcast %536 : vector<1x256xf32> to vector<4x256xf32>
    %538 = arith.mulf %517, %537 : vector<4x256xf32>
    %c255_i32_30 = arith.constant 255 : i32
    %539 = tpu.dynamic_rotate %517 by %c255_i32_30 dim 1 : vector<4x256xf32>, i32 -> vector<4x256xf32>
    %540 = vector.extract_strided_slice %2 {offsets = [5, 0], sizes = [1, 256], strides = [1, 1]} : vector<9x256xf32> to vector<1x256xf32>
    %541 = vector.broadcast %540 : vector<1x256xf32> to vector<4x256xf32>
    %542 = arith.mulf %539, %541 : vector<4x256xf32>
    %c241_i32_31 = arith.constant 241 : i32
    %543 = tpu.dynamic_rotate %517 by %c241_i32_31 dim 1 : vector<4x256xf32>, i32 -> vector<4x256xf32>
    %544 = vector.extract_strided_slice %2 {offsets = [6, 0], sizes = [1, 256], strides = [1, 1]} : vector<9x256xf32> to vector<1x256xf32>
    %545 = vector.broadcast %544 : vector<1x256xf32> to vector<4x256xf32>
    %546 = arith.mulf %543, %545 : vector<4x256xf32>
    %c240_i32_32 = arith.constant 240 : i32
    %547 = tpu.dynamic_rotate %517 by %c240_i32_32 dim 1 : vector<4x256xf32>, i32 -> vector<4x256xf32>
    %548 = vector.extract_strided_slice %2 {offsets = [7, 0], sizes = [1, 256], strides = [1, 1]} : vector<9x256xf32> to vector<1x256xf32>
    %549 = vector.broadcast %548 : vector<1x256xf32> to vector<4x256xf32>
    %550 = arith.mulf %547, %549 : vector<4x256xf32>
    %c239_i32_33 = arith.constant 239 : i32
    %551 = tpu.dynamic_rotate %517 by %c239_i32_33 dim 1 : vector<4x256xf32>, i32 -> vector<4x256xf32>
    %552 = vector.extract_strided_slice %2 {offsets = [8, 0], sizes = [1, 256], strides = [1, 1]} : vector<9x256xf32> to vector<1x256xf32>
    %553 = vector.broadcast %552 : vector<1x256xf32> to vector<4x256xf32>
    %554 = arith.mulf %551, %553 : vector<4x256xf32>
    %cst_34 = arith.constant 0.000000e+00 : f32
    %555 = vector.broadcast %cst_34 : f32 to vector<4x256xf32>
    %556 = vector.extract_strided_slice %518 {offsets = [0, 0], sizes = [4, 1], strides = [1, 1]} : vector<4x36xf32> to vector<4x1xf32>
    %557 = vector.extract_strided_slice %523 {offsets = [0, 0], sizes = [1, 256], strides = [1, 1]} : vector<4x256xf32> to vector<1x256xf32>
    %558 = vector.broadcast %556 : vector<4x1xf32> to vector<4x256xf32>
    %559 = vector.broadcast %557 : vector<1x256xf32> to vector<4x256xf32>
    %560 = arith.mulf %558, %559 : vector<4x256xf32>
    %561 = arith.addf %555, %560 : vector<4x256xf32>
    %562 = vector.extract_strided_slice %518 {offsets = [0, 1], sizes = [4, 1], strides = [1, 1]} : vector<4x36xf32> to vector<4x1xf32>
    %563 = vector.extract_strided_slice %527 {offsets = [0, 0], sizes = [1, 256], strides = [1, 1]} : vector<4x256xf32> to vector<1x256xf32>
    %564 = vector.broadcast %562 : vector<4x1xf32> to vector<4x256xf32>
    %565 = vector.broadcast %563 : vector<1x256xf32> to vector<4x256xf32>
    %566 = arith.mulf %564, %565 : vector<4x256xf32>
    %567 = arith.addf %561, %566 : vector<4x256xf32>
    %568 = vector.extract_strided_slice %518 {offsets = [0, 2], sizes = [4, 1], strides = [1, 1]} : vector<4x36xf32> to vector<4x1xf32>
    %569 = vector.extract_strided_slice %531 {offsets = [0, 0], sizes = [1, 256], strides = [1, 1]} : vector<4x256xf32> to vector<1x256xf32>
    %570 = vector.broadcast %568 : vector<4x1xf32> to vector<4x256xf32>
    %571 = vector.broadcast %569 : vector<1x256xf32> to vector<4x256xf32>
    %572 = arith.mulf %570, %571 : vector<4x256xf32>
    %573 = arith.addf %567, %572 : vector<4x256xf32>
    %574 = vector.extract_strided_slice %518 {offsets = [0, 3], sizes = [4, 1], strides = [1, 1]} : vector<4x36xf32> to vector<4x1xf32>
    %575 = vector.extract_strided_slice %535 {offsets = [0, 0], sizes = [1, 256], strides = [1, 1]} : vector<4x256xf32> to vector<1x256xf32>
    %576 = vector.broadcast %574 : vector<4x1xf32> to vector<4x256xf32>
    %577 = vector.broadcast %575 : vector<1x256xf32> to vector<4x256xf32>
    %578 = arith.mulf %576, %577 : vector<4x256xf32>
    %579 = arith.addf %573, %578 : vector<4x256xf32>
    %580 = vector.extract_strided_slice %518 {offsets = [0, 4], sizes = [4, 1], strides = [1, 1]} : vector<4x36xf32> to vector<4x1xf32>
    %581 = vector.extract_strided_slice %538 {offsets = [0, 0], sizes = [1, 256], strides = [1, 1]} : vector<4x256xf32> to vector<1x256xf32>
    %582 = vector.broadcast %580 : vector<4x1xf32> to vector<4x256xf32>
    %583 = vector.broadcast %581 : vector<1x256xf32> to vector<4x256xf32>
    %584 = arith.mulf %582, %583 : vector<4x256xf32>
    %585 = arith.addf %579, %584 : vector<4x256xf32>
    %586 = vector.extract_strided_slice %518 {offsets = [0, 5], sizes = [4, 1], strides = [1, 1]} : vector<4x36xf32> to vector<4x1xf32>
    %587 = vector.extract_strided_slice %542 {offsets = [0, 0], sizes = [1, 256], strides = [1, 1]} : vector<4x256xf32> to vector<1x256xf32>
    %588 = vector.broadcast %586 : vector<4x1xf32> to vector<4x256xf32>
    %589 = vector.broadcast %587 : vector<1x256xf32> to vector<4x256xf32>
    %590 = arith.mulf %588, %589 : vector<4x256xf32>
    %591 = arith.addf %585, %590 : vector<4x256xf32>
    %592 = vector.extract_strided_slice %518 {offsets = [0, 6], sizes = [4, 1], strides = [1, 1]} : vector<4x36xf32> to vector<4x1xf32>
    %593 = vector.extract_strided_slice %546 {offsets = [0, 0], sizes = [1, 256], strides = [1, 1]} : vector<4x256xf32> to vector<1x256xf32>
    %594 = vector.broadcast %592 : vector<4x1xf32> to vector<4x256xf32>
    %595 = vector.broadcast %593 : vector<1x256xf32> to vector<4x256xf32>
    %596 = arith.mulf %594, %595 : vector<4x256xf32>
    %597 = arith.addf %591, %596 : vector<4x256xf32>
    %598 = vector.extract_strided_slice %518 {offsets = [0, 7], sizes = [4, 1], strides = [1, 1]} : vector<4x36xf32> to vector<4x1xf32>
    %599 = vector.extract_strided_slice %550 {offsets = [0, 0], sizes = [1, 256], strides = [1, 1]} : vector<4x256xf32> to vector<1x256xf32>
    %600 = vector.broadcast %598 : vector<4x1xf32> to vector<4x256xf32>
    %601 = vector.broadcast %599 : vector<1x256xf32> to vector<4x256xf32>
    %602 = arith.mulf %600, %601 : vector<4x256xf32>
    %603 = arith.addf %597, %602 : vector<4x256xf32>
    %604 = vector.extract_strided_slice %518 {offsets = [0, 8], sizes = [4, 1], strides = [1, 1]} : vector<4x36xf32> to vector<4x1xf32>
    %605 = vector.extract_strided_slice %554 {offsets = [0, 0], sizes = [1, 256], strides = [1, 1]} : vector<4x256xf32> to vector<1x256xf32>
    %606 = vector.broadcast %604 : vector<4x1xf32> to vector<4x256xf32>
    %607 = vector.broadcast %605 : vector<1x256xf32> to vector<4x256xf32>
    %608 = arith.mulf %606, %607 : vector<4x256xf32>
    %609 = arith.addf %603, %608 : vector<4x256xf32>
    %610 = vector.extract_strided_slice %518 {offsets = [0, 9], sizes = [4, 1], strides = [1, 1]} : vector<4x36xf32> to vector<4x1xf32>
    %611 = vector.extract_strided_slice %523 {offsets = [1, 0], sizes = [1, 256], strides = [1, 1]} : vector<4x256xf32> to vector<1x256xf32>
    %612 = vector.broadcast %610 : vector<4x1xf32> to vector<4x256xf32>
    %613 = vector.broadcast %611 : vector<1x256xf32> to vector<4x256xf32>
    %614 = arith.mulf %612, %613 : vector<4x256xf32>
    %615 = arith.addf %609, %614 : vector<4x256xf32>
    %616 = vector.extract_strided_slice %518 {offsets = [0, 10], sizes = [4, 1], strides = [1, 1]} : vector<4x36xf32> to vector<4x1xf32>
    %617 = vector.extract_strided_slice %527 {offsets = [1, 0], sizes = [1, 256], strides = [1, 1]} : vector<4x256xf32> to vector<1x256xf32>
    %618 = vector.broadcast %616 : vector<4x1xf32> to vector<4x256xf32>
    %619 = vector.broadcast %617 : vector<1x256xf32> to vector<4x256xf32>
    %620 = arith.mulf %618, %619 : vector<4x256xf32>
    %621 = arith.addf %615, %620 : vector<4x256xf32>
    %622 = vector.extract_strided_slice %518 {offsets = [0, 11], sizes = [4, 1], strides = [1, 1]} : vector<4x36xf32> to vector<4x1xf32>
    %623 = vector.extract_strided_slice %531 {offsets = [1, 0], sizes = [1, 256], strides = [1, 1]} : vector<4x256xf32> to vector<1x256xf32>
    %624 = vector.broadcast %622 : vector<4x1xf32> to vector<4x256xf32>
    %625 = vector.broadcast %623 : vector<1x256xf32> to vector<4x256xf32>
    %626 = arith.mulf %624, %625 : vector<4x256xf32>
    %627 = arith.addf %621, %626 : vector<4x256xf32>
    %628 = vector.extract_strided_slice %518 {offsets = [0, 12], sizes = [4, 1], strides = [1, 1]} : vector<4x36xf32> to vector<4x1xf32>
    %629 = vector.extract_strided_slice %535 {offsets = [1, 0], sizes = [1, 256], strides = [1, 1]} : vector<4x256xf32> to vector<1x256xf32>
    %630 = vector.broadcast %628 : vector<4x1xf32> to vector<4x256xf32>
    %631 = vector.broadcast %629 : vector<1x256xf32> to vector<4x256xf32>
    %632 = arith.mulf %630, %631 : vector<4x256xf32>
    %633 = arith.addf %627, %632 : vector<4x256xf32>
    %634 = vector.extract_strided_slice %518 {offsets = [0, 13], sizes = [4, 1], strides = [1, 1]} : vector<4x36xf32> to vector<4x1xf32>
    %635 = vector.extract_strided_slice %538 {offsets = [1, 0], sizes = [1, 256], strides = [1, 1]} : vector<4x256xf32> to vector<1x256xf32>
    %636 = vector.broadcast %634 : vector<4x1xf32> to vector<4x256xf32>
    %637 = vector.broadcast %635 : vector<1x256xf32> to vector<4x256xf32>
    %638 = arith.mulf %636, %637 : vector<4x256xf32>
    %639 = arith.addf %633, %638 : vector<4x256xf32>
    %640 = vector.extract_strided_slice %518 {offsets = [0, 14], sizes = [4, 1], strides = [1, 1]} : vector<4x36xf32> to vector<4x1xf32>
    %641 = vector.extract_strided_slice %542 {offsets = [1, 0], sizes = [1, 256], strides = [1, 1]} : vector<4x256xf32> to vector<1x256xf32>
    %642 = vector.broadcast %640 : vector<4x1xf32> to vector<4x256xf32>
    %643 = vector.broadcast %641 : vector<1x256xf32> to vector<4x256xf32>
    %644 = arith.mulf %642, %643 : vector<4x256xf32>
    %645 = arith.addf %639, %644 : vector<4x256xf32>
    %646 = vector.extract_strided_slice %518 {offsets = [0, 15], sizes = [4, 1], strides = [1, 1]} : vector<4x36xf32> to vector<4x1xf32>
    %647 = vector.extract_strided_slice %546 {offsets = [1, 0], sizes = [1, 256], strides = [1, 1]} : vector<4x256xf32> to vector<1x256xf32>
    %648 = vector.broadcast %646 : vector<4x1xf32> to vector<4x256xf32>
    %649 = vector.broadcast %647 : vector<1x256xf32> to vector<4x256xf32>
    %650 = arith.mulf %648, %649 : vector<4x256xf32>
    %651 = arith.addf %645, %650 : vector<4x256xf32>
    %652 = vector.extract_strided_slice %518 {offsets = [0, 16], sizes = [4, 1], strides = [1, 1]} : vector<4x36xf32> to vector<4x1xf32>
    %653 = vector.extract_strided_slice %550 {offsets = [1, 0], sizes = [1, 256], strides = [1, 1]} : vector<4x256xf32> to vector<1x256xf32>
    %654 = vector.broadcast %652 : vector<4x1xf32> to vector<4x256xf32>
    %655 = vector.broadcast %653 : vector<1x256xf32> to vector<4x256xf32>
    %656 = arith.mulf %654, %655 : vector<4x256xf32>
    %657 = arith.addf %651, %656 : vector<4x256xf32>
    %658 = vector.extract_strided_slice %518 {offsets = [0, 17], sizes = [4, 1], strides = [1, 1]} : vector<4x36xf32> to vector<4x1xf32>
    %659 = vector.extract_strided_slice %554 {offsets = [1, 0], sizes = [1, 256], strides = [1, 1]} : vector<4x256xf32> to vector<1x256xf32>
    %660 = vector.broadcast %658 : vector<4x1xf32> to vector<4x256xf32>
    %661 = vector.broadcast %659 : vector<1x256xf32> to vector<4x256xf32>
    %662 = arith.mulf %660, %661 : vector<4x256xf32>
    %663 = arith.addf %657, %662 : vector<4x256xf32>
    %664 = vector.extract_strided_slice %518 {offsets = [0, 18], sizes = [4, 1], strides = [1, 1]} : vector<4x36xf32> to vector<4x1xf32>
    %665 = vector.extract_strided_slice %523 {offsets = [2, 0], sizes = [1, 256], strides = [1, 1]} : vector<4x256xf32> to vector<1x256xf32>
    %666 = vector.broadcast %664 : vector<4x1xf32> to vector<4x256xf32>
    %667 = vector.broadcast %665 : vector<1x256xf32> to vector<4x256xf32>
    %668 = arith.mulf %666, %667 : vector<4x256xf32>
    %669 = arith.addf %663, %668 : vector<4x256xf32>
    %670 = vector.extract_strided_slice %518 {offsets = [0, 19], sizes = [4, 1], strides = [1, 1]} : vector<4x36xf32> to vector<4x1xf32>
    %671 = vector.extract_strided_slice %527 {offsets = [2, 0], sizes = [1, 256], strides = [1, 1]} : vector<4x256xf32> to vector<1x256xf32>
    %672 = vector.broadcast %670 : vector<4x1xf32> to vector<4x256xf32>
    %673 = vector.broadcast %671 : vector<1x256xf32> to vector<4x256xf32>
    %674 = arith.mulf %672, %673 : vector<4x256xf32>
    %675 = arith.addf %669, %674 : vector<4x256xf32>
    %676 = vector.extract_strided_slice %518 {offsets = [0, 20], sizes = [4, 1], strides = [1, 1]} : vector<4x36xf32> to vector<4x1xf32>
    %677 = vector.extract_strided_slice %531 {offsets = [2, 0], sizes = [1, 256], strides = [1, 1]} : vector<4x256xf32> to vector<1x256xf32>
    %678 = vector.broadcast %676 : vector<4x1xf32> to vector<4x256xf32>
    %679 = vector.broadcast %677 : vector<1x256xf32> to vector<4x256xf32>
    %680 = arith.mulf %678, %679 : vector<4x256xf32>
    %681 = arith.addf %675, %680 : vector<4x256xf32>
    %682 = vector.extract_strided_slice %518 {offsets = [0, 21], sizes = [4, 1], strides = [1, 1]} : vector<4x36xf32> to vector<4x1xf32>
    %683 = vector.extract_strided_slice %535 {offsets = [2, 0], sizes = [1, 256], strides = [1, 1]} : vector<4x256xf32> to vector<1x256xf32>
    %684 = vector.broadcast %682 : vector<4x1xf32> to vector<4x256xf32>
    %685 = vector.broadcast %683 : vector<1x256xf32> to vector<4x256xf32>
    %686 = arith.mulf %684, %685 : vector<4x256xf32>
    %687 = arith.addf %681, %686 : vector<4x256xf32>
    %688 = vector.extract_strided_slice %518 {offsets = [0, 22], sizes = [4, 1], strides = [1, 1]} : vector<4x36xf32> to vector<4x1xf32>
    %689 = vector.extract_strided_slice %538 {offsets = [2, 0], sizes = [1, 256], strides = [1, 1]} : vector<4x256xf32> to vector<1x256xf32>
    %690 = vector.broadcast %688 : vector<4x1xf32> to vector<4x256xf32>
    %691 = vector.broadcast %689 : vector<1x256xf32> to vector<4x256xf32>
    %692 = arith.mulf %690, %691 : vector<4x256xf32>
    %693 = arith.addf %687, %692 : vector<4x256xf32>
    %694 = vector.extract_strided_slice %518 {offsets = [0, 23], sizes = [4, 1], strides = [1, 1]} : vector<4x36xf32> to vector<4x1xf32>
    %695 = vector.extract_strided_slice %542 {offsets = [2, 0], sizes = [1, 256], strides = [1, 1]} : vector<4x256xf32> to vector<1x256xf32>
    %696 = vector.broadcast %694 : vector<4x1xf32> to vector<4x256xf32>
    %697 = vector.broadcast %695 : vector<1x256xf32> to vector<4x256xf32>
    %698 = arith.mulf %696, %697 : vector<4x256xf32>
    %699 = arith.addf %693, %698 : vector<4x256xf32>
    %700 = vector.extract_strided_slice %518 {offsets = [0, 24], sizes = [4, 1], strides = [1, 1]} : vector<4x36xf32> to vector<4x1xf32>
    %701 = vector.extract_strided_slice %546 {offsets = [2, 0], sizes = [1, 256], strides = [1, 1]} : vector<4x256xf32> to vector<1x256xf32>
    %702 = vector.broadcast %700 : vector<4x1xf32> to vector<4x256xf32>
    %703 = vector.broadcast %701 : vector<1x256xf32> to vector<4x256xf32>
    %704 = arith.mulf %702, %703 : vector<4x256xf32>
    %705 = arith.addf %699, %704 : vector<4x256xf32>
    %706 = vector.extract_strided_slice %518 {offsets = [0, 25], sizes = [4, 1], strides = [1, 1]} : vector<4x36xf32> to vector<4x1xf32>
    %707 = vector.extract_strided_slice %550 {offsets = [2, 0], sizes = [1, 256], strides = [1, 1]} : vector<4x256xf32> to vector<1x256xf32>
    %708 = vector.broadcast %706 : vector<4x1xf32> to vector<4x256xf32>
    %709 = vector.broadcast %707 : vector<1x256xf32> to vector<4x256xf32>
    %710 = arith.mulf %708, %709 : vector<4x256xf32>
    %711 = arith.addf %705, %710 : vector<4x256xf32>
    %712 = vector.extract_strided_slice %518 {offsets = [0, 26], sizes = [4, 1], strides = [1, 1]} : vector<4x36xf32> to vector<4x1xf32>
    %713 = vector.extract_strided_slice %554 {offsets = [2, 0], sizes = [1, 256], strides = [1, 1]} : vector<4x256xf32> to vector<1x256xf32>
    %714 = vector.broadcast %712 : vector<4x1xf32> to vector<4x256xf32>
    %715 = vector.broadcast %713 : vector<1x256xf32> to vector<4x256xf32>
    %716 = arith.mulf %714, %715 : vector<4x256xf32>
    %717 = arith.addf %711, %716 : vector<4x256xf32>
    %718 = vector.extract_strided_slice %518 {offsets = [0, 27], sizes = [4, 1], strides = [1, 1]} : vector<4x36xf32> to vector<4x1xf32>
    %719 = vector.extract_strided_slice %523 {offsets = [3, 0], sizes = [1, 256], strides = [1, 1]} : vector<4x256xf32> to vector<1x256xf32>
    %720 = vector.broadcast %718 : vector<4x1xf32> to vector<4x256xf32>
    %721 = vector.broadcast %719 : vector<1x256xf32> to vector<4x256xf32>
    %722 = arith.mulf %720, %721 : vector<4x256xf32>
    %723 = arith.addf %717, %722 : vector<4x256xf32>
    %724 = vector.extract_strided_slice %518 {offsets = [0, 28], sizes = [4, 1], strides = [1, 1]} : vector<4x36xf32> to vector<4x1xf32>
    %725 = vector.extract_strided_slice %527 {offsets = [3, 0], sizes = [1, 256], strides = [1, 1]} : vector<4x256xf32> to vector<1x256xf32>
    %726 = vector.broadcast %724 : vector<4x1xf32> to vector<4x256xf32>
    %727 = vector.broadcast %725 : vector<1x256xf32> to vector<4x256xf32>
    %728 = arith.mulf %726, %727 : vector<4x256xf32>
    %729 = arith.addf %723, %728 : vector<4x256xf32>
    %730 = vector.extract_strided_slice %518 {offsets = [0, 29], sizes = [4, 1], strides = [1, 1]} : vector<4x36xf32> to vector<4x1xf32>
    %731 = vector.extract_strided_slice %531 {offsets = [3, 0], sizes = [1, 256], strides = [1, 1]} : vector<4x256xf32> to vector<1x256xf32>
    %732 = vector.broadcast %730 : vector<4x1xf32> to vector<4x256xf32>
    %733 = vector.broadcast %731 : vector<1x256xf32> to vector<4x256xf32>
    %734 = arith.mulf %732, %733 : vector<4x256xf32>
    %735 = arith.addf %729, %734 : vector<4x256xf32>
    %736 = vector.extract_strided_slice %518 {offsets = [0, 30], sizes = [4, 1], strides = [1, 1]} : vector<4x36xf32> to vector<4x1xf32>
    %737 = vector.extract_strided_slice %535 {offsets = [3, 0], sizes = [1, 256], strides = [1, 1]} : vector<4x256xf32> to vector<1x256xf32>
    %738 = vector.broadcast %736 : vector<4x1xf32> to vector<4x256xf32>
    %739 = vector.broadcast %737 : vector<1x256xf32> to vector<4x256xf32>
    %740 = arith.mulf %738, %739 : vector<4x256xf32>
    %741 = arith.addf %735, %740 : vector<4x256xf32>
    %742 = vector.extract_strided_slice %518 {offsets = [0, 31], sizes = [4, 1], strides = [1, 1]} : vector<4x36xf32> to vector<4x1xf32>
    %743 = vector.extract_strided_slice %538 {offsets = [3, 0], sizes = [1, 256], strides = [1, 1]} : vector<4x256xf32> to vector<1x256xf32>
    %744 = vector.broadcast %742 : vector<4x1xf32> to vector<4x256xf32>
    %745 = vector.broadcast %743 : vector<1x256xf32> to vector<4x256xf32>
    %746 = arith.mulf %744, %745 : vector<4x256xf32>
    %747 = arith.addf %741, %746 : vector<4x256xf32>
    %748 = vector.extract_strided_slice %518 {offsets = [0, 32], sizes = [4, 1], strides = [1, 1]} : vector<4x36xf32> to vector<4x1xf32>
    %749 = vector.extract_strided_slice %542 {offsets = [3, 0], sizes = [1, 256], strides = [1, 1]} : vector<4x256xf32> to vector<1x256xf32>
    %750 = vector.broadcast %748 : vector<4x1xf32> to vector<4x256xf32>
    %751 = vector.broadcast %749 : vector<1x256xf32> to vector<4x256xf32>
    %752 = arith.mulf %750, %751 : vector<4x256xf32>
    %753 = arith.addf %747, %752 : vector<4x256xf32>
    %754 = vector.extract_strided_slice %518 {offsets = [0, 33], sizes = [4, 1], strides = [1, 1]} : vector<4x36xf32> to vector<4x1xf32>
    %755 = vector.extract_strided_slice %546 {offsets = [3, 0], sizes = [1, 256], strides = [1, 1]} : vector<4x256xf32> to vector<1x256xf32>
    %756 = vector.broadcast %754 : vector<4x1xf32> to vector<4x256xf32>
    %757 = vector.broadcast %755 : vector<1x256xf32> to vector<4x256xf32>
    %758 = arith.mulf %756, %757 : vector<4x256xf32>
    %759 = arith.addf %753, %758 : vector<4x256xf32>
    %760 = vector.extract_strided_slice %518 {offsets = [0, 34], sizes = [4, 1], strides = [1, 1]} : vector<4x36xf32> to vector<4x1xf32>
    %761 = vector.extract_strided_slice %550 {offsets = [3, 0], sizes = [1, 256], strides = [1, 1]} : vector<4x256xf32> to vector<1x256xf32>
    %762 = vector.broadcast %760 : vector<4x1xf32> to vector<4x256xf32>
    %763 = vector.broadcast %761 : vector<1x256xf32> to vector<4x256xf32>
    %764 = arith.mulf %762, %763 : vector<4x256xf32>
    %765 = arith.addf %759, %764 : vector<4x256xf32>
    %766 = vector.extract_strided_slice %518 {offsets = [0, 35], sizes = [4, 1], strides = [1, 1]} : vector<4x36xf32> to vector<4x1xf32>
    %767 = vector.extract_strided_slice %554 {offsets = [3, 0], sizes = [1, 256], strides = [1, 1]} : vector<4x256xf32> to vector<1x256xf32>
    %768 = vector.broadcast %766 : vector<4x1xf32> to vector<4x256xf32>
    %769 = vector.broadcast %767 : vector<1x256xf32> to vector<4x256xf32>
    %770 = arith.mulf %768, %769 : vector<4x256xf32>
    %771 = arith.addf %765, %770 : vector<4x256xf32>
    %772 = vector.broadcast %519 : vector<4x1xf32> to vector<4x256xf32>
    %773 = arith.addf %771, %772 : vector<4x256xf32>
    %cst_35 = arith.constant 0.000000e+00 : f32
    %774 = vector.broadcast %cst_35 : f32 to vector<4x256xf32>
    %775 = arith.maximumf %773, %774 : vector<4x256xf32>
    %c0_36 = arith.constant 0 : index
    %c0_37 = arith.constant 0 : index
    %776 = vector.load %arg9[%c0_36, %c0_37] : memref<4x36xf32, #tpu.memory_space<vmem>>, vector<4x36xf32>
    %c0_38 = arith.constant 0 : index
    %c0_39 = arith.constant 0 : index
    %777 = vector.load %arg10[%c0_38, %c0_39] : memref<4x1xf32, #tpu.memory_space<vmem>>, vector<4x1xf32>
    %c17_i32_40 = arith.constant 17 : i32
    %778 = tpu.dynamic_rotate %775 by %c17_i32_40 dim 1 : vector<4x256xf32>, i32 -> vector<4x256xf32>
    %779 = vector.extract_strided_slice %2 {offsets = [0, 0], sizes = [1, 256], strides = [1, 1]} : vector<9x256xf32> to vector<1x256xf32>
    %780 = vector.broadcast %779 : vector<1x256xf32> to vector<4x256xf32>
    %781 = arith.mulf %778, %780 : vector<4x256xf32>
    %c16_i32_41 = arith.constant 16 : i32
    %782 = tpu.dynamic_rotate %775 by %c16_i32_41 dim 1 : vector<4x256xf32>, i32 -> vector<4x256xf32>
    %783 = vector.extract_strided_slice %2 {offsets = [1, 0], sizes = [1, 256], strides = [1, 1]} : vector<9x256xf32> to vector<1x256xf32>
    %784 = vector.broadcast %783 : vector<1x256xf32> to vector<4x256xf32>
    %785 = arith.mulf %782, %784 : vector<4x256xf32>
    %c15_i32_42 = arith.constant 15 : i32
    %786 = tpu.dynamic_rotate %775 by %c15_i32_42 dim 1 : vector<4x256xf32>, i32 -> vector<4x256xf32>
    %787 = vector.extract_strided_slice %2 {offsets = [2, 0], sizes = [1, 256], strides = [1, 1]} : vector<9x256xf32> to vector<1x256xf32>
    %788 = vector.broadcast %787 : vector<1x256xf32> to vector<4x256xf32>
    %789 = arith.mulf %786, %788 : vector<4x256xf32>
    %c1_i32_43 = arith.constant 1 : i32
    %790 = tpu.dynamic_rotate %775 by %c1_i32_43 dim 1 : vector<4x256xf32>, i32 -> vector<4x256xf32>
    %791 = vector.extract_strided_slice %2 {offsets = [3, 0], sizes = [1, 256], strides = [1, 1]} : vector<9x256xf32> to vector<1x256xf32>
    %792 = vector.broadcast %791 : vector<1x256xf32> to vector<4x256xf32>
    %793 = arith.mulf %790, %792 : vector<4x256xf32>
    %794 = vector.extract_strided_slice %2 {offsets = [4, 0], sizes = [1, 256], strides = [1, 1]} : vector<9x256xf32> to vector<1x256xf32>
    %795 = vector.broadcast %794 : vector<1x256xf32> to vector<4x256xf32>
    %796 = arith.mulf %775, %795 : vector<4x256xf32>
    %c255_i32_44 = arith.constant 255 : i32
    %797 = tpu.dynamic_rotate %775 by %c255_i32_44 dim 1 : vector<4x256xf32>, i32 -> vector<4x256xf32>
    %798 = vector.extract_strided_slice %2 {offsets = [5, 0], sizes = [1, 256], strides = [1, 1]} : vector<9x256xf32> to vector<1x256xf32>
    %799 = vector.broadcast %798 : vector<1x256xf32> to vector<4x256xf32>
    %800 = arith.mulf %797, %799 : vector<4x256xf32>
    %c241_i32_45 = arith.constant 241 : i32
    %801 = tpu.dynamic_rotate %775 by %c241_i32_45 dim 1 : vector<4x256xf32>, i32 -> vector<4x256xf32>
    %802 = vector.extract_strided_slice %2 {offsets = [6, 0], sizes = [1, 256], strides = [1, 1]} : vector<9x256xf32> to vector<1x256xf32>
    %803 = vector.broadcast %802 : vector<1x256xf32> to vector<4x256xf32>
    %804 = arith.mulf %801, %803 : vector<4x256xf32>
    %c240_i32_46 = arith.constant 240 : i32
    %805 = tpu.dynamic_rotate %775 by %c240_i32_46 dim 1 : vector<4x256xf32>, i32 -> vector<4x256xf32>
    %806 = vector.extract_strided_slice %2 {offsets = [7, 0], sizes = [1, 256], strides = [1, 1]} : vector<9x256xf32> to vector<1x256xf32>
    %807 = vector.broadcast %806 : vector<1x256xf32> to vector<4x256xf32>
    %808 = arith.mulf %805, %807 : vector<4x256xf32>
    %c239_i32_47 = arith.constant 239 : i32
    %809 = tpu.dynamic_rotate %775 by %c239_i32_47 dim 1 : vector<4x256xf32>, i32 -> vector<4x256xf32>
    %810 = vector.extract_strided_slice %2 {offsets = [8, 0], sizes = [1, 256], strides = [1, 1]} : vector<9x256xf32> to vector<1x256xf32>
    %811 = vector.broadcast %810 : vector<1x256xf32> to vector<4x256xf32>
    %812 = arith.mulf %809, %811 : vector<4x256xf32>
    %cst_48 = arith.constant 0.000000e+00 : f32
    %813 = vector.broadcast %cst_48 : f32 to vector<4x256xf32>
    %814 = vector.extract_strided_slice %776 {offsets = [0, 0], sizes = [4, 1], strides = [1, 1]} : vector<4x36xf32> to vector<4x1xf32>
    %815 = vector.extract_strided_slice %781 {offsets = [0, 0], sizes = [1, 256], strides = [1, 1]} : vector<4x256xf32> to vector<1x256xf32>
    %816 = vector.broadcast %814 : vector<4x1xf32> to vector<4x256xf32>
    %817 = vector.broadcast %815 : vector<1x256xf32> to vector<4x256xf32>
    %818 = arith.mulf %816, %817 : vector<4x256xf32>
    %819 = arith.addf %813, %818 : vector<4x256xf32>
    %820 = vector.extract_strided_slice %776 {offsets = [0, 1], sizes = [4, 1], strides = [1, 1]} : vector<4x36xf32> to vector<4x1xf32>
    %821 = vector.extract_strided_slice %785 {offsets = [0, 0], sizes = [1, 256], strides = [1, 1]} : vector<4x256xf32> to vector<1x256xf32>
    %822 = vector.broadcast %820 : vector<4x1xf32> to vector<4x256xf32>
    %823 = vector.broadcast %821 : vector<1x256xf32> to vector<4x256xf32>
    %824 = arith.mulf %822, %823 : vector<4x256xf32>
    %825 = arith.addf %819, %824 : vector<4x256xf32>
    %826 = vector.extract_strided_slice %776 {offsets = [0, 2], sizes = [4, 1], strides = [1, 1]} : vector<4x36xf32> to vector<4x1xf32>
    %827 = vector.extract_strided_slice %789 {offsets = [0, 0], sizes = [1, 256], strides = [1, 1]} : vector<4x256xf32> to vector<1x256xf32>
    %828 = vector.broadcast %826 : vector<4x1xf32> to vector<4x256xf32>
    %829 = vector.broadcast %827 : vector<1x256xf32> to vector<4x256xf32>
    %830 = arith.mulf %828, %829 : vector<4x256xf32>
    %831 = arith.addf %825, %830 : vector<4x256xf32>
    %832 = vector.extract_strided_slice %776 {offsets = [0, 3], sizes = [4, 1], strides = [1, 1]} : vector<4x36xf32> to vector<4x1xf32>
    %833 = vector.extract_strided_slice %793 {offsets = [0, 0], sizes = [1, 256], strides = [1, 1]} : vector<4x256xf32> to vector<1x256xf32>
    %834 = vector.broadcast %832 : vector<4x1xf32> to vector<4x256xf32>
    %835 = vector.broadcast %833 : vector<1x256xf32> to vector<4x256xf32>
    %836 = arith.mulf %834, %835 : vector<4x256xf32>
    %837 = arith.addf %831, %836 : vector<4x256xf32>
    %838 = vector.extract_strided_slice %776 {offsets = [0, 4], sizes = [4, 1], strides = [1, 1]} : vector<4x36xf32> to vector<4x1xf32>
    %839 = vector.extract_strided_slice %796 {offsets = [0, 0], sizes = [1, 256], strides = [1, 1]} : vector<4x256xf32> to vector<1x256xf32>
    %840 = vector.broadcast %838 : vector<4x1xf32> to vector<4x256xf32>
    %841 = vector.broadcast %839 : vector<1x256xf32> to vector<4x256xf32>
    %842 = arith.mulf %840, %841 : vector<4x256xf32>
    %843 = arith.addf %837, %842 : vector<4x256xf32>
    %844 = vector.extract_strided_slice %776 {offsets = [0, 5], sizes = [4, 1], strides = [1, 1]} : vector<4x36xf32> to vector<4x1xf32>
    %845 = vector.extract_strided_slice %800 {offsets = [0, 0], sizes = [1, 256], strides = [1, 1]} : vector<4x256xf32> to vector<1x256xf32>
    %846 = vector.broadcast %844 : vector<4x1xf32> to vector<4x256xf32>
    %847 = vector.broadcast %845 : vector<1x256xf32> to vector<4x256xf32>
    %848 = arith.mulf %846, %847 : vector<4x256xf32>
    %849 = arith.addf %843, %848 : vector<4x256xf32>
    %850 = vector.extract_strided_slice %776 {offsets = [0, 6], sizes = [4, 1], strides = [1, 1]} : vector<4x36xf32> to vector<4x1xf32>
    %851 = vector.extract_strided_slice %804 {offsets = [0, 0], sizes = [1, 256], strides = [1, 1]} : vector<4x256xf32> to vector<1x256xf32>
    %852 = vector.broadcast %850 : vector<4x1xf32> to vector<4x256xf32>
    %853 = vector.broadcast %851 : vector<1x256xf32> to vector<4x256xf32>
    %854 = arith.mulf %852, %853 : vector<4x256xf32>
    %855 = arith.addf %849, %854 : vector<4x256xf32>
    %856 = vector.extract_strided_slice %776 {offsets = [0, 7], sizes = [4, 1], strides = [1, 1]} : vector<4x36xf32> to vector<4x1xf32>
    %857 = vector.extract_strided_slice %808 {offsets = [0, 0], sizes = [1, 256], strides = [1, 1]} : vector<4x256xf32> to vector<1x256xf32>
    %858 = vector.broadcast %856 : vector<4x1xf32> to vector<4x256xf32>
    %859 = vector.broadcast %857 : vector<1x256xf32> to vector<4x256xf32>
    %860 = arith.mulf %858, %859 : vector<4x256xf32>
    %861 = arith.addf %855, %860 : vector<4x256xf32>
    %862 = vector.extract_strided_slice %776 {offsets = [0, 8], sizes = [4, 1], strides = [1, 1]} : vector<4x36xf32> to vector<4x1xf32>
    %863 = vector.extract_strided_slice %812 {offsets = [0, 0], sizes = [1, 256], strides = [1, 1]} : vector<4x256xf32> to vector<1x256xf32>
    %864 = vector.broadcast %862 : vector<4x1xf32> to vector<4x256xf32>
    %865 = vector.broadcast %863 : vector<1x256xf32> to vector<4x256xf32>
    %866 = arith.mulf %864, %865 : vector<4x256xf32>
    %867 = arith.addf %861, %866 : vector<4x256xf32>
    %868 = vector.extract_strided_slice %776 {offsets = [0, 9], sizes = [4, 1], strides = [1, 1]} : vector<4x36xf32> to vector<4x1xf32>
    %869 = vector.extract_strided_slice %781 {offsets = [1, 0], sizes = [1, 256], strides = [1, 1]} : vector<4x256xf32> to vector<1x256xf32>
    %870 = vector.broadcast %868 : vector<4x1xf32> to vector<4x256xf32>
    %871 = vector.broadcast %869 : vector<1x256xf32> to vector<4x256xf32>
    %872 = arith.mulf %870, %871 : vector<4x256xf32>
    %873 = arith.addf %867, %872 : vector<4x256xf32>
    %874 = vector.extract_strided_slice %776 {offsets = [0, 10], sizes = [4, 1], strides = [1, 1]} : vector<4x36xf32> to vector<4x1xf32>
    %875 = vector.extract_strided_slice %785 {offsets = [1, 0], sizes = [1, 256], strides = [1, 1]} : vector<4x256xf32> to vector<1x256xf32>
    %876 = vector.broadcast %874 : vector<4x1xf32> to vector<4x256xf32>
    %877 = vector.broadcast %875 : vector<1x256xf32> to vector<4x256xf32>
    %878 = arith.mulf %876, %877 : vector<4x256xf32>
    %879 = arith.addf %873, %878 : vector<4x256xf32>
    %880 = vector.extract_strided_slice %776 {offsets = [0, 11], sizes = [4, 1], strides = [1, 1]} : vector<4x36xf32> to vector<4x1xf32>
    %881 = vector.extract_strided_slice %789 {offsets = [1, 0], sizes = [1, 256], strides = [1, 1]} : vector<4x256xf32> to vector<1x256xf32>
    %882 = vector.broadcast %880 : vector<4x1xf32> to vector<4x256xf32>
    %883 = vector.broadcast %881 : vector<1x256xf32> to vector<4x256xf32>
    %884 = arith.mulf %882, %883 : vector<4x256xf32>
    %885 = arith.addf %879, %884 : vector<4x256xf32>
    %886 = vector.extract_strided_slice %776 {offsets = [0, 12], sizes = [4, 1], strides = [1, 1]} : vector<4x36xf32> to vector<4x1xf32>
    %887 = vector.extract_strided_slice %793 {offsets = [1, 0], sizes = [1, 256], strides = [1, 1]} : vector<4x256xf32> to vector<1x256xf32>
    %888 = vector.broadcast %886 : vector<4x1xf32> to vector<4x256xf32>
    %889 = vector.broadcast %887 : vector<1x256xf32> to vector<4x256xf32>
    %890 = arith.mulf %888, %889 : vector<4x256xf32>
    %891 = arith.addf %885, %890 : vector<4x256xf32>
    %892 = vector.extract_strided_slice %776 {offsets = [0, 13], sizes = [4, 1], strides = [1, 1]} : vector<4x36xf32> to vector<4x1xf32>
    %893 = vector.extract_strided_slice %796 {offsets = [1, 0], sizes = [1, 256], strides = [1, 1]} : vector<4x256xf32> to vector<1x256xf32>
    %894 = vector.broadcast %892 : vector<4x1xf32> to vector<4x256xf32>
    %895 = vector.broadcast %893 : vector<1x256xf32> to vector<4x256xf32>
    %896 = arith.mulf %894, %895 : vector<4x256xf32>
    %897 = arith.addf %891, %896 : vector<4x256xf32>
    %898 = vector.extract_strided_slice %776 {offsets = [0, 14], sizes = [4, 1], strides = [1, 1]} : vector<4x36xf32> to vector<4x1xf32>
    %899 = vector.extract_strided_slice %800 {offsets = [1, 0], sizes = [1, 256], strides = [1, 1]} : vector<4x256xf32> to vector<1x256xf32>
    %900 = vector.broadcast %898 : vector<4x1xf32> to vector<4x256xf32>
    %901 = vector.broadcast %899 : vector<1x256xf32> to vector<4x256xf32>
    %902 = arith.mulf %900, %901 : vector<4x256xf32>
    %903 = arith.addf %897, %902 : vector<4x256xf32>
    %904 = vector.extract_strided_slice %776 {offsets = [0, 15], sizes = [4, 1], strides = [1, 1]} : vector<4x36xf32> to vector<4x1xf32>
    %905 = vector.extract_strided_slice %804 {offsets = [1, 0], sizes = [1, 256], strides = [1, 1]} : vector<4x256xf32> to vector<1x256xf32>
    %906 = vector.broadcast %904 : vector<4x1xf32> to vector<4x256xf32>
    %907 = vector.broadcast %905 : vector<1x256xf32> to vector<4x256xf32>
    %908 = arith.mulf %906, %907 : vector<4x256xf32>
    %909 = arith.addf %903, %908 : vector<4x256xf32>
    %910 = vector.extract_strided_slice %776 {offsets = [0, 16], sizes = [4, 1], strides = [1, 1]} : vector<4x36xf32> to vector<4x1xf32>
    %911 = vector.extract_strided_slice %808 {offsets = [1, 0], sizes = [1, 256], strides = [1, 1]} : vector<4x256xf32> to vector<1x256xf32>
    %912 = vector.broadcast %910 : vector<4x1xf32> to vector<4x256xf32>
    %913 = vector.broadcast %911 : vector<1x256xf32> to vector<4x256xf32>
    %914 = arith.mulf %912, %913 : vector<4x256xf32>
    %915 = arith.addf %909, %914 : vector<4x256xf32>
    %916 = vector.extract_strided_slice %776 {offsets = [0, 17], sizes = [4, 1], strides = [1, 1]} : vector<4x36xf32> to vector<4x1xf32>
    %917 = vector.extract_strided_slice %812 {offsets = [1, 0], sizes = [1, 256], strides = [1, 1]} : vector<4x256xf32> to vector<1x256xf32>
    %918 = vector.broadcast %916 : vector<4x1xf32> to vector<4x256xf32>
    %919 = vector.broadcast %917 : vector<1x256xf32> to vector<4x256xf32>
    %920 = arith.mulf %918, %919 : vector<4x256xf32>
    %921 = arith.addf %915, %920 : vector<4x256xf32>
    %922 = vector.extract_strided_slice %776 {offsets = [0, 18], sizes = [4, 1], strides = [1, 1]} : vector<4x36xf32> to vector<4x1xf32>
    %923 = vector.extract_strided_slice %781 {offsets = [2, 0], sizes = [1, 256], strides = [1, 1]} : vector<4x256xf32> to vector<1x256xf32>
    %924 = vector.broadcast %922 : vector<4x1xf32> to vector<4x256xf32>
    %925 = vector.broadcast %923 : vector<1x256xf32> to vector<4x256xf32>
    %926 = arith.mulf %924, %925 : vector<4x256xf32>
    %927 = arith.addf %921, %926 : vector<4x256xf32>
    %928 = vector.extract_strided_slice %776 {offsets = [0, 19], sizes = [4, 1], strides = [1, 1]} : vector<4x36xf32> to vector<4x1xf32>
    %929 = vector.extract_strided_slice %785 {offsets = [2, 0], sizes = [1, 256], strides = [1, 1]} : vector<4x256xf32> to vector<1x256xf32>
    %930 = vector.broadcast %928 : vector<4x1xf32> to vector<4x256xf32>
    %931 = vector.broadcast %929 : vector<1x256xf32> to vector<4x256xf32>
    %932 = arith.mulf %930, %931 : vector<4x256xf32>
    %933 = arith.addf %927, %932 : vector<4x256xf32>
    %934 = vector.extract_strided_slice %776 {offsets = [0, 20], sizes = [4, 1], strides = [1, 1]} : vector<4x36xf32> to vector<4x1xf32>
    %935 = vector.extract_strided_slice %789 {offsets = [2, 0], sizes = [1, 256], strides = [1, 1]} : vector<4x256xf32> to vector<1x256xf32>
    %936 = vector.broadcast %934 : vector<4x1xf32> to vector<4x256xf32>
    %937 = vector.broadcast %935 : vector<1x256xf32> to vector<4x256xf32>
    %938 = arith.mulf %936, %937 : vector<4x256xf32>
    %939 = arith.addf %933, %938 : vector<4x256xf32>
    %940 = vector.extract_strided_slice %776 {offsets = [0, 21], sizes = [4, 1], strides = [1, 1]} : vector<4x36xf32> to vector<4x1xf32>
    %941 = vector.extract_strided_slice %793 {offsets = [2, 0], sizes = [1, 256], strides = [1, 1]} : vector<4x256xf32> to vector<1x256xf32>
    %942 = vector.broadcast %940 : vector<4x1xf32> to vector<4x256xf32>
    %943 = vector.broadcast %941 : vector<1x256xf32> to vector<4x256xf32>
    %944 = arith.mulf %942, %943 : vector<4x256xf32>
    %945 = arith.addf %939, %944 : vector<4x256xf32>
    %946 = vector.extract_strided_slice %776 {offsets = [0, 22], sizes = [4, 1], strides = [1, 1]} : vector<4x36xf32> to vector<4x1xf32>
    %947 = vector.extract_strided_slice %796 {offsets = [2, 0], sizes = [1, 256], strides = [1, 1]} : vector<4x256xf32> to vector<1x256xf32>
    %948 = vector.broadcast %946 : vector<4x1xf32> to vector<4x256xf32>
    %949 = vector.broadcast %947 : vector<1x256xf32> to vector<4x256xf32>
    %950 = arith.mulf %948, %949 : vector<4x256xf32>
    %951 = arith.addf %945, %950 : vector<4x256xf32>
    %952 = vector.extract_strided_slice %776 {offsets = [0, 23], sizes = [4, 1], strides = [1, 1]} : vector<4x36xf32> to vector<4x1xf32>
    %953 = vector.extract_strided_slice %800 {offsets = [2, 0], sizes = [1, 256], strides = [1, 1]} : vector<4x256xf32> to vector<1x256xf32>
    %954 = vector.broadcast %952 : vector<4x1xf32> to vector<4x256xf32>
    %955 = vector.broadcast %953 : vector<1x256xf32> to vector<4x256xf32>
    %956 = arith.mulf %954, %955 : vector<4x256xf32>
    %957 = arith.addf %951, %956 : vector<4x256xf32>
    %958 = vector.extract_strided_slice %776 {offsets = [0, 24], sizes = [4, 1], strides = [1, 1]} : vector<4x36xf32> to vector<4x1xf32>
    %959 = vector.extract_strided_slice %804 {offsets = [2, 0], sizes = [1, 256], strides = [1, 1]} : vector<4x256xf32> to vector<1x256xf32>
    %960 = vector.broadcast %958 : vector<4x1xf32> to vector<4x256xf32>
    %961 = vector.broadcast %959 : vector<1x256xf32> to vector<4x256xf32>
    %962 = arith.mulf %960, %961 : vector<4x256xf32>
    %963 = arith.addf %957, %962 : vector<4x256xf32>
    %964 = vector.extract_strided_slice %776 {offsets = [0, 25], sizes = [4, 1], strides = [1, 1]} : vector<4x36xf32> to vector<4x1xf32>
    %965 = vector.extract_strided_slice %808 {offsets = [2, 0], sizes = [1, 256], strides = [1, 1]} : vector<4x256xf32> to vector<1x256xf32>
    %966 = vector.broadcast %964 : vector<4x1xf32> to vector<4x256xf32>
    %967 = vector.broadcast %965 : vector<1x256xf32> to vector<4x256xf32>
    %968 = arith.mulf %966, %967 : vector<4x256xf32>
    %969 = arith.addf %963, %968 : vector<4x256xf32>
    %970 = vector.extract_strided_slice %776 {offsets = [0, 26], sizes = [4, 1], strides = [1, 1]} : vector<4x36xf32> to vector<4x1xf32>
    %971 = vector.extract_strided_slice %812 {offsets = [2, 0], sizes = [1, 256], strides = [1, 1]} : vector<4x256xf32> to vector<1x256xf32>
    %972 = vector.broadcast %970 : vector<4x1xf32> to vector<4x256xf32>
    %973 = vector.broadcast %971 : vector<1x256xf32> to vector<4x256xf32>
    %974 = arith.mulf %972, %973 : vector<4x256xf32>
    %975 = arith.addf %969, %974 : vector<4x256xf32>
    %976 = vector.extract_strided_slice %776 {offsets = [0, 27], sizes = [4, 1], strides = [1, 1]} : vector<4x36xf32> to vector<4x1xf32>
    %977 = vector.extract_strided_slice %781 {offsets = [3, 0], sizes = [1, 256], strides = [1, 1]} : vector<4x256xf32> to vector<1x256xf32>
    %978 = vector.broadcast %976 : vector<4x1xf32> to vector<4x256xf32>
    %979 = vector.broadcast %977 : vector<1x256xf32> to vector<4x256xf32>
    %980 = arith.mulf %978, %979 : vector<4x256xf32>
    %981 = arith.addf %975, %980 : vector<4x256xf32>
    %982 = vector.extract_strided_slice %776 {offsets = [0, 28], sizes = [4, 1], strides = [1, 1]} : vector<4x36xf32> to vector<4x1xf32>
    %983 = vector.extract_strided_slice %785 {offsets = [3, 0], sizes = [1, 256], strides = [1, 1]} : vector<4x256xf32> to vector<1x256xf32>
    %984 = vector.broadcast %982 : vector<4x1xf32> to vector<4x256xf32>
    %985 = vector.broadcast %983 : vector<1x256xf32> to vector<4x256xf32>
    %986 = arith.mulf %984, %985 : vector<4x256xf32>
    %987 = arith.addf %981, %986 : vector<4x256xf32>
    %988 = vector.extract_strided_slice %776 {offsets = [0, 29], sizes = [4, 1], strides = [1, 1]} : vector<4x36xf32> to vector<4x1xf32>
    %989 = vector.extract_strided_slice %789 {offsets = [3, 0], sizes = [1, 256], strides = [1, 1]} : vector<4x256xf32> to vector<1x256xf32>
    %990 = vector.broadcast %988 : vector<4x1xf32> to vector<4x256xf32>
    %991 = vector.broadcast %989 : vector<1x256xf32> to vector<4x256xf32>
    %992 = arith.mulf %990, %991 : vector<4x256xf32>
    %993 = arith.addf %987, %992 : vector<4x256xf32>
    %994 = vector.extract_strided_slice %776 {offsets = [0, 30], sizes = [4, 1], strides = [1, 1]} : vector<4x36xf32> to vector<4x1xf32>
    %995 = vector.extract_strided_slice %793 {offsets = [3, 0], sizes = [1, 256], strides = [1, 1]} : vector<4x256xf32> to vector<1x256xf32>
    %996 = vector.broadcast %994 : vector<4x1xf32> to vector<4x256xf32>
    %997 = vector.broadcast %995 : vector<1x256xf32> to vector<4x256xf32>
    %998 = arith.mulf %996, %997 : vector<4x256xf32>
    %999 = arith.addf %993, %998 : vector<4x256xf32>
    %1000 = vector.extract_strided_slice %776 {offsets = [0, 31], sizes = [4, 1], strides = [1, 1]} : vector<4x36xf32> to vector<4x1xf32>
    %1001 = vector.extract_strided_slice %796 {offsets = [3, 0], sizes = [1, 256], strides = [1, 1]} : vector<4x256xf32> to vector<1x256xf32>
    %1002 = vector.broadcast %1000 : vector<4x1xf32> to vector<4x256xf32>
    %1003 = vector.broadcast %1001 : vector<1x256xf32> to vector<4x256xf32>
    %1004 = arith.mulf %1002, %1003 : vector<4x256xf32>
    %1005 = arith.addf %999, %1004 : vector<4x256xf32>
    %1006 = vector.extract_strided_slice %776 {offsets = [0, 32], sizes = [4, 1], strides = [1, 1]} : vector<4x36xf32> to vector<4x1xf32>
    %1007 = vector.extract_strided_slice %800 {offsets = [3, 0], sizes = [1, 256], strides = [1, 1]} : vector<4x256xf32> to vector<1x256xf32>
    %1008 = vector.broadcast %1006 : vector<4x1xf32> to vector<4x256xf32>
    %1009 = vector.broadcast %1007 : vector<1x256xf32> to vector<4x256xf32>
    %1010 = arith.mulf %1008, %1009 : vector<4x256xf32>
    %1011 = arith.addf %1005, %1010 : vector<4x256xf32>
    %1012 = vector.extract_strided_slice %776 {offsets = [0, 33], sizes = [4, 1], strides = [1, 1]} : vector<4x36xf32> to vector<4x1xf32>
    %1013 = vector.extract_strided_slice %804 {offsets = [3, 0], sizes = [1, 256], strides = [1, 1]} : vector<4x256xf32> to vector<1x256xf32>
    %1014 = vector.broadcast %1012 : vector<4x1xf32> to vector<4x256xf32>
    %1015 = vector.broadcast %1013 : vector<1x256xf32> to vector<4x256xf32>
    %1016 = arith.mulf %1014, %1015 : vector<4x256xf32>
    %1017 = arith.addf %1011, %1016 : vector<4x256xf32>
    %1018 = vector.extract_strided_slice %776 {offsets = [0, 34], sizes = [4, 1], strides = [1, 1]} : vector<4x36xf32> to vector<4x1xf32>
    %1019 = vector.extract_strided_slice %808 {offsets = [3, 0], sizes = [1, 256], strides = [1, 1]} : vector<4x256xf32> to vector<1x256xf32>
    %1020 = vector.broadcast %1018 : vector<4x1xf32> to vector<4x256xf32>
    %1021 = vector.broadcast %1019 : vector<1x256xf32> to vector<4x256xf32>
    %1022 = arith.mulf %1020, %1021 : vector<4x256xf32>
    %1023 = arith.addf %1017, %1022 : vector<4x256xf32>
    %1024 = vector.extract_strided_slice %776 {offsets = [0, 35], sizes = [4, 1], strides = [1, 1]} : vector<4x36xf32> to vector<4x1xf32>
    %1025 = vector.extract_strided_slice %812 {offsets = [3, 0], sizes = [1, 256], strides = [1, 1]} : vector<4x256xf32> to vector<1x256xf32>
    %1026 = vector.broadcast %1024 : vector<4x1xf32> to vector<4x256xf32>
    %1027 = vector.broadcast %1025 : vector<1x256xf32> to vector<4x256xf32>
    %1028 = arith.mulf %1026, %1027 : vector<4x256xf32>
    %1029 = arith.addf %1023, %1028 : vector<4x256xf32>
    %1030 = vector.broadcast %777 : vector<4x1xf32> to vector<4x256xf32>
    %1031 = arith.addf %1029, %1030 : vector<4x256xf32>
    %cst_49 = arith.constant dense<0.000000e+00> : vector<4xf32>
    %1032 = vector.multi_reduction <add>, %516, %cst_49 [1] : vector<4x256xf32> to vector<4xf32>
    %1033 = vector.shape_cast %1032 : vector<4xf32> to vector<4x1xf32>
    %cst_50 = arith.constant 3.906250e-03 : f32
    %1034 = vector.broadcast %cst_50 : f32 to vector<4x1xf32>
    %1035 = arith.mulf %1033, %1034 : vector<4x1xf32>
    %cst_51 = arith.constant dense<0.000000e+00> : vector<4xf32>
    %1036 = vector.multi_reduction <add>, %1031, %cst_51 [1] : vector<4x256xf32> to vector<4xf32>
    %1037 = vector.shape_cast %1036 : vector<4xf32> to vector<4x1xf32>
    %cst_52 = arith.constant 3.906250e-03 : f32
    %1038 = vector.broadcast %cst_52 : f32 to vector<4x1xf32>
    %1039 = arith.mulf %1037, %1038 : vector<4x1xf32>
    %cst_53 = arith.constant dense<0xFF800000> : vector<4xf32>
    %1040 = vector.multi_reduction <maximumf>, %516, %cst_53 [1] : vector<4x256xf32> to vector<4xf32>
    %1041 = vector.shape_cast %1040 : vector<4xf32> to vector<4x1xf32>
    %cst_54 = arith.constant dense<0xFF800000> : vector<4xf32>
    %1042 = vector.multi_reduction <maximumf>, %1031, %cst_54 [1] : vector<4x256xf32> to vector<4xf32>
    %1043 = vector.shape_cast %1042 : vector<4xf32> to vector<4x1xf32>
    %c0_55 = arith.constant 0 : index
    %c0_56 = arith.constant 0 : index
    %1044 = vector.load %arg11[%c0_55, %c0_56] : memref<4x4xf32, #tpu.memory_space<vmem>>, vector<4x4xf32>
    %c0_57 = arith.constant 0 : index
    %c0_58 = arith.constant 0 : index
    %1045 = vector.load %arg12[%c0_57, %c0_58] : memref<4x4xf32, #tpu.memory_space<vmem>>, vector<4x4xf32>
    %c0_59 = arith.constant 0 : index
    %c0_60 = arith.constant 0 : index
    %1046 = vector.load %arg13[%c0_59, %c0_60] : memref<1x4xf32, #tpu.memory_space<vmem>>, vector<1x4xf32>
    %1047 = vector.broadcast %1035 : vector<4x1xf32> to vector<4x4xf32>
    %1048 = arith.mulf %1044, %1047 : vector<4x4xf32>
    %cst_61 = arith.constant dense<0.000000e+00> : vector<4xf32>
    %1049 = vector.multi_reduction <add>, %1048, %cst_61 [0] : vector<4x4xf32> to vector<4xf32>
    %1050 = vector.shape_cast %1049 : vector<4xf32> to vector<1x4xf32>
    %1051 = vector.broadcast %1039 : vector<4x1xf32> to vector<4x4xf32>
    %1052 = arith.mulf %1045, %1051 : vector<4x4xf32>
    %cst_62 = arith.constant dense<0.000000e+00> : vector<4xf32>
    %1053 = vector.multi_reduction <add>, %1052, %cst_62 [0] : vector<4x4xf32> to vector<4xf32>
    %1054 = vector.shape_cast %1053 : vector<4xf32> to vector<1x4xf32>
    %1055 = arith.addf %1050, %1054 : vector<1x4xf32>
    %cst_63 = arith.constant 0.000000e+00 : f32
    %1056 = vector.broadcast %cst_63 : f32 to vector<1x4xf32>
    %1057 = arith.maximumf %1055, %1056 : vector<1x4xf32>
    %1058 = arith.mulf %1057, %1046 : vector<1x4xf32>
    %cst_64 = arith.constant dense<0.000000e+00> : vector<1xf32>
    %1059 = vector.multi_reduction <add>, %1058, %cst_64 [1] : vector<1x4xf32> to vector<1xf32>
    %1060 = vector.shape_cast %1059 : vector<1xf32> to vector<1x1xf32>
    %1061 = vector.broadcast %1041 : vector<4x1xf32> to vector<4x4xf32>
    %1062 = arith.mulf %1044, %1061 : vector<4x4xf32>
    %cst_65 = arith.constant dense<0.000000e+00> : vector<4xf32>
    %1063 = vector.multi_reduction <add>, %1062, %cst_65 [0] : vector<4x4xf32> to vector<4xf32>
    %1064 = vector.shape_cast %1063 : vector<4xf32> to vector<1x4xf32>
    %1065 = vector.broadcast %1043 : vector<4x1xf32> to vector<4x4xf32>
    %1066 = arith.mulf %1045, %1065 : vector<4x4xf32>
    %cst_66 = arith.constant dense<0.000000e+00> : vector<4xf32>
    %1067 = vector.multi_reduction <add>, %1066, %cst_66 [0] : vector<4x4xf32> to vector<4xf32>
    %1068 = vector.shape_cast %1067 : vector<4xf32> to vector<1x4xf32>
    %1069 = arith.addf %1064, %1068 : vector<1x4xf32>
    %cst_67 = arith.constant 0.000000e+00 : f32
    %1070 = vector.broadcast %cst_67 : f32 to vector<1x4xf32>
    %1071 = arith.maximumf %1069, %1070 : vector<1x4xf32>
    %1072 = arith.mulf %1071, %1046 : vector<1x4xf32>
    %cst_68 = arith.constant dense<0.000000e+00> : vector<1xf32>
    %1073 = vector.multi_reduction <add>, %1072, %cst_68 [1] : vector<1x4xf32> to vector<1xf32>
    %1074 = vector.shape_cast %1073 : vector<1xf32> to vector<1x1xf32>
    %1075 = arith.addf %1060, %1074 : vector<1x1xf32>
    %cst_69 = arith.constant 0.000000e+00 : f32
    %1076 = vector.broadcast %cst_69 : f32 to vector<1x1xf32>
    %1077 = arith.subf %1076, %1075 : vector<1x1xf32>
    %1078 = math.exp %1077 : vector<1x1xf32>
    %cst_70 = arith.constant 1.000000e+00 : f32
    %1079 = vector.broadcast %cst_70 : f32 to vector<1x1xf32>
    %1080 = arith.addf %1079, %1078 : vector<1x1xf32>
    %cst_71 = arith.constant 1.000000e+00 : f32
    %1081 = vector.broadcast %cst_71 : f32 to vector<1x1xf32>
    %1082 = arith.divf %1081, %1080 : vector<1x1xf32>
    %1083 = vector.broadcast %1082 : vector<1x1xf32> to vector<4x256xf32>
    %1084 = arith.mulf %516, %1083 : vector<4x256xf32>
    %1085 = arith.addf %1, %1084 : vector<4x256xf32>
    %cst_72 = arith.constant 1.000000e+00 : f32
    %1086 = vector.broadcast %cst_72 : f32 to vector<1x1xf32>
    %1087 = arith.subf %1086, %1082 : vector<1x1xf32>
    %1088 = vector.broadcast %1087 : vector<1x1xf32> to vector<4x256xf32>
    %1089 = arith.mulf %1031, %1088 : vector<4x256xf32>
    %1090 = arith.addf %1085, %1089 : vector<4x256xf32>
    %c0_73 = arith.constant 0 : index
    %c0_74 = arith.constant 0 : index
    %c0_75 = arith.constant 0 : index
    %1091 = vector.load %arg14[%c0_73, %c0_74, %c0_75] : memref<1x4x256xf32, #tpu.memory_space<vmem>>, vector<1x4x256xf32>
    %1092 = vector.shape_cast %1091 : vector<1x4x256xf32> to vector<4x256xf32>
    %1093 = vector.shape_cast %1090 : vector<4x256xf32> to vector<1x4x256xf32>
    tpu.vector_store %arg14[%c0_73, %c0_74, %c0_75], %1093 {strides = array<i32>} : memref<1x4x256xf32, #tpu.memory_space<vmem>>, vector<1x4x256xf32>,
    return
  }
  func.func @transform_0(%arg0: i32) -> (i32, i32, i32) {
    %c0_i32 = arith.constant 0 : i32
    %c0_i32_0 = arith.constant 0 : i32
    %c0_i32_1 = arith.constant 0 : i32
    return %arg0, %c0_i32, %c0_i32_0 : i32, i32, i32
  }
  func.func @transform_1(%arg0: i32) -> (i32, i32) {
    %c0_i32 = arith.constant 0 : i32
    %c0_i32_0 = arith.constant 0 : i32
    %c0_i32_1 = arith.constant 0 : i32
    return %c0_i32, %c0_i32_0 : i32, i32
  }
  func.func @transform_2(%arg0: i32) -> (i32, i32) {
    %c0_i32 = arith.constant 0 : i32
    %c0_i32_0 = arith.constant 0 : i32
    %c0_i32_1 = arith.constant 0 : i32
    return %c0_i32, %c0_i32_0 : i32, i32
  }
  func.func @transform_3(%arg0: i32) -> (i32, i32) {
    %c0_i32 = arith.constant 0 : i32
    %c0_i32_0 = arith.constant 0 : i32
    %c0_i32_1 = arith.constant 0 : i32
    return %c0_i32, %c0_i32_0 : i32, i32
  }
  func.func @transform_4(%arg0: i32) -> (i32, i32) {
    %c0_i32 = arith.constant 0 : i32
    %c0_i32_0 = arith.constant 0 : i32
    %c0_i32_1 = arith.constant 0 : i32
    return %c0_i32, %c0_i32_0 : i32, i32
  }
  func.func @transform_5(%arg0: i32) -> (i32, i32) {
    %c0_i32 = arith.constant 0 : i32
    %c0_i32_0 = arith.constant 0 : i32
    %c0_i32_1 = arith.constant 0 : i32
    return %c0_i32, %c0_i32_0 : i32, i32
  }
  func.func @transform_6(%arg0: i32) -> (i32, i32) {
    %c0_i32 = arith.constant 0 : i32
    %c0_i32_0 = arith.constant 0 : i32
    %c0_i32_1 = arith.constant 0 : i32
    return %c0_i32, %c0_i32_0 : i32, i32
  }
  func.func @transform_7(%arg0: i32) -> (i32, i32) {
    %c0_i32 = arith.constant 0 : i32
    %c0_i32_0 = arith.constant 0 : i32
    %c0_i32_1 = arith.constant 0 : i32
    return %c0_i32, %c0_i32_0 : i32, i32
  }
  func.func @transform_8(%arg0: i32) -> (i32, i32) {
    %c0_i32 = arith.constant 0 : i32
    %c0_i32_0 = arith.constant 0 : i32
    %c0_i32_1 = arith.constant 0 : i32
    return %c0_i32, %c0_i32_0 : i32, i32
  }
  func.func @transform_9(%arg0: i32) -> (i32, i32) {
    %c0_i32 = arith.constant 0 : i32
    %c0_i32_0 = arith.constant 0 : i32
    %c0_i32_1 = arith.constant 0 : i32
    return %c0_i32, %c0_i32_0 : i32, i32
  }
  func.func @transform_10(%arg0: i32) -> (i32, i32) {
    %c0_i32 = arith.constant 0 : i32
    %c0_i32_0 = arith.constant 0 : i32
    %c0_i32_1 = arith.constant 0 : i32
    return %c0_i32, %c0_i32_0 : i32, i32
  }
  func.func @transform_11(%arg0: i32) -> (i32, i32) {
    %c0_i32 = arith.constant 0 : i32
    %c0_i32_0 = arith.constant 0 : i32
    %c0_i32_1 = arith.constant 0 : i32
    return %c0_i32, %c0_i32_0 : i32, i32
  }
  func.func @transform_12(%arg0: i32) -> (i32, i32) {
    %c0_i32 = arith.constant 0 : i32
    %c0_i32_0 = arith.constant 0 : i32
    %c0_i32_1 = arith.constant 0 : i32
    return %c0_i32, %c0_i32_0 : i32, i32
  }
  func.func @transform_13(%arg0: i32) -> (i32, i32, i32) {
    %c0_i32 = arith.constant 0 : i32
    %c0_i32_0 = arith.constant 0 : i32
    %c0_i32_1 = arith.constant 0 : i32
    return %arg0, %c0_i32, %c0_i32_0 : i32, i32, i32
  }
}

</mosaic_0001>

<llo_original>
// kernel: tpu_custom_call.1
$region0: #{tpu_custom_call.1}
  #allocation0 [shape = 'u32[]', space=smem, size = 0x4, offset = 0x4, fixed_abs, tag = 'smem constant byte address 0x4 - core index']
  #allocation1 [shape = 'u32[144,128]{1,0:T(1,128)}', space=vmem, size = 0x12000, scoped, tag = 'internal scratch']
  %s0 = inlined_call_operand.vmem [shape: f32[2,4,256], index: 0, kind: input, shape index: {}]
  %s1 = inlined_call_operand.hbm [shape: f32[9,256], index: 1, kind: input, shape index: {}]
  %s2 = inlined_call_operand.vmem [shape: f32[4,36], index: 2, kind: input, shape index: {}]
  %s3 = inlined_call_operand.vmem [shape: f32[4,1], index: 3, kind: input, shape index: {}]
  %s4 = inlined_call_operand.vmem [shape: f32[4,36], index: 4, kind: input, shape index: {}]
  %s5 = inlined_call_operand.vmem [shape: f32[4,1], index: 5, kind: input, shape index: {}]
  %s6 = inlined_call_operand.vmem [shape: f32[4,36], index: 6, kind: input, shape index: {}]
  %s7 = inlined_call_operand.vmem [shape: f32[4,1], index: 7, kind: input, shape index: {}]
  %s8 = inlined_call_operand.vmem [shape: f32[4,36], index: 8, kind: input, shape index: {}]
  %s9 = inlined_call_operand.vmem [shape: f32[4,1], index: 9, kind: input, shape index: {}]
  %s10 = inlined_call_operand.vmem [shape: f32[4,4], index: 10, kind: input, shape index: {}]
  %s11 = inlined_call_operand.vmem [shape: f32[4,4], index: 11, kind: input, shape index: {}]
  %s12 = inlined_call_operand.vmem [shape: f32[1,4], index: 12, kind: input, shape index: {}]
  %s13 = inlined_call_operand.hbm [shape: f32[2,4,256], index: 13, kind: output, shape index: {}]
  %s14 = sld [smem:[#allocation0]]
  $region89: #{tpu_custom_call.1} parent=0
    _
  %s16 = ssub.s32 1, %s14
  %s17 = scalar_select 0, %s16, %s14
  $region1: #{tpu_custom_call.1} parent=0
    #allocation2 [shape = 'u8[16384]{0}', space=vmem, size = 0x4000, scoped, tag = 'input window, operand 1, single buffered']
    #allocation3 [shape = 's32[2]{0}', space=sflag, size = 0x8, scoped, tag = 'scoped memory for tpu_custom_call.1']
    #allocation4 [shape = 's32[2]{0}', space=sflag, size = 0x8, scoped, tag = 'scoped memory for tpu_custom_call.1']
    #allocation5 [shape = 'u8[8192]{0}', space=vmem, size = 0x2000, scoped, tag = 'output window, operand 0']
    %18 = vsyncpa [#allocation3], 0
    %19 = vsyncpa [#allocation4], 0
    %s20 = scalar_lea.sflag [#allocation4], 1
    %21 = vsyncpa %s20, 0
    loop: start=0, step=1, limit=4
    $region2: #{tpu_custom_call.1} parent=1 // loop_pre_header
      _
    $region3: #{tpu_custom_call.1} parent=1 // loop_header
      %s23 = sphi 0, %s27
      %p24 = scmp.ge.s32.totalorder %s23, 4
      %s33 = sphi 0, %s35
      %s36 = sphi 0, %s33
      %s37 = sphi 0, %s36
      %s53 = sphi 0, %s37
      %s57 = sphi 0, %s57
      %s59 = sphi 0, %s57
      %s60 = sphi 0, %s59
      %s74 = sphi 0, %s60
      %s78 = sphi 0, %s78
      %s80 = sphi 0, %s78
      %s81 = sphi 0, %s80
      %s95 = sphi 0, %s81
      %s99 = sphi 0, %s99
      %s101 = sphi 0, %s99
      %s102 = sphi 0, %s101
      %s116 = sphi 0, %s102
      %s120 = sphi 0, %s120
      %s122 = sphi 0, %s120
      %s123 = sphi 0, %s122
      %s137 = sphi 0, %s123
      %s141 = sphi 0, %s141
      %s143 = sphi 0, %s141
      %s144 = sphi 0, %s143
      %s158 = sphi 0, %s144
      %s162 = sphi 0, %s162
      %s164 = sphi 0, %s162
      %s165 = sphi 0, %s164
      %s179 = sphi 0, %s165
      %s183 = sphi 0, %s183
      %s185 = sphi 0, %s183
      %s186 = sphi 0, %s185
      %s200 = sphi 0, %s186
      %s204 = sphi 0, %s204
      %s206 = sphi 0, %s204
      %s207 = sphi 0, %s206
      %s221 = sphi 0, %s207
      %s225 = sphi 0, %s225
      %s227 = sphi 0, %s225
      %s228 = sphi 0, %s227
      %s242 = sphi 0, %s228
      %s246 = sphi 0, %s246
      %s248 = sphi 0, %s246
      %s249 = sphi 0, %s248
      %s263 = sphi 0, %s249
      %s267 = sphi 0, %s267
      %s269 = sphi 0, %s267
      %s270 = sphi 0, %s269
      %s284 = sphi 0, %s270
      %s288 = sphi 0, %s288
      %s290 = sphi 0, %s288
      %s291 = sphi 0, %s290
      %s305 = sphi 0, %s291
      %s311 = sphi 0, %s313
      %s314 = sphi 0, %s311
      %s315 = sphi 0, %s314
      %s331 = sphi 0, %s315
    $region4: #{tpu_custom_call.1} parent=1 // loop_header_branch
      %26 = sbr.rel (%p24) target = $region8
    $region5: #{tpu_custom_call.1} parent=1 // loop_body
      %s28 = ssub.s32 %s23, 1
      %s29 = ssub.s32 %s23, 2
      %s30 = sadd.s32 %s23, 1
      %s31 = ssub.s32 %s23, %s30
      %p32 = scmp.eq.s32.totalorder %s31, 0
      %s34 = sadd.s32 %s33, 1
      %s35 = scalar_select %p32, %s33, %s34
      %p38 = pneg %p32
      %p39 = scmp.eq.s32.totalorder %s23, 1
      %p40 = por %p38, %p39
      %p41 = scmp.ne.s32.totalorder %s33, %s36
      %p42 = scmp.eq.s32.totalorder %s23, 0
      %p43 = por %p41, %p42
      %p44 = scmp.ne.s32.totalorder %s33, %s36
      %p45 = scmp.eq.s32.totalorder %s28, 1
      %p46 = por %p44, %p45
      %p47 = scmp.ne.s32.totalorder %s36, %s37
      %p48 = scmp.eq.s32.totalorder %s28, 0
      %p49 = por %p47, %p48
      %p50 = scmp.ne.s32.totalorder %s36, %s37
      %p51 = scmp.eq.s32.totalorder %s29, 1
      %p52 = por %p50, %p51
      %p54 = scmp.ne.s32.totalorder %s37, %s53
      %p55 = scmp.eq.s32.totalorder %s29, 0
      %p56 = por %p54, %p55
      %s58 = sadd.s32 %s57, 1
      %p61 = scmp.eq.s32.totalorder %s23, 1
      %p62 = scmp.ne.s32.totalorder %s57, %s59
      %p63 = scmp.eq.s32.totalorder %s23, 0
      %p64 = por %p62, %p63
      %p65 = scmp.ne.s32.totalorder %s57, %s59
      %p66 = scmp.eq.s32.totalorder %s28, 1
      %p67 = por %p65, %p66
      %p68 = scmp.ne.s32.totalorder %s59, %s60
      %p69 = scmp.eq.s32.totalorder %s28, 0
      %p70 = por %p68, %p69
      %p71 = scmp.ne.s32.totalorder %s59, %s60
      %p72 = scmp.eq.s32.totalorder %s29, 1
      %p73 = por %p71, %p72
      %p75 = scmp.ne.s32.totalorder %s60, %s74
      %p76 = scmp.eq.s32.totalorder %s29, 0
      %p77 = por %p75, %p76
      %s79 = sadd.s32 %s78, 1
      %p82 = scmp.eq.s32.totalorder %s23, 1
      %p83 = scmp.ne.s32.totalorder %s78, %s80
      %p84 = scmp.eq.s32.totalorder %s23, 0
      %p85 = por %p83, %p84
      %p86 = scmp.ne.s32.totalorder %s78, %s80
      %p87 = scmp.eq.s32.totalorder %s28, 1
      %p88 = por %p86, %p87
      %p89 = scmp.ne.s32.totalorder %s80, %s81
      %p90 = scmp.eq.s32.totalorder %s28, 0
      %p91 = por %p89, %p90
      %p92 = scmp.ne.s32.totalorder %s80, %s81
      %p93 = scmp.eq.s32.totalorder %s29, 1
      %p94 = por %p92, %p93
      %p96 = scmp.ne.s32.totalorder %s81, %s95
      %p97 = scmp.eq.s32.totalorder %s29, 0
      %p98 = por %p96, %p97
      %s100 = sadd.s32 %s99, 1
      %p103 = scmp.eq.s32.totalorder %s23, 1
      %p104 = scmp.ne.s32.totalorder %s99, %s101
      %p105 = scmp.eq.s32.totalorder %s23, 0
      %p106 = por %p104, %p105
      %p107 = scmp.ne.s32.totalorder %s99, %s101
      %p108 = scmp.eq.s32.totalorder %s28, 1
      %p109 = por %p107, %p108
      %p110 = scmp.ne.s32.totalorder %s101, %s102
      %p111 = scmp.eq.s32.totalorder %s28, 0
      %p112 = por %p110, %p111
      %p113 = scmp.ne.s32.totalorder %s101, %s102
      %p114 = scmp.eq.s32.totalorder %s29, 1
      %p115 = por %p113, %p114
      %p117 = scmp.ne.s32.totalorder %s102, %s116
      %p118 = scmp.eq.s32.totalorder %s29, 0
      %p119 = por %p117, %p118
      %s121 = sadd.s32 %s120, 1
      %p124 = scmp.eq.s32.totalorder %s23, 1
      %p125 = scmp.ne.s32.totalorder %s120, %s122
      %p126 = scmp.eq.s32.totalorder %s23, 0
      %p127 = por %p125, %p126
      %p128 = scmp.ne.s32.totalorder %s120, %s122
      %p129 = scmp.eq.s32.totalorder %s28, 1
      %p130 = por %p128, %p129
      %p131 = scmp.ne.s32.totalorder %s122, %s123
      %p132 = scmp.eq.s32.totalorder %s28, 0
      %p133 = por %p131, %p132
      %p134 = scmp.ne.s32.totalorder %s122, %s123
      %p135 = scmp.eq.s32.totalorder %s29, 1
      %p136 = por %p134, %p135
      %p138 = scmp.ne.s32.totalorder %s123, %s137
      %p139 = scmp.eq.s32.totalorder %s29, 0
      %p140 = por %p138, %p139
      %s142 = sadd.s32 %s141, 1
      %p145 = scmp.eq.s32.totalorder %s23, 1
      %p146 = scmp.ne.s32.totalorder %s141, %s143
      %p147 = scmp.eq.s32.totalorder %s23, 0
      %p148 = por %p146, %p147
      %p149 = scmp.ne.s32.totalorder %s141, %s143
      %p150 = scmp.eq.s32.totalorder %s28, 1
      %p151 = por %p149, %p150
      %p152 = scmp.ne.s32.totalorder %s143, %s144
      %p153 = scmp.eq.s32.totalorder %s28, 0
      %p154 = por %p152, %p153
      %p155 = scmp.ne.s32.totalorder %s143, %s144
      %p156 = scmp.eq.s32.totalorder %s29, 1
      %p157 = por %p155, %p156
      %p159 = scmp.ne.s32.totalorder %s144, %s158
      %p160 = scmp.eq.s32.totalorder %s29, 0
      %p161 = por %p159, %p160
      %s163 = sadd.s32 %s162, 1
      %p166 = scmp.eq.s32.totalorder %s23, 1
      %p167 = scmp.ne.s32.totalorder %s162, %s164
      %p168 = scmp.eq.s32.totalorder %s23, 0
      %p169 = por %p167, %p168
      %p170 = scmp.ne.s32.totalorder %s162, %s164
      %p171 = scmp.eq.s32.totalorder %s28, 1
      %p172 = por %p170, %p171
      %p173 = scmp.ne.s32.totalorder %s164, %s165
      %p174 = scmp.eq.s32.totalorder %s28, 0
      %p175 = por %p173, %p174
      %p176 = scmp.ne.s32.totalorder %s164, %s165
      %p177 = scmp.eq.s32.totalorder %s29, 1
      %p178 = por %p176, %p177
      %p180 = scmp.ne.s32.totalorder %s165, %s179
      %p181 = scmp.eq.s32.totalorder %s29, 0
      %p182 = por %p180, %p181
      %s184 = sadd.s32 %s183, 1
      %p187 = scmp.eq.s32.totalorder %s23, 1
      %p188 = scmp.ne.s32.totalorder %s183, %s185
      %p189 = scmp.eq.s32.totalorder %s23, 0
      %p190 = por %p188, %p189
      %p191 = scmp.ne.s32.totalorder %s183, %s185
      %p192 = scmp.eq.s32.totalorder %s28, 1
      %p193 = por %p191, %p192
      %p194 = scmp.ne.s32.totalorder %s185, %s186
      %p195 = scmp.eq.s32.totalorder %s28, 0
      %p196 = por %p194, %p195
      %p197 = scmp.ne.s32.totalorder %s185, %s186
      %p198 = scmp.eq.s32.totalorder %s29, 1
      %p199 = por %p197, %p198
      %p201 = scmp.ne.s32.totalorder %s186, %s200
      %p202 = scmp.eq.s32.totalorder %s29, 0
      %p203 = por %p201, %p202
      %s205 = sadd.s32 %s204, 1
      %p208 = scmp.eq.s32.totalorder %s23, 1
      %p209 = scmp.ne.s32.totalorder %s204, %s206
      %p210 = scmp.eq.s32.totalorder %s23, 0
      %p211 = por %p209, %p210
      %p212 = scmp.ne.s32.totalorder %s204, %s206
      %p213 = scmp.eq.s32.totalorder %s28, 1
      %p214 = por %p212, %p213
      %p215 = scmp.ne.s32.totalorder %s206, %s207
      %p216 = scmp.eq.s32.totalorder %s28, 0
      %p217 = por %p215, %p216
      %p218 = scmp.ne.s32.totalorder %s206, %s207
      %p219 = scmp.eq.s32.totalorder %s29, 1
      %p220 = por %p218, %p219
      %p222 = scmp.ne.s32.totalorder %s207, %s221
      %p223 = scmp.eq.s32.totalorder %s29, 0
      %p224 = por %p222, %p223
      %s226 = sadd.s32 %s225, 1
      %p229 = scmp.eq.s32.totalorder %s23, 1
      %p230 = scmp.ne.s32.totalorder %s225, %s227
      %p231 = scmp.eq.s32.totalorder %s23, 0
      %p232 = por %p230, %p231
      %p233 = scmp.ne.s32.totalorder %s225, %s227
      %p234 = scmp.eq.s32.totalorder %s28, 1
      %p235 = por %p233, %p234
      %p236 = scmp.ne.s32.totalorder %s227, %s228
      %p237 = scmp.eq.s32.totalorder %s28, 0
      %p238 = por %p236, %p237
      %p239 = scmp.ne.s32.totalorder %s227, %s228
      %p240 = scmp.eq.s32.totalorder %s29, 1
      %p241 = por %p239, %p240
      %p243 = scmp.ne.s32.totalorder %s228, %s242
      %p244 = scmp.eq.s32.totalorder %s29, 0
      %p245 = por %p243, %p244
      %s247 = sadd.s32 %s246, 1
      %p250 = scmp.eq.s32.totalorder %s23, 1
      %p251 = scmp.ne.s32.totalorder %s246, %s248
      %p252 = scmp.eq.s32.totalorder %s23, 0
      %p253 = por %p251, %p252
      %p254 = scmp.ne.s32.totalorder %s246, %s248
      %p255 = scmp.eq.s32.totalorder %s28, 1
      %p256 = por %p254, %p255
      %p257 = scmp.ne.s32.totalorder %s248, %s249
      %p258 = scmp.eq.s32.totalorder %s28, 0
      %p259 = por %p257, %p258
      %p260 = scmp.ne.s32.totalorder %s248, %s249
      %p261 = scmp.eq.s32.totalorder %s29, 1
      %p262 = por %p260, %p261
      %p264 = scmp.ne.s32.totalorder %s249, %s263
      %p265 = scmp.eq.s32.totalorder %s29, 0
      %p266 = por %p264, %p265
      %s268 = sadd.s32 %s267, 1
      %p271 = scmp.eq.s32.totalorder %s23, 1
      %p272 = scmp.ne.s32.totalorder %s267, %s269
      %p273 = scmp.eq.s32.totalorder %s23, 0
      %p274 = por %p272, %p273
      %p275 = scmp.ne.s32.totalorder %s267, %s269
      %p276 = scmp.eq.s32.totalorder %s28, 1
      %p277 = por %p275, %p276
      %p278 = scmp.ne.s32.totalorder %s269, %s270
      %p279 = scmp.eq.s32.totalorder %s28, 0
      %p280 = por %p278, %p279
      %p281 = scmp.ne.s32.totalorder %s269, %s270
      %p282 = scmp.eq.s32.totalorder %s29, 1
      %p283 = por %p281, %p282
      %p285 = scmp.ne.s32.totalorder %s270, %s284
      %p286 = scmp.eq.s32.totalorder %s29, 0
      %p287 = por %p285, %p286
      %s289 = sadd.s32 %s288, 1
      %p292 = scmp.eq.s32.totalorder %s23, 1
      %p293 = scmp.ne.s32.totalorder %s288, %s290
      %p294 = scmp.eq.s32.totalorder %s23, 0
      %p295 = por %p293, %p294
      %p296 = scmp.ne.s32.totalorder %s288, %s290
      %p297 = scmp.eq.s32.totalorder %s28, 1
      %p298 = por %p296, %p297
      %p299 = scmp.ne.s32.totalorder %s290, %s291
      %p300 = scmp.eq.s32.totalorder %s28, 0
      %p301 = por %p299, %p300
      %p302 = scmp.ne.s32.totalorder %s290, %s291
      %p303 = scmp.eq.s32.totalorder %s29, 1
      %p304 = por %p302, %p303
      %p306 = scmp.ne.s32.totalorder %s291, %s305
      %p307 = scmp.eq.s32.totalorder %s29, 0
      %p308 = por %p306, %p307
      %s309 = ssub.s32 %s23, %s30
      %p310 = scmp.eq.s32.totalorder %s309, 0
      %s312 = sadd.s32 %s311, 1
      %s313 = scalar_select %p310, %s311, %s312
      %p316 = pneg %p310
      %p317 = scmp.eq.s32.totalorder %s23, 1
      %p318 = por %p316, %p317
      %p319 = scmp.ne.s32.totalorder %s311, %s314
      %p320 = scmp.eq.s32.totalorder %s23, 0
      %p321 = por %p319, %p320
      %p322 = scmp.ne.s32.totalorder %s311, %s314
      %p323 = scmp.eq.s32.totalorder %s28, 1
      %p324 = por %p322, %p323
      %p325 = scmp.ne.s32.totalorder %s314, %s315
      %p326 = scmp.eq.s32.totalorder %s28, 0
      %p327 = por %p325, %p326
      %p328 = scmp.ne.s32.totalorder %s314, %s315
      %p329 = scmp.eq.s32.totalorder %s29, 1
      %p330 = por %p328, %p329
      %p332 = scmp.ne.s32.totalorder %s315, %s331
      %p333 = scmp.eq.s32.totalorder %s29, 0
      %p334 = por %p332, %p333
      %p335 = scmp.le.s32.totalorder 1, %s23
      %p336 = scmp.lt.s32.totalorder %s23, 3
      %p337 = pnand %p335, %p336
      %p338 = pneg %p337
      // Predicated region
      $region9: #{tpu_custom_call.1} parent=5 // pred_check
        _
      $region10: #{tpu_custom_call.1} parent=5 // pred_check_branch
        %340 = sbr.rel (%p337) target = $region12
      $region11: #{tpu_custom_call.1} parent=5 // pred_region
        %s341 = ssub.s32 %s23, 1
        // Predicated region
        $region13: #{tpu_custom_call.1} parent=11 // pred_check
          %p342 = pneg %p70
        $region14: #{tpu_custom_call.1} parent=11 // pred_check_branch
          %344 = sbr.rel (%p342) target = $region16
        $region15: #{tpu_custom_call.1} parent=11 // pred_region
          %s346 = ssub.s32 512, 512
          %347 = vsyncadd [#allocation3], %s346
          %s348 = sshll.u32 [#allocation2], 4
          %s349 = int_to_ptr.vmem [resolvable:$true] %s348
          %354 = dma.hbm_to_vmem [thread:$0]  %s1, 512, %s349, [#allocation3], 256, 256, 16
        $region16: #{tpu_custom_call.1} parent=11 // pred_fallthru
          _
        // Predicated region
        $region17: #{tpu_custom_call.1} parent=11 // pred_check
          %p355 = pneg %p91
        $region18: #{tpu_custom_call.1} parent=11 // pred_check_branch
          %357 = sbr.rel (%p355) target = $region20
        $region19: #{tpu_custom_call.1} parent=11 // pred_region
          _
        $region20: #{tpu_custom_call.1} parent=11 // pred_fallthru
          _
        // Predicated region
        $region21: #{tpu_custom_call.1} parent=11 // pred_check
          %p358 = pneg %p112
        $region22: #{tpu_custom_call.1} parent=11 // pred_check_branch
          %360 = sbr.rel (%p358) target = $region24
        $region23: #{tpu_custom_call.1} parent=11 // pred_region
          _
        $region24: #{tpu_custom_call.1} parent=11 // pred_fallthru
          _
        // Predicated region
        $region25: #{tpu_custom_call.1} parent=11 // pred_check
          %p361 = pneg %p133
        $region26: #{tpu_custom_call.1} parent=11 // pred_check_branch
          %363 = sbr.rel (%p361) target = $region28
        $region27: #{tpu_custom_call.1} parent=11 // pred_region
          _
        $region28: #{tpu_custom_call.1} parent=11 // pred_fallthru
          _
        // Predicated region
        $region29: #{tpu_custom_call.1} parent=11 // pred_check
          %p364 = pneg %p154
        $region30: #{tpu_custom_call.1} parent=11 // pred_check_branch
          %366 = sbr.rel (%p364) target = $region32
        $region31: #{tpu_custom_call.1} parent=11 // pred_region
          _
        $region32: #{tpu_custom_call.1} parent=11 // pred_fallthru
          _
        // Predicated region
        $region33: #{tpu_custom_call.1} parent=11 // pred_check
          %p367 = pneg %p175
        $region34: #{tpu_custom_call.1} parent=11 // pred_check_branch
          %369 = sbr.rel (%p367) target = $region36
        $region35: #{tpu_custom_call.1} parent=11 // pred_region
          _
        $region36: #{tpu_custom_call.1} parent=11 // pred_fallthru
          _
        // Predicated region
        $region37: #{tpu_custom_call.1} parent=11 // pred_check
          %p370 = pneg %p196
        $region38: #{tpu_custom_call.1} parent=11 // pred_check_branch
          %372 = sbr.rel (%p370) target = $region40
        $region39: #{tpu_custom_call.1} parent=11 // pred_region
          _
        $region40: #{tpu_custom_call.1} parent=11 // pred_fallthru
          _
        // Predicated region
        $region41: #{tpu_custom_call.1} parent=11 // pred_check
          %p373 = pneg %p217
        $region42: #{tpu_custom_call.1} parent=11 // pred_check_branch
          %375 = sbr.rel (%p373) target = $region44
        $region43: #{tpu_custom_call.1} parent=11 // pred_region
          _
        $region44: #{tpu_custom_call.1} parent=11 // pred_fallthru
          _
        // Predicated region
        $region45: #{tpu_custom_call.1} parent=11 // pred_check
          %p376 = pneg %p238
        $region46: #{tpu_custom_call.1} parent=11 // pred_check_branch
          %378 = sbr.rel (%p376) target = $region48
        $region47: #{tpu_custom_call.1} parent=11 // pred_region
          _
        $region48: #{tpu_custom_call.1} parent=11 // pred_fallthru
          _
        // Predicated region
        $region49: #{tpu_custom_call.1} parent=11 // pred_check
          %p379 = pneg %p259
        $region50: #{tpu_custom_call.1} parent=11 // pred_check_branch
          %381 = sbr.rel (%p379) target = $region52
        $region51: #{tpu_custom_call.1} parent=11 // pred_region
          _
        $region52: #{tpu_custom_call.1} parent=11 // pred_fallthru
          _
        // Predicated region
        $region53: #{tpu_custom_call.1} parent=11 // pred_check
          %p382 = pneg %p280
        $region54: #{tpu_custom_call.1} parent=11 // pred_check_branch
          %384 = sbr.rel (%p382) target = $region56
        $region55: #{tpu_custom_call.1} parent=11 // pred_region
          _
        $region56: #{tpu_custom_call.1} parent=11 // pred_fallthru
          _
        // Predicated region
        $region57: #{tpu_custom_call.1} parent=11 // pred_check
          %p385 = pneg %p301
        $region58: #{tpu_custom_call.1} parent=11 // pred_check_branch
          %387 = sbr.rel (%p385) target = $region60
        $region59: #{tpu_custom_call.1} parent=11 // pred_region
          _
        $region60: #{tpu_custom_call.1} parent=11 // pred_fallthru
          _
      $region12: #{tpu_custom_call.1} parent=5 // pred_fallthru
        _
      %p388 = scmp.lt.s32.totalorder %s23, 2
      // Predicated region
      $region61: #{tpu_custom_call.1} parent=5 // pred_check
        %p389 = pneg %p388
      $region62: #{tpu_custom_call.1} parent=5 // pred_check_branch
        %391 = sbr.rel (%p389) target = $region64
      $region63: #{tpu_custom_call.1} parent=5 // pred_region
        // Predicated region
        $region65: #{tpu_custom_call.1} parent=63 // pred_check
          %p392 = pneg %p43
        $region66: #{tpu_custom_call.1} parent=63 // pred_check_branch
          %394 = sbr.rel (%p392) target = $region68
        $region67: #{tpu_custom_call.1} parent=63 // pred_region
          %p395 = scmp.lt.s32.totalorder %s23, 1
          %s396 = scalar_select %p395, %s23, 1
          %s397 = smul.addr %s396, 2
          %s398 = smul.addr %s397, 4
          %s399 = scalar_lea.vmem %s0, %s398
        $region68: #{tpu_custom_call.1} parent=63 // pred_fallthru
          _
      $region64: #{tpu_custom_call.1} parent=5 // pred_fallthru
        _
      %p400 = scmp.le.s32.totalorder 1, %s23
      %p401 = scmp.lt.s32.totalorder %s23, 3
      %p402 = pnand %p400, %p401
      %p403 = pneg %p402
      // Predicated region
      $region69: #{tpu_custom_call.1} parent=5 // pred_check
        _
      $region70: #{tpu_custom_call.1} parent=5 // pred_check_branch
        %405 = sbr.rel (%p402) target = $region72
      $region71: #{tpu_custom_call.1} parent=5 // pred_region
        %s406 = ssub.s32 %s23, 1
        // Predicated region
        $region73: #{tpu_custom_call.1} parent=71 // pred_check
          %p407 = pneg %p70
        $region74: #{tpu_custom_call.1} parent=71 // pred_check_branch
          %409 = sbr.rel (%p407) target = $region76
        $region75: #{tpu_custom_call.1} parent=71 // pred_region
          %410 = dma.done [#allocation3], 512
        $region76: #{tpu_custom_call.1} parent=71 // pred_fallthru
          _
        %p411 = scmp.lt.s32.totalorder %s28, 1
        %s412 = scalar_select %p411, %s28, 1
        %s413 = smul.addr %s412, 2
        %s414 = smul.addr %s413, 4
        %s415 = scalar_lea.vmem %s0, %s414
        %p416 = pneg %p49
        %p417 = pneg %p46
        %p418 = pneg %p70
        %p419 = pneg %p67
        %p420 = pneg %p91
        %p421 = pneg %p88
        %p422 = pneg %p112
        %p423 = pneg %p109
        %p424 = pneg %p133
        %p425 = pneg %p130
        %p426 = pneg %p154
        %p427 = pneg %p151
        %p428 = pneg %p175
        %p429 = pneg %p172
        %p430 = pneg %p196
        %p431 = pneg %p193
        %p432 = pneg %p217
        %p433 = pneg %p214
        %p434 = pneg %p238
        %p435 = pneg %p235
        %p436 = pneg %p259
        %p437 = pneg %p256
        %p438 = pneg %p280
        %p439 = pneg %p277
        %p440 = pneg %p301
        %p441 = pneg %p298
        %p442 = pneg %p327
        %p443 = pneg %p324
        %s444 = sand.u32 %s314, 1
        %s445 = scalar_lea.sflag [#allocation4], %s444
        %s446 = sand.u32 %s314, 1
        %s447 = smul.addr %s446, 8
        %s448 = scalar_lea.vmem [#allocation5], %s447
        %p449 = scmp.lt.s32.totalorder %s28, 1
        %s450 = scalar_select %p449, %s28, 1
        %s451 = smul.addr %s450, 2
        %s452 = smul.addr %s451, 4
        %s453 = scalar_lea.vmem %s0, %s452
        %v454 = vld [vmem:[%s453] sm:$0xff]
        %v455 = vld [vmem:[#allocation2] sm:$0xff]
        %v456 = vld [vmem:[#allocation2 + $0x8] sm:$0xff]
        %v457 = vld [vmem:[#allocation2 + $0x10] sm:$0x1]
        %v458 = vld [vmem:[#allocation2 + $0x18] sm:$0x1]
        %v459 = vld [vmem:[%s2] sm:$0xf]
        %v460 = vld [vmem:[%s3] sm:$0xf]
        %v462 = vcombine.high %v454, %v454
        %464 = vrot.lane.b32.xlu0 %v454, 17
        %v465 = vpop.permute.xlu0 %464
        %466 = vrot.lane.b32.xlu0 %v462, 17
        %v467 = vpop.permute.xlu0 %466
        %v468 = vlaneseq
        %v469 = vand.u32 %v468, 127
        %vm470 = vcmp.lt.s32.totalorder %v469, 17
        %v471 = vsel %vm470, %v465, %v467
        %v472 = vsel %vm470, %v467, %v465
        %v473 = vlaneseq
        %v474 = vshrl.u32 %v473, 7
        %v475 = vsub.s32 0, %v474
        %v476 = vrot.slane %v455, %v475
        %v477 = vlaneseq
        %v478 = vshrl.u32 %v477, 7
        %v479 = vsub.s32 0, %v478
        %v480 = vrot.slane %v456, %v479
        %v481 = vmul.f32 %v472, %v476
        %v482 = vmul.f32 %v471, %v480
        %483 = vrot.lane.b32.xlu0 %v454, 16
        %v484 = vpop.permute.xlu0 %483
        %485 = vrot.lane.b32.xlu0 %v462, 16
        %v486 = vpop.permute.xlu0 %485
        %vm487 = vcmp.lt.s32.totalorder %v469, 16
        %v488 = vsel %vm487, %v484, %v486
        %v489 = vsel %vm487, %v486, %v484
        %v490 = vlaneseq
        %v491 = vshrl.u32 %v490, 7
        %v492 = vsub.s32 1, %v491
        %v493 = vrot.slane %v455, %v492
        %v494 = vlaneseq
        %v495 = vshrl.u32 %v494, 7
        %v496 = vsub.s32 1, %v495
        %v497 = vrot.slane %v456, %v496
        %v498 = vmul.f32 %v489, %v493
        %v499 = vmul.f32 %v488, %v497
        %500 = vrot.lane.b32.xlu0 %v454, 15
        %v501 = vpop.permute.xlu0 %500
        %502 = vrot.lane.b32.xlu0 %v462, 15
        %v503 = vpop.permute.xlu0 %502
        %vm504 = vcmp.lt.s32.totalorder %v469, 15
        %v505 = vsel %vm504, %v501, %v503
        %v506 = vsel %vm504, %v503, %v501
        %v507 = vlaneseq
        %v508 = vshrl.u32 %v507, 7
        %v509 = vsub.s32 2, %v508
        %v510 = vrot.slane %v455, %v509
        %v511 = vlaneseq
        %v512 = vshrl.u32 %v511, 7
        %v513 = vsub.s32 2, %v512
        %v514 = vrot.slane %v456, %v513
        %v515 = vmul.f32 %v506, %v510
        %v516 = vmul.f32 %v505, %v514
        %517 = vrot.lane.b32.xlu0 %v454, 1
        %v518 = vpop.permute.xlu0 %517
        %519 = vrot.lane.b32.xlu0 %v462, 1
        %v520 = vpop.permute.xlu0 %519
        %vm521 = vcmp.lt.s32.totalorder %v469, 1
        %v522 = vsel %vm521, %v518, %v520
        %v523 = vsel %vm521, %v520, %v518
        %v524 = vlaneseq
        %v525 = vshrl.u32 %v524, 7
        %v526 = vsub.s32 3, %v525
        %v527 = vrot.slane %v455, %v526
        %v528 = vlaneseq
        %v529 = vshrl.u32 %v528, 7
        %v530 = vsub.s32 3, %v529
        %v531 = vrot.slane %v456, %v530
        %v532 = vmul.f32 %v523, %v527
        %v533 = vmul.f32 %v522, %v531
        %v534 = vlaneseq
        %v535 = vshrl.u32 %v534, 7
        %v536 = vsub.s32 4, %v535
        %v537 = vrot.slane %v455, %v536
        %v538 = vlaneseq
        %v539 = vshrl.u32 %v538, 7
        %v540 = vsub.s32 4, %v539
        %v541 = vrot.slane %v456, %v540
        %v544 = vcombine.low %v537, %v541
        %v546 = vmul.f32 %v454, %v544
        %547 = vrot.lane.b32.xlu0 %v454, 127
        %v548 = vpop.permute.xlu0 %547
        %549 = vrot.lane.b32.xlu0 %v462, 127
        %v550 = vpop.permute.xlu0 %549
        %vm551 = vcmp.lt.s32.totalorder %v469, 127
        %v552 = vsel %vm551, %v548, %v550
        %v553 = vsel %vm551, %v550, %v548
        %v554 = vlaneseq
        %v555 = vshrl.u32 %v554, 7
        %v556 = vsub.s32 5, %v555
        %v557 = vrot.slane %v455, %v556
        %v558 = vlaneseq
        %v559 = vshrl.u32 %v558, 7
        %v560 = vsub.s32 5, %v559
        %v561 = vrot.slane %v456, %v560
        %v562 = vmul.f32 %v552, %v557
        %v563 = vmul.f32 %v553, %v561
        %564 = vrot.lane.b32.xlu0 %v454, 113
        %v565 = vpop.permute.xlu0 %564
        %566 = vrot.lane.b32.xlu0 %v462, 113
        %v567 = vpop.permute.xlu0 %566
        %vm568 = vcmp.lt.s32.totalorder %v469, 113
        %v569 = vsel %vm568, %v565, %v567
        %v570 = vsel %vm568, %v567, %v565
        %v571 = vlaneseq
        %v572 = vshrl.u32 %v571, 7
        %v573 = vsub.s32 6, %v572
        %v574 = vrot.slane %v455, %v573
        %v575 = vlaneseq
        %v576 = vshrl.u32 %v575, 7
        %v577 = vsub.s32 6, %v576
        %v578 = vrot.slane %v456, %v577
        %v579 = vmul.f32 %v569, %v574
        %v580 = vmul.f32 %v570, %v578
        %581 = vrot.lane.b32.xlu0 %v454, 112
        %v582 = vpop.permute.xlu0 %581
        %583 = vrot.lane.b32.xlu0 %v462, 112
        %v584 = vpop.permute.xlu0 %583
        %vm585 = vcmp.lt.s32.totalorder %v469, 112
        %v586 = vsel %vm585, %v582, %v584
        %v587 = vsel %vm585, %v584, %v582
        %v588 = vlaneseq
        %v589 = vshrl.u32 %v588, 7
        %v590 = vsub.s32 7, %v589
        %v591 = vrot.slane %v455, %v590
        %v592 = vlaneseq
        %v593 = vshrl.u32 %v592, 7
        %v594 = vsub.s32 7, %v593
        %v595 = vrot.slane %v456, %v594
        %v596 = vmul.f32 %v586, %v591
        %v597 = vmul.f32 %v587, %v595
        %598 = vrot.lane.b32.xlu0 %v454, 111
        %v599 = vpop.permute.xlu0 %598
        %600 = vrot.lane.b32.xlu0 %v462, 111
        %v601 = vpop.permute.xlu0 %600
        %vm602 = vcmp.lt.s32.totalorder %v469, 111
        %v603 = vsel %vm602, %v599, %v601
        %v604 = vsel %vm602, %v601, %v599
        %v605 = vlaneseq
        %v606 = vshrl.u32 %v605, 7
        %v607 = vsub.s32 0, %v606
        %v608 = vrot.slane %v457, %v607
        %v609 = vlaneseq
        %v610 = vshrl.u32 %v609, 7
        %v611 = vsub.s32 0, %v610
        %v612 = vrot.slane %v458, %v611
        %v613 = vmul.f32 %v603, %v608
        %v614 = vmul.f32 %v604, %v612
        %616 = vset.pattern.permute.xlu0 0
        %617 = vperm.xlu0 %616, %v459
        %v618 = vpop.permute.xlu0 %617
        %v620 = vlaneseq
        %v621 = vshrl.u32 %v620, 7
        %v622 = vsub.s32 0, %v621
        %v623 = vrot.slane %v481, %v622
        %v624 = vlaneseq
        %v625 = vshrl.u32 %v624, 7
        %v626 = vsub.s32 0, %v625
        %v627 = vrot.slane %v482, %v626
        %v628 = vmul.f32 %v618, %v623
        %v629 = vmul.f32 %v618, %v627
        %v630 = vadd.f32 %v628, 0.0
        %v631 = vadd.f32 %v629, 0.0
        %632 = vset.pattern.permute.xlu0 1
        %633 = vperm.xlu0 %632, %v459
        %v634 = vpop.permute.xlu0 %633
        %v636 = vlaneseq
        %v637 = vshrl.u32 %v636, 7
        %v638 = vsub.s32 0, %v637
        %v639 = vrot.slane %v498, %v638
        %v640 = vlaneseq
        %v641 = vshrl.u32 %v640, 7
        %v642 = vsub.s32 0, %v641
        %v643 = vrot.slane %v499, %v642
        %v644 = vmul.f32 %v634, %v639
        %v645 = vmul.f32 %v634, %v643
        %v646 = vadd.f32 %v630, %v644
        %v647 = vadd.f32 %v631, %v645
        %648 = vset.pattern.permute.xlu0 2
        %649 = vperm.xlu0 %648, %v459
        %v650 = vpop.permute.xlu0 %649
        %v652 = vlaneseq
        %v653 = vshrl.u32 %v652, 7
        %v654 = vsub.s32 0, %v653
        %v655 = vrot.slane %v515, %v654
        %v656 = vlaneseq
        %v657 = vshrl.u32 %v656, 7
        %v658 = vsub.s32 0, %v657
        %v659 = vrot.slane %v516, %v658
        %v660 = vmul.f32 %v650, %v655
        %v661 = vmul.f32 %v650, %v659
        %v662 = vadd.f32 %v646, %v660
        %v663 = vadd.f32 %v647, %v661
        %664 = vset.pattern.permute.xlu0 3
        %665 = vperm.xlu0 %664, %v459
        %v666 = vpop.permute.xlu0 %665
        %v668 = vlaneseq
        %v669 = vshrl.u32 %v668, 7
        %v670 = vsub.s32 0, %v669
        %v671 = vrot.slane %v532, %v670
        %v672 = vlaneseq
        %v673 = vshrl.u32 %v672, 7
        %v674 = vsub.s32 0, %v673
        %v675 = vrot.slane %v533, %v674
        %v676 = vmul.f32 %v666, %v671
        %v677 = vmul.f32 %v666, %v675
        %v678 = vadd.f32 %v662, %v676
        %v679 = vadd.f32 %v663, %v677
        %680 = vset.pattern.permute.xlu0 4
        %681 = vperm.xlu0 %680, %v459
        %v682 = vpop.permute.xlu0 %681
        %v685 = vlaneseq
        %v686 = vshrl.u32 %v685, 7
        %v687 = vsub.s32 0, %v686
        %v688 = vrot.slane %v546, %v687
        %v689 = vlaneseq
        %v690 = vshrl.u32 %v689, 7
        %v691 = vsub.s32 4, %v690
        %v692 = vrot.slane %v546, %v691
        %v695 = vlaneseq
        %v696 = vshrl.u32 %v695, 7
        %v697 = vsub.s32 0, %v696
        %v698 = vrot.slane %v688, %v697
        %v699 = vlaneseq
        %v700 = vshrl.u32 %v699, 7
        %v701 = vsub.s32 0, %v700
        %v702 = vrot.slane %v692, %v701
        %v703 = vmul.f32 %v682, %v698
        %v704 = vmul.f32 %v682, %v702
        %v705 = vadd.f32 %v678, %v703
        %v706 = vadd.f32 %v679, %v704
        %707 = vset.pattern.permute.xlu0 5
        %708 = vperm.xlu0 %707, %v459
        %v709 = vpop.permute.xlu0 %708
        %v711 = vlaneseq
        %v712 = vshrl.u32 %v711, 7
        %v713 = vsub.s32 0, %v712
        %v714 = vrot.slane %v562, %v713
        %v715 = vlaneseq
        %v716 = vshrl.u32 %v715, 7
        %v717 = vsub.s32 0, %v716
        %v718 = vrot.slane %v563, %v717
        %v719 = vmul.f32 %v709, %v714
        %v720 = vmul.f32 %v709, %v718
        %v721 = vadd.f32 %v705, %v719
        %v722 = vadd.f32 %v706, %v720
        %723 = vset.pattern.permute.xlu0 6
        %724 = vperm.xlu0 %723, %v459
        %v725 = vpop.permute.xlu0 %724
        %v727 = vlaneseq
        %v728 = vshrl.u32 %v727, 7
        %v729 = vsub.s32 0, %v728
        %v730 = vrot.slane %v579, %v729
        %v731 = vlaneseq
        %v732 = vshrl.u32 %v731, 7
        %v733 = vsub.s32 0, %v732
        %v734 = vrot.slane %v580, %v733
        %v735 = vmul.f32 %v725, %v730
        %v736 = vmul.f32 %v725, %v734
        %v737 = vadd.f32 %v721, %v735
        %v738 = vadd.f32 %v722, %v736
        %739 = vset.pattern.permute.xlu0 7
        %740 = vperm.xlu0 %739, %v459
        %v741 = vpop.permute.xlu0 %740
        %v743 = vlaneseq
        %v744 = vshrl.u32 %v743, 7
        %v745 = vsub.s32 0, %v744
        %v746 = vrot.slane %v596, %v745
        %v747 = vlaneseq
        %v748 = vshrl.u32 %v747, 7
        %v749 = vsub.s32 0, %v748
        %v750 = vrot.slane %v597, %v749
        %v751 = vmul.f32 %v741, %v746
        %v752 = vmul.f32 %v741, %v750
        %v753 = vadd.f32 %v737, %v751
        %v754 = vadd.f32 %v738, %v752
        %755 = vset.pattern.permute.xlu0 8
        %756 = vperm.xlu0 %755, %v459
        %v757 = vpop.permute.xlu0 %756
        %v759 = vlaneseq
        %v760 = vshrl.u32 %v759, 7
        %v761 = vsub.s32 0, %v760
        %v762 = vrot.slane %v613, %v761
        %v763 = vlaneseq
        %v764 = vshrl.u32 %v763, 7
        %v765 = vsub.s32 0, %v764
        %v766 = vrot.slane %v614, %v765
        %v767 = vmul.f32 %v757, %v762
        %v768 = vmul.f32 %v757, %v766
        %v769 = vadd.f32 %v753, %v767
        %v770 = vadd.f32 %v754, %v768
        %771 = vset.pattern.permute.xlu0 9
        %772 = vperm.xlu0 %771, %v459
        %v773 = vpop.permute.xlu0 %772
        %v775 = vlaneseq
        %v776 = vshrl.u32 %v775, 7
        %v777 = vsub.s32 1, %v776
        %v778 = vrot.slane %v481, %v777
        %v779 = vlaneseq
        %v780 = vshrl.u32 %v779, 7
        %v781 = vsub.s32 1, %v780
        %v782 = vrot.slane %v482, %v781
        %v783 = vmul.f32 %v773, %v778
        %v784 = vmul.f32 %v773, %v782
        %v785 = vadd.f32 %v769, %v783
        %v786 = vadd.f32 %v770, %v784
        %787 = vset.pattern.permute.xlu0 10
        %788 = vperm.xlu0 %787, %v459
        %v789 = vpop.permute.xlu0 %788
        %v791 = vlaneseq
        %v792 = vshrl.u32 %v791, 7
        %v793 = vsub.s32 1, %v792
        %v794 = vrot.slane %v498, %v793
        %v795 = vlaneseq
        %v796 = vshrl.u32 %v795, 7
        %v797 = vsub.s32 1, %v796
        %v798 = vrot.slane %v499, %v797
        %v799 = vmul.f32 %v789, %v794
        %v800 = vmul.f32 %v789, %v798
        %v801 = vadd.f32 %v785, %v799
        %v802 = vadd.f32 %v786, %v800
        %803 = vset.pattern.permute.xlu0 11
        %804 = vperm.xlu0 %803, %v459
        %v805 = vpop.permute.xlu0 %804
        %v807 = vlaneseq
        %v808 = vshrl.u32 %v807, 7
        %v809 = vsub.s32 1, %v808
        %v810 = vrot.slane %v515, %v809
        %v811 = vlaneseq
        %v812 = vshrl.u32 %v811, 7
        %v813 = vsub.s32 1, %v812
        %v814 = vrot.slane %v516, %v813
        %v815 = vmul.f32 %v805, %v810
        %v816 = vmul.f32 %v805, %v814
        %v817 = vadd.f32 %v801, %v815
        %v818 = vadd.f32 %v802, %v816
        %819 = vset.pattern.permute.xlu0 12
        %820 = vperm.xlu0 %819, %v459
        %v821 = vpop.permute.xlu0 %820
        %v823 = vlaneseq
        %v824 = vshrl.u32 %v823, 7
        %v825 = vsub.s32 1, %v824
        %v826 = vrot.slane %v532, %v825
        %v827 = vlaneseq
        %v828 = vshrl.u32 %v827, 7
        %v829 = vsub.s32 1, %v828
        %v830 = vrot.slane %v533, %v829
        %v831 = vmul.f32 %v821, %v826
        %v832 = vmul.f32 %v821, %v830
        %v833 = vadd.f32 %v817, %v831
        %v834 = vadd.f32 %v818, %v832
        %835 = vset.pattern.permute.xlu0 13
        %836 = vperm.xlu0 %835, %v459
        %v837 = vpop.permute.xlu0 %836
        %v839 = vlaneseq
        %v840 = vshrl.u32 %v839, 7
        %v841 = vsub.s32 1, %v840
        %v842 = vrot.slane %v546, %v841
        %v843 = vlaneseq
        %v844 = vshrl.u32 %v843, 7
        %v845 = vsub.s32 5, %v844
        %v846 = vrot.slane %v546, %v845
        %v849 = vlaneseq
        %v850 = vshrl.u32 %v849, 7
        %v851 = vsub.s32 1, %v850
        %v852 = vrot.slane %v842, %v851
        %v853 = vlaneseq
        %v854 = vshrl.u32 %v853, 7
        %v855 = vsub.s32 1, %v854
        %v856 = vrot.slane %v846, %v855
        %v857 = vmul.f32 %v837, %v852
        %v858 = vmul.f32 %v837, %v856
        %v859 = vadd.f32 %v833, %v857
        %v860 = vadd.f32 %v834, %v858
        %861 = vset.pattern.permute.xlu0 14
        %862 = vperm.xlu0 %861, %v459
        %v863 = vpop.permute.xlu0 %862
        %v865 = vlaneseq
        %v866 = vshrl.u32 %v865, 7
        %v867 = vsub.s32 1, %v866
        %v868 = vrot.slane %v562, %v867
        %v869 = vlaneseq
        %v870 = vshrl.u32 %v869, 7
        %v871 = vsub.s32 1, %v870
        %v872 = vrot.slane %v563, %v871
        %v873 = vmul.f32 %v863, %v868
        %v874 = vmul.f32 %v863, %v872
        %v875 = vadd.f32 %v859, %v873
        %v876 = vadd.f32 %v860, %v874
        %877 = vset.pattern.permute.xlu0 15
        %878 = vperm.xlu0 %877, %v459
        %v879 = vpop.permute.xlu0 %878
        %v881 = vlaneseq
        %v882 = vshrl.u32 %v881, 7
        %v883 = vsub.s32 1, %v882
        %v884 = vrot.slane %v579, %v883
        %v885 = vlaneseq
        %v886 = vshrl.u32 %v885, 7
        %v887 = vsub.s32 1, %v886
        %v888 = vrot.slane %v580, %v887
        %v889 = vmul.f32 %v879, %v884
        %v890 = vmul.f32 %v879, %v888
        %v891 = vadd.f32 %v875, %v889
        %v892 = vadd.f32 %v876, %v890
        %893 = vset.pattern.permute.xlu0 16
        %894 = vperm.xlu0 %893, %v459
        %v895 = vpop.permute.xlu0 %894
        %v897 = vlaneseq
        %v898 = vshrl.u32 %v897, 7
        %v899 = vsub.s32 1, %v898
        %v900 = vrot.slane %v596, %v899
        %v901 = vlaneseq
        %v902 = vshrl.u32 %v901, 7
        %v903 = vsub.s32 1, %v902
        %v904 = vrot.slane %v597, %v903
        %v905 = vmul.f32 %v895, %v900
        %v906 = vmul.f32 %v895, %v904
        %v907 = vadd.f32 %v891, %v905
        %v908 = vadd.f32 %v892, %v906
        %909 = vset.pattern.permute.xlu0 17
        %910 = vperm.xlu0 %909, %v459
        %v911 = vpop.permute.xlu0 %910
        %v913 = vlaneseq
        %v914 = vshrl.u32 %v913, 7
        %v915 = vsub.s32 1, %v914
        %v916 = vrot.slane %v613, %v915
        %v917 = vlaneseq
        %v918 = vshrl.u32 %v917, 7
        %v919 = vsub.s32 1, %v918
        %v920 = vrot.slane %v614, %v919
        %v921 = vmul.f32 %v911, %v916
        %v922 = vmul.f32 %v911, %v920
        %v923 = vadd.f32 %v907, %v921
        %v924 = vadd.f32 %v908, %v922
        %925 = vset.pattern.permute.xlu0 18
        %926 = vperm.xlu0 %925, %v459
        %v927 = vpop.permute.xlu0 %926
        %v929 = vlaneseq
        %v930 = vshrl.u32 %v929, 7
        %v931 = vsub.s32 2, %v930
        %v932 = vrot.slane %v481, %v931
        %v933 = vlaneseq
        %v934 = vshrl.u32 %v933, 7
        %v935 = vsub.s32 2, %v934
        %v936 = vrot.slane %v482, %v935
        %v937 = vmul.f32 %v927, %v932
        %v938 = vmul.f32 %v927, %v936
        %v939 = vadd.f32 %v923, %v937
        %v940 = vadd.f32 %v924, %v938
        %941 = vset.pattern.permute.xlu0 19
        %942 = vperm.xlu0 %941, %v459
        %v943 = vpop.permute.xlu0 %942
        %v945 = vlaneseq
        %v946 = vshrl.u32 %v945, 7
        %v947 = vsub.s32 2, %v946
        %v948 = vrot.slane %v498, %v947
        %v949 = vlaneseq
        %v950 = vshrl.u32 %v949, 7
        %v951 = vsub.s32 2, %v950
        %v952 = vrot.slane %v499, %v951
        %v953 = vmul.f32 %v943, %v948
        %v954 = vmul.f32 %v943, %v952
        %v955 = vadd.f32 %v939, %v953
        %v956 = vadd.f32 %v940, %v954
        %957 = vset.pattern.permute.xlu0 20
        %958 = vperm.xlu0 %957, %v459
        %v959 = vpop.permute.xlu0 %958
        %v961 = vlaneseq
        %v962 = vshrl.u32 %v961, 7
        %v963 = vsub.s32 2, %v962
        %v964 = vrot.slane %v515, %v963
        %v965 = vlaneseq
        %v966 = vshrl.u32 %v965, 7
        %v967 = vsub.s32 2, %v966
        %v968 = vrot.slane %v516, %v967
        %v969 = vmul.f32 %v959, %v964
        %v970 = vmul.f32 %v959, %v968
        %v971 = vadd.f32 %v955, %v969
        %v972 = vadd.f32 %v956, %v970
        %973 = vset.pattern.permute.xlu0 21
        %974 = vperm.xlu0 %973, %v459
        %v975 = vpop.permute.xlu0 %974
        %v977 = vlaneseq
        %v978 = vshrl.u32 %v977, 7
        %v979 = vsub.s32 2, %v978
        %v980 = vrot.slane %v532, %v979
        %v981 = vlaneseq
        %v982 = vshrl.u32 %v981, 7
        %v983 = vsub.s32 2, %v982
        %v984 = vrot.slane %v533, %v983
        %v985 = vmul.f32 %v975, %v980
        %v986 = vmul.f32 %v975, %v984
        %v987 = vadd.f32 %v971, %v985
        %v988 = vadd.f32 %v972, %v986
        %989 = vset.pattern.permute.xlu0 22
        %990 = vperm.xlu0 %989, %v459
        %v991 = vpop.permute.xlu0 %990
        %v993 = vlaneseq
        %v994 = vshrl.u32 %v993, 7
        %v995 = vsub.s32 2, %v994
        %v996 = vrot.slane %v546, %v995
        %v997 = vlaneseq
        %v998 = vshrl.u32 %v997, 7
        %v999 = vsub.s32 6, %v998
        %v1000 = vrot.slane %v546, %v999
        %v1003 = vlaneseq
        %v1004 = vshrl.u32 %v1003, 7
        %v1005 = vsub.s32 2, %v1004
        %v1006 = vrot.slane %v996, %v1005
        %v1007 = vlaneseq
        %v1008 = vshrl.u32 %v1007, 7
        %v1009 = vsub.s32 2, %v1008
        %v1010 = vrot.slane %v1000, %v1009
        %v1011 = vmul.f32 %v991, %v1006
        %v1012 = vmul.f32 %v991, %v1010
        %v1013 = vadd.f32 %v987, %v1011
        %v1014 = vadd.f32 %v988, %v1012
        %1015 = vset.pattern.permute.xlu0 23
        %1016 = vperm.xlu0 %1015, %v459
        %v1017 = vpop.permute.xlu0 %1016
        %v1019 = vlaneseq
        %v1020 = vshrl.u32 %v1019, 7
        %v1021 = vsub.s32 2, %v1020
        %v1022 = vrot.slane %v562, %v1021
        %v1023 = vlaneseq
        %v1024 = vshrl.u32 %v1023, 7
        %v1025 = vsub.s32 2, %v1024
        %v1026 = vrot.slane %v563, %v1025
        %v1027 = vmul.f32 %v1017, %v1022
        %v1028 = vmul.f32 %v1017, %v1026
        %v1029 = vadd.f32 %v1013, %v1027
        %v1030 = vadd.f32 %v1014, %v1028
        %1031 = vset.pattern.permute.xlu0 24
        %1032 = vperm.xlu0 %1031, %v459
        %v1033 = vpop.permute.xlu0 %1032
        %v1035 = vlaneseq
        %v1036 = vshrl.u32 %v1035, 7
        %v1037 = vsub.s32 2, %v1036
        %v1038 = vrot.slane %v579, %v1037
        %v1039 = vlaneseq
        %v1040 = vshrl.u32 %v1039, 7
        %v1041 = vsub.s32 2, %v1040
        %v1042 = vrot.slane %v580, %v1041
        %v1043 = vmul.f32 %v1033, %v1038
        %v1044 = vmul.f32 %v1033, %v1042
        %v1045 = vadd.f32 %v1029, %v1043
        %v1046 = vadd.f32 %v1030, %v1044
        %1047 = vset.pattern.permute.xlu0 25
        %1048 = vperm.xlu0 %1047, %v459
        %v1049 = vpop.permute.xlu0 %1048
        %v1051 = vlaneseq
        %v1052 = vshrl.u32 %v1051, 7
        %v1053 = vsub.s32 2, %v1052
        %v1054 = vrot.slane %v596, %v1053
        %v1055 = vlaneseq
        %v1056 = vshrl.u32 %v1055, 7
        %v1057 = vsub.s32 2, %v1056
        %v1058 = vrot.slane %v597, %v1057
        %v1059 = vmul.f32 %v1049, %v1054
        %v1060 = vmul.f32 %v1049, %v1058
        %v1061 = vadd.f32 %v1045, %v1059
        %v1062 = vadd.f32 %v1046, %v1060
        %1063 = vset.pattern.permute.xlu0 26
        %1064 = vperm.xlu0 %1063, %v459
        %v1065 = vpop.permute.xlu0 %1064
        %v1067 = vlaneseq
        %v1068 = vshrl.u32 %v1067, 7
        %v1069 = vsub.s32 2, %v1068
        %v1070 = vrot.slane %v613, %v1069
        %v1071 = vlaneseq
        %v1072 = vshrl.u32 %v1071, 7
        %v1073 = vsub.s32 2, %v1072
        %v1074 = vrot.slane %v614, %v1073
        %v1075 = vmul.f32 %v1065, %v1070
        %v1076 = vmul.f32 %v1065, %v1074
        %v1077 = vadd.f32 %v1061, %v1075
        %v1078 = vadd.f32 %v1062, %v1076
        %1079 = vset.pattern.permute.xlu0 27
        %1080 = vperm.xlu0 %1079, %v459
        %v1081 = vpop.permute.xlu0 %1080
        %v1083 = vlaneseq
        %v1084 = vshrl.u32 %v1083, 7
        %v1085 = vsub.s32 3, %v1084
        %v1086 = vrot.slane %v481, %v1085
        %v1087 = vlaneseq
        %v1088 = vshrl.u32 %v1087, 7
        %v1089 = vsub.s32 3, %v1088
        %v1090 = vrot.slane %v482, %v1089
        %v1091 = vmul.f32 %v1081, %v1086
        %v1092 = vmul.f32 %v1081, %v1090
        %v1093 = vadd.f32 %v1077, %v1091
        %v1094 = vadd.f32 %v1078, %v1092
        %1095 = vset.pattern.permute.xlu0 28
        %1096 = vperm.xlu0 %1095, %v459
        %v1097 = vpop.permute.xlu0 %1096
        %v1099 = vlaneseq
        %v1100 = vshrl.u32 %v1099, 7
        %v1101 = vsub.s32 3, %v1100
        %v1102 = vrot.slane %v498, %v1101
        %v1103 = vlaneseq
        %v1104 = vshrl.u32 %v1103, 7
        %v1105 = vsub.s32 3, %v1104
        %v1106 = vrot.slane %v499, %v1105
        %v1107 = vmul.f32 %v1097, %v1102
        %v1108 = vmul.f32 %v1097, %v1106
        %v1109 = vadd.f32 %v1093, %v1107
        %v1110 = vadd.f32 %v1094, %v1108
        %1111 = vset.pattern.permute.xlu0 29
        %1112 = vperm.xlu0 %1111, %v459
        %v1113 = vpop.permute.xlu0 %1112
        %v1115 = vlaneseq
        %v1116 = vshrl.u32 %v1115, 7
        %v1117 = vsub.s32 3, %v1116
        %v1118 = vrot.slane %v515, %v1117
        %v1119 = vlaneseq
        %v1120 = vshrl.u32 %v1119, 7
        %v1121 = vsub.s32 3, %v1120
        %v1122 = vrot.slane %v516, %v1121
        %v1123 = vmul.f32 %v1113, %v1118
        %v1124 = vmul.f32 %v1113, %v1122
        %v1125 = vadd.f32 %v1109, %v1123
        %v1126 = vadd.f32 %v1110, %v1124
        %1127 = vset.pattern.permute.xlu0 30
        %1128 = vperm.xlu0 %1127, %v459
        %v1129 = vpop.permute.xlu0 %1128
        %v1131 = vlaneseq
        %v1132 = vshrl.u32 %v1131, 7
        %v1133 = vsub.s32 3, %v1132
        %v1134 = vrot.slane %v532, %v1133
        %v1135 = vlaneseq
        %v1136 = vshrl.u32 %v1135, 7
        %v1137 = vsub.s32 3, %v1136
        %v1138 = vrot.slane %v533, %v1137
        %v1139 = vmul.f32 %v1129, %v1134
        %v1140 = vmul.f32 %v1129, %v1138
        %v1141 = vadd.f32 %v1125, %v1139
        %v1142 = vadd.f32 %v1126, %v1140
        %1143 = vset.pattern.permute.xlu0 31
        %1144 = vperm.xlu0 %1143, %v459
        %v1145 = vpop.permute.xlu0 %1144
        %v1147 = vlaneseq
        %v1148 = vshrl.u32 %v1147, 7
        %v1149 = vsub.s32 3, %v1148
        %v1150 = vrot.slane %v546, %v1149
        %v1151 = vlaneseq
        %v1152 = vshrl.u32 %v1151, 7
        %v1153 = vsub.s32 7, %v1152
        %v1154 = vrot.slane %v546, %v1153
        %v1157 = vlaneseq
        %v1158 = vshrl.u32 %v1157, 7
        %v1159 = vsub.s32 3, %v1158
        %v1160 = vrot.slane %v1150, %v1159
        %v1161 = vlaneseq
        %v1162 = vshrl.u32 %v1161, 7
        %v1163 = vsub.s32 3, %v1162
        %v1164 = vrot.slane %v1154, %v1163
        %v1165 = vmul.f32 %v1145, %v1160
        %v1166 = vmul.f32 %v1145, %v1164
        %v1167 = vadd.f32 %v1141, %v1165
        %v1168 = vadd.f32 %v1142, %v1166
        %1169 = vset.pattern.permute.xlu0 32
        %1170 = vperm.xlu0 %1169, %v459
        %v1171 = vpop.permute.xlu0 %1170
        %v1173 = vlaneseq
        %v1174 = vshrl.u32 %v1173, 7
        %v1175 = vsub.s32 3, %v1174
        %v1176 = vrot.slane %v562, %v1175
        %v1177 = vlaneseq
        %v1178 = vshrl.u32 %v1177, 7
        %v1179 = vsub.s32 3, %v1178
        %v1180 = vrot.slane %v563, %v1179
        %v1181 = vmul.f32 %v1171, %v1176
        %v1182 = vmul.f32 %v1171, %v1180
        %v1183 = vadd.f32 %v1167, %v1181
        %v1184 = vadd.f32 %v1168, %v1182
        %1185 = vset.pattern.permute.xlu0 33
        %1186 = vperm.xlu0 %1185, %v459
        %v1187 = vpop.permute.xlu0 %1186
        %v1189 = vlaneseq
        %v1190 = vshrl.u32 %v1189, 7
        %v1191 = vsub.s32 3, %v1190
        %v1192 = vrot.slane %v579, %v1191
        %v1193 = vlaneseq
        %v1194 = vshrl.u32 %v1193, 7
        %v1195 = vsub.s32 3, %v1194
        %v1196 = vrot.slane %v580, %v1195
        %v1197 = vmul.f32 %v1187, %v1192
        %v1198 = vmul.f32 %v1187, %v1196
        %v1199 = vadd.f32 %v1183, %v1197
        %v1200 = vadd.f32 %v1184, %v1198
        %1201 = vset.pattern.permute.xlu0 34
        %1202 = vperm.xlu0 %1201, %v459
        %v1203 = vpop.permute.xlu0 %1202
        %v1205 = vlaneseq
        %v1206 = vshrl.u32 %v1205, 7
        %v1207 = vsub.s32 3, %v1206
        %v1208 = vrot.slane %v596, %v1207
        %v1209 = vlaneseq
        %v1210 = vshrl.u32 %v1209, 7
        %v1211 = vsub.s32 3, %v1210
        %v1212 = vrot.slane %v597, %v1211
        %v1213 = vmul.f32 %v1203, %v1208
        %v1214 = vmul.f32 %v1203, %v1212
        %v1215 = vadd.f32 %v1199, %v1213
        %v1216 = vadd.f32 %v1200, %v1214
        %1217 = vset.pattern.permute.xlu0 35
        %1218 = vperm.xlu0 %1217, %v459
        %v1219 = vpop.permute.xlu0 %1218
        %v1221 = vlaneseq
        %v1222 = vshrl.u32 %v1221, 7
        %v1223 = vsub.s32 3, %v1222
        %v1224 = vrot.slane %v613, %v1223
        %v1225 = vlaneseq
        %v1226 = vshrl.u32 %v1225, 7
        %v1227 = vsub.s32 3, %v1226
        %v1228 = vrot.slane %v614, %v1227
        %v1229 = vmul.f32 %v1219, %v1224
        %v1230 = vmul.f32 %v1219, %v1228
        %v1231 = vadd.f32 %v1215, %v1229
        %v1232 = vadd.f32 %v1216, %v1230
        %1234 = vset.pattern.permute.xlu0 0
        %1235 = vperm.xlu0 %1234, %v460
        %v1236 = vpop.permute.xlu0 %1235
        %v1238 = vadd.f32 %v1231, %v1236
        %v1239 = vadd.f32 %v1232, %v1236
        %v1240 = vmax.f32 %v1238, 0.0
        %v1241 = vmax.f32 %v1239, 0.0
        %v1242 = vld [vmem:[%s4] sm:$0xf]
        %v1243 = vld [vmem:[%s5] sm:$0xf]
        %1244 = vrot.lane.b32.xlu0 %v1240, 17
        %v1245 = vpop.permute.xlu0 %1244
        %1246 = vrot.lane.b32.xlu0 %v1241, 17
        %v1247 = vpop.permute.xlu0 %1246
        %v1248 = vsel %vm470, %v1245, %v1247
        %v1249 = vsel %vm470, %v1247, %v1245
        %v1250 = vmul.f32 %v1249, %v476
        %v1251 = vmul.f32 %v1248, %v480
        %1252 = vrot.lane.b32.xlu0 %v1240, 16
        %v1253 = vpop.permute.xlu0 %1252
        %1254 = vrot.lane.b32.xlu0 %v1241, 16
        %v1255 = vpop.permute.xlu0 %1254
        %v1256 = vsel %vm487, %v1253, %v1255
        %v1257 = vsel %vm487, %v1255, %v1253
        %v1258 = vmul.f32 %v1257, %v493
        %v1259 = vmul.f32 %v1256, %v497
        %1260 = vrot.lane.b32.xlu0 %v1240, 15
        %v1261 = vpop.permute.xlu0 %1260
        %1262 = vrot.lane.b32.xlu0 %v1241, 15
        %v1263 = vpop.permute.xlu0 %1262
        %v1264 = vsel %vm504, %v1261, %v1263
        %v1265 = vsel %vm504, %v1263, %v1261
        %v1266 = vmul.f32 %v1265, %v510
        %v1267 = vmul.f32 %v1264, %v514
        %1268 = vrot.lane.b32.xlu0 %v1240, 1
        %v1269 = vpop.permute.xlu0 %1268
        %1270 = vrot.lane.b32.xlu0 %v1241, 1
        %v1271 = vpop.permute.xlu0 %1270
        %v1272 = vsel %vm521, %v1269, %v1271
        %v1273 = vsel %vm521, %v1271, %v1269
        %v1274 = vmul.f32 %v1273, %v527
        %v1275 = vmul.f32 %v1272, %v531
        %v1276 = vmul.f32 %v1240, %v537
        %v1277 = vmul.f32 %v1241, %v541
        %1278 = vrot.lane.b32.xlu0 %v1240, 127
        %v1279 = vpop.permute.xlu0 %1278
        %1280 = vrot.lane.b32.xlu0 %v1241, 127
        %v1281 = vpop.permute.xlu0 %1280
        %v1282 = vsel %vm551, %v1279, %v1281
        %v1283 = vsel %vm551, %v1281, %v1279
        %v1284 = vmul.f32 %v1282, %v557
        %v1285 = vmul.f32 %v1283, %v561
        %1286 = vrot.lane.b32.xlu0 %v1240, 113
        %v1287 = vpop.permute.xlu0 %1286
        %1288 = vrot.lane.b32.xlu0 %v1241, 113
        %v1289 = vpop.permute.xlu0 %1288
        %v1290 = vsel %vm568, %v1287, %v1289
        %v1291 = vsel %vm568, %v1289, %v1287
        %v1292 = vmul.f32 %v1290, %v574
        %v1293 = vmul.f32 %v1291, %v578
        %1294 = vrot.lane.b32.xlu0 %v1240, 112
        %v1295 = vpop.permute.xlu0 %1294
        %1296 = vrot.lane.b32.xlu0 %v1241, 112
        %v1297 = vpop.permute.xlu0 %1296
        %v1298 = vsel %vm585, %v1295, %v1297
        %v1299 = vsel %vm585, %v1297, %v1295
        %v1300 = vmul.f32 %v1298, %v591
        %v1301 = vmul.f32 %v1299, %v595
        %1302 = vrot.lane.b32.xlu0 %v1240, 111
        %v1303 = vpop.permute.xlu0 %1302
        %1304 = vrot.lane.b32.xlu0 %v1241, 111
        %v1305 = vpop.permute.xlu0 %1304
        %v1306 = vsel %vm602, %v1303, %v1305
        %v1307 = vsel %vm602, %v1305, %v1303
        %v1308 = vmul.f32 %v1306, %v608
        %v1309 = vmul.f32 %v1307, %v612
        %1311 = vset.pattern.permute.xlu0 0
        %1312 = vperm.xlu0 %1311, %v1242
        %v1313 = vpop.permute.xlu0 %1312
        %v1315 = vlaneseq
        %v1316 = vshrl.u32 %v1315, 7
        %v1317 = vsub.s32 0, %v1316
        %v1318 = vrot.slane %v1250, %v1317
        %v1319 = vlaneseq
        %v1320 = vshrl.u32 %v1319, 7
        %v1321 = vsub.s32 0, %v1320
        %v1322 = vrot.slane %v1251, %v1321
        %v1323 = vmul.f32 %v1313, %v1318
        %v1324 = vmul.f32 %v1313, %v1322
        %v1325 = vadd.f32 %v1323, 0.0
        %v1326 = vadd.f32 %v1324, 0.0
        %1327 = vset.pattern.permute.xlu0 1
        %1328 = vperm.xlu0 %1327, %v1242
        %v1329 = vpop.permute.xlu0 %1328
        %v1331 = vlaneseq
        %v1332 = vshrl.u32 %v1331, 7
        %v1333 = vsub.s32 0, %v1332
        %v1334 = vrot.slane %v1258, %v1333
        %v1335 = vlaneseq
        %v1336 = vshrl.u32 %v1335, 7
        %v1337 = vsub.s32 0, %v1336
        %v1338 = vrot.slane %v1259, %v1337
        %v1339 = vmul.f32 %v1329, %v1334
        %v1340 = vmul.f32 %v1329, %v1338
        %v1341 = vadd.f32 %v1325, %v1339
        %v1342 = vadd.f32 %v1326, %v1340
        %1343 = vset.pattern.permute.xlu0 2
        %1344 = vperm.xlu0 %1343, %v1242
        %v1345 = vpop.permute.xlu0 %1344
        %v1347 = vlaneseq
        %v1348 = vshrl.u32 %v1347, 7
        %v1349 = vsub.s32 0, %v1348
        %v1350 = vrot.slane %v1266, %v1349
        %v1351 = vlaneseq
        %v1352 = vshrl.u32 %v1351, 7
        %v1353 = vsub.s32 0, %v1352
        %v1354 = vrot.slane %v1267, %v1353
        %v1355 = vmul.f32 %v1345, %v1350
        %v1356 = vmul.f32 %v1345, %v1354
        %v1357 = vadd.f32 %v1341, %v1355
        %v1358 = vadd.f32 %v1342, %v1356
        %1359 = vset.pattern.permute.xlu0 3
        %1360 = vperm.xlu0 %1359, %v1242
        %v1361 = vpop.permute.xlu0 %1360
        %v1363 = vlaneseq
        %v1364 = vshrl.u32 %v1363, 7
        %v1365 = vsub.s32 0, %v1364
        %v1366 = vrot.slane %v1274, %v1365
        %v1367 = vlaneseq
        %v1368 = vshrl.u32 %v1367, 7
        %v1369 = vsub.s32 0, %v1368
        %v1370 = vrot.slane %v1275, %v1369
        %v1371 = vmul.f32 %v1361, %v1366
        %v1372 = vmul.f32 %v1361, %v1370
        %v1373 = vadd.f32 %v1357, %v1371
        %v1374 = vadd.f32 %v1358, %v1372
        %1375 = vset.pattern.permute.xlu0 4
        %1376 = vperm.xlu0 %1375, %v1242
        %v1377 = vpop.permute.xlu0 %1376
        %v1379 = vlaneseq
        %v1380 = vshrl.u32 %v1379, 7
        %v1381 = vsub.s32 0, %v1380
        %v1382 = vrot.slane %v1276, %v1381
        %v1383 = vlaneseq
        %v1384 = vshrl.u32 %v1383, 7
        %v1385 = vsub.s32 0, %v1384
        %v1386 = vrot.slane %v1277, %v1385
        %v1387 = vmul.f32 %v1377, %v1382
        %v1388 = vmul.f32 %v1377, %v1386
        %v1389 = vadd.f32 %v1373, %v1387
        %v1390 = vadd.f32 %v1374, %v1388
        %1391 = vset.pattern.permute.xlu0 5
        %1392 = vperm.xlu0 %1391, %v1242
        %v1393 = vpop.permute.xlu0 %1392
        %v1395 = vlaneseq
        %v1396 = vshrl.u32 %v1395, 7
        %v1397 = vsub.s32 0, %v1396
        %v1398 = vrot.slane %v1284, %v1397
        %v1399 = vlaneseq
        %v1400 = vshrl.u32 %v1399, 7
        %v1401 = vsub.s32 0, %v1400
        %v1402 = vrot.slane %v1285, %v1401
        %v1403 = vmul.f32 %v1393, %v1398
        %v1404 = vmul.f32 %v1393, %v1402
        %v1405 = vadd.f32 %v1389, %v1403
        %v1406 = vadd.f32 %v1390, %v1404
        %1407 = vset.pattern.permute.xlu0 6
        %1408 = vperm.xlu0 %1407, %v1242
        %v1409 = vpop.permute.xlu0 %1408
        %v1411 = vlaneseq
        %v1412 = vshrl.u32 %v1411, 7
        %v1413 = vsub.s32 0, %v1412
        %v1414 = vrot.slane %v1292, %v1413
        %v1415 = vlaneseq
        %v1416 = vshrl.u32 %v1415, 7
        %v1417 = vsub.s32 0, %v1416
        %v1418 = vrot.slane %v1293, %v1417
        %v1419 = vmul.f32 %v1409, %v1414
        %v1420 = vmul.f32 %v1409, %v1418
        %v1421 = vadd.f32 %v1405, %v1419
        %v1422 = vadd.f32 %v1406, %v1420
        %1423 = vset.pattern.permute.xlu0 7
        %1424 = vperm.xlu0 %1423, %v1242
        %v1425 = vpop.permute.xlu0 %1424
        %v1427 = vlaneseq
        %v1428 = vshrl.u32 %v1427, 7
        %v1429 = vsub.s32 0, %v1428
        %v1430 = vrot.slane %v1300, %v1429
        %v1431 = vlaneseq
        %v1432 = vshrl.u32 %v1431, 7
        %v1433 = vsub.s32 0, %v1432
        %v1434 = vrot.slane %v1301, %v1433
        %v1435 = vmul.f32 %v1425, %v1430
        %v1436 = vmul.f32 %v1425, %v1434
        %v1437 = vadd.f32 %v1421, %v1435
        %v1438 = vadd.f32 %v1422, %v1436
        %1439 = vset.pattern.permute.xlu0 8
        %1440 = vperm.xlu0 %1439, %v1242
        %v1441 = vpop.permute.xlu0 %1440
        %v1443 = vlaneseq
        %v1444 = vshrl.u32 %v1443, 7
        %v1445 = vsub.s32 0, %v1444
        %v1446 = vrot.slane %v1308, %v1445
        %v1447 = vlaneseq
        %v1448 = vshrl.u32 %v1447, 7
        %v1449 = vsub.s32 0, %v1448
        %v1450 = vrot.slane %v1309, %v1449
        %v1451 = vmul.f32 %v1441, %v1446
        %v1452 = vmul.f32 %v1441, %v1450
        %v1453 = vadd.f32 %v1437, %v1451
        %v1454 = vadd.f32 %v1438, %v1452
        %1455 = vset.pattern.permute.xlu0 9
        %1456 = vperm.xlu0 %1455, %v1242
        %v1457 = vpop.permute.xlu0 %1456
        %v1459 = vlaneseq
        %v1460 = vshrl.u32 %v1459, 7
        %v1461 = vsub.s32 1, %v1460
        %v1462 = vrot.slane %v1250, %v1461
        %v1463 = vlaneseq
        %v1464 = vshrl.u32 %v1463, 7
        %v1465 = vsub.s32 1, %v1464
        %v1466 = vrot.slane %v1251, %v1465
        %v1467 = vmul.f32 %v1457, %v1462
        %v1468 = vmul.f32 %v1457, %v1466
        %v1469 = vadd.f32 %v1453, %v1467
        %v1470 = vadd.f32 %v1454, %v1468
        %1471 = vset.pattern.permute.xlu0 10
        %1472 = vperm.xlu0 %1471, %v1242
        %v1473 = vpop.permute.xlu0 %1472
        %v1475 = vlaneseq
        %v1476 = vshrl.u32 %v1475, 7
        %v1477 = vsub.s32 1, %v1476
        %v1478 = vrot.slane %v1258, %v1477
        %v1479 = vlaneseq
        %v1480 = vshrl.u32 %v1479, 7
        %v1481 = vsub.s32 1, %v1480
        %v1482 = vrot.slane %v1259, %v1481
        %v1483 = vmul.f32 %v1473, %v1478
        %v1484 = vmul.f32 %v1473, %v1482
        %v1485 = vadd.f32 %v1469, %v1483
        %v1486 = vadd.f32 %v1470, %v1484
        %1487 = vset.pattern.permute.xlu0 11
        %1488 = vperm.xlu0 %1487, %v1242
        %v1489 = vpop.permute.xlu0 %1488
        %v1491 = vlaneseq
        %v1492 = vshrl.u32 %v1491, 7
        %v1493 = vsub.s32 1, %v1492
        %v1494 = vrot.slane %v1266, %v1493
        %v1495 = vlaneseq
        %v1496 = vshrl.u32 %v1495, 7
        %v1497 = vsub.s32 1, %v1496
        %v1498 = vrot.slane %v1267, %v1497
        %v1499 = vmul.f32 %v1489, %v1494
        %v1500 = vmul.f32 %v1489, %v1498
        %v1501 = vadd.f32 %v1485, %v1499
        %v1502 = vadd.f32 %v1486, %v1500
        %1503 = vset.pattern.permute.xlu0 12
        %1504 = vperm.xlu0 %1503, %v1242
        %v1505 = vpop.permute.xlu0 %1504
        %v1507 = vlaneseq
        %v1508 = vshrl.u32 %v1507, 7
        %v1509 = vsub.s32 1, %v1508
        %v1510 = vrot.slane %v1274, %v1509
        %v1511 = vlaneseq
        %v1512 = vshrl.u32 %v1511, 7
        %v1513 = vsub.s32 1, %v1512
        %v1514 = vrot.slane %v1275, %v1513
        %v1515 = vmul.f32 %v1505, %v1510
        %v1516 = vmul.f32 %v1505, %v1514
        %v1517 = vadd.f32 %v1501, %v1515
        %v1518 = vadd.f32 %v1502, %v1516
        %1519 = vset.pattern.permute.xlu0 13
        %1520 = vperm.xlu0 %1519, %v1242
        %v1521 = vpop.permute.xlu0 %1520
        %v1523 = vlaneseq
        %v1524 = vshrl.u32 %v1523, 7
        %v1525 = vsub.s32 1, %v1524
        %v1526 = vrot.slane %v1276, %v1525
        %v1527 = vlaneseq
        %v1528 = vshrl.u32 %v1527, 7
        %v1529 = vsub.s32 1, %v1528
        %v1530 = vrot.slane %v1277, %v1529
        %v1531 = vmul.f32 %v1521, %v1526
        %v1532 = vmul.f32 %v1521, %v1530
        %v1533 = vadd.f32 %v1517, %v1531
        %v1534 = vadd.f32 %v1518, %v1532
        %1535 = vset.pattern.permute.xlu0 14
        %1536 = vperm.xlu0 %1535, %v1242
        %v1537 = vpop.permute.xlu0 %1536
        %v1539 = vlaneseq
        %v1540 = vshrl.u32 %v1539, 7
        %v1541 = vsub.s32 1, %v1540
        %v1542 = vrot.slane %v1284, %v1541
        %v1543 = vlaneseq
        %v1544 = vshrl.u32 %v1543, 7
        %v1545 = vsub.s32 1, %v1544
        %v1546 = vrot.slane %v1285, %v1545
        %v1547 = vmul.f32 %v1537, %v1542
        %v1548 = vmul.f32 %v1537, %v1546
        %v1549 = vadd.f32 %v1533, %v1547
        %v1550 = vadd.f32 %v1534, %v1548
        %1551 = vset.pattern.permute.xlu0 15
        %1552 = vperm.xlu0 %1551, %v1242
        %v1553 = vpop.permute.xlu0 %1552
        %v1555 = vlaneseq
        %v1556 = vshrl.u32 %v1555, 7
        %v1557 = vsub.s32 1, %v1556
        %v1558 = vrot.slane %v1292, %v1557
        %v1559 = vlaneseq
        %v1560 = vshrl.u32 %v1559, 7
        %v1561 = vsub.s32 1, %v1560
        %v1562 = vrot.slane %v1293, %v1561
        %v1563 = vmul.f32 %v1553, %v1558
        %v1564 = vmul.f32 %v1553, %v1562
        %v1565 = vadd.f32 %v1549, %v1563
        %v1566 = vadd.f32 %v1550, %v1564
        %1567 = vset.pattern.permute.xlu0 16
        %1568 = vperm.xlu0 %1567, %v1242
        %v1569 = vpop.permute.xlu0 %1568
        %v1571 = vlaneseq
        %v1572 = vshrl.u32 %v1571, 7
        %v1573 = vsub.s32 1, %v1572
        %v1574 = vrot.slane %v1300, %v1573
        %v1575 = vlaneseq
        %v1576 = vshrl.u32 %v1575, 7
        %v1577 = vsub.s32 1, %v1576
        %v1578 = vrot.slane %v1301, %v1577
        %v1579 = vmul.f32 %v1569, %v1574
        %v1580 = vmul.f32 %v1569, %v1578
        %v1581 = vadd.f32 %v1565, %v1579
        %v1582 = vadd.f32 %v1566, %v1580
        %1583 = vset.pattern.permute.xlu0 17
        %1584 = vperm.xlu0 %1583, %v1242
        %v1585 = vpop.permute.xlu0 %1584
        %v1587 = vlaneseq
        %v1588 = vshrl.u32 %v1587, 7
        %v1589 = vsub.s32 1, %v1588
        %v1590 = vrot.slane %v1308, %v1589
        %v1591 = vlaneseq
        %v1592 = vshrl.u32 %v1591, 7
        %v1593 = vsub.s32 1, %v1592
        %v1594 = vrot.slane %v1309, %v1593
        %v1595 = vmul.f32 %v1585, %v1590
        %v1596 = vmul.f32 %v1585, %v1594
        %v1597 = vadd.f32 %v1581, %v1595
        %v1598 = vadd.f32 %v1582, %v1596
        %1599 = vset.pattern.permute.xlu0 18
        %1600 = vperm.xlu0 %1599, %v1242
        %v1601 = vpop.permute.xlu0 %1600
        %v1603 = vlaneseq
        %v1604 = vshrl.u32 %v1603, 7
        %v1605 = vsub.s32 2, %v1604
        %v1606 = vrot.slane %v1250, %v1605
        %v1607 = vlaneseq
        %v1608 = vshrl.u32 %v1607, 7
        %v1609 = vsub.s32 2, %v1608
        %v1610 = vrot.slane %v1251, %v1609
        %v1611 = vmul.f32 %v1601, %v1606
        %v1612 = vmul.f32 %v1601, %v1610
        %v1613 = vadd.f32 %v1597, %v1611
        %v1614 = vadd.f32 %v1598, %v1612
        %1615 = vset.pattern.permute.xlu0 19
        %1616 = vperm.xlu0 %1615, %v1242
        %v1617 = vpop.permute.xlu0 %1616
        %v1619 = vlaneseq
        %v1620 = vshrl.u32 %v1619, 7
        %v1621 = vsub.s32 2, %v1620
        %v1622 = vrot.slane %v1258, %v1621
        %v1623 = vlaneseq
        %v1624 = vshrl.u32 %v1623, 7
        %v1625 = vsub.s32 2, %v1624
        %v1626 = vrot.slane %v1259, %v1625
        %v1627 = vmul.f32 %v1617, %v1622
        %v1628 = vmul.f32 %v1617, %v1626
        %v1629 = vadd.f32 %v1613, %v1627
        %v1630 = vadd.f32 %v1614, %v1628
        %1631 = vset.pattern.permute.xlu0 20
        %1632 = vperm.xlu0 %1631, %v1242
        %v1633 = vpop.permute.xlu0 %1632
        %v1635 = vlaneseq
        %v1636 = vshrl.u32 %v1635, 7
        %v1637 = vsub.s32 2, %v1636
        %v1638 = vrot.slane %v1266, %v1637
        %v1639 = vlaneseq
        %v1640 = vshrl.u32 %v1639, 7
        %v1641 = vsub.s32 2, %v1640
        %v1642 = vrot.slane %v1267, %v1641
        %v1643 = vmul.f32 %v1633, %v1638
        %v1644 = vmul.f32 %v1633, %v1642
        %v1645 = vadd.f32 %v1629, %v1643
        %v1646 = vadd.f32 %v1630, %v1644
        %1647 = vset.pattern.permute.xlu0 21
        %1648 = vperm.xlu0 %1647, %v1242
        %v1649 = vpop.permute.xlu0 %1648
        %v1651 = vlaneseq
        %v1652 = vshrl.u32 %v1651, 7
        %v1653 = vsub.s32 2, %v1652
        %v1654 = vrot.slane %v1274, %v1653
        %v1655 = vlaneseq
        %v1656 = vshrl.u32 %v1655, 7
        %v1657 = vsub.s32 2, %v1656
        %v1658 = vrot.slane %v1275, %v1657
        %v1659 = vmul.f32 %v1649, %v1654
        %v1660 = vmul.f32 %v1649, %v1658
        %v1661 = vadd.f32 %v1645, %v1659
        %v1662 = vadd.f32 %v1646, %v1660
        %1663 = vset.pattern.permute.xlu0 22
        %1664 = vperm.xlu0 %1663, %v1242
        %v1665 = vpop.permute.xlu0 %1664
        %v1667 = vlaneseq
        %v1668 = vshrl.u32 %v1667, 7
        %v1669 = vsub.s32 2, %v1668
        %v1670 = vrot.slane %v1276, %v1669
        %v1671 = vlaneseq
        %v1672 = vshrl.u32 %v1671, 7
        %v1673 = vsub.s32 2, %v1672
        %v1674 = vrot.slane %v1277, %v1673
        %v1675 = vmul.f32 %v1665, %v1670
        %v1676 = vmul.f32 %v1665, %v1674
        %v1677 = vadd.f32 %v1661, %v1675
        %v1678 = vadd.f32 %v1662, %v1676
        %1679 = vset.pattern.permute.xlu0 23
        %1680 = vperm.xlu0 %1679, %v1242
        %v1681 = vpop.permute.xlu0 %1680
        %v1683 = vlaneseq
        %v1684 = vshrl.u32 %v1683, 7
        %v1685 = vsub.s32 2, %v1684
        %v1686 = vrot.slane %v1284, %v1685
        %v1687 = vlaneseq
        %v1688 = vshrl.u32 %v1687, 7
        %v1689 = vsub.s32 2, %v1688
        %v1690 = vrot.slane %v1285, %v1689
        %v1691 = vmul.f32 %v1681, %v1686
        %v1692 = vmul.f32 %v1681, %v1690
        %v1693 = vadd.f32 %v1677, %v1691
        %v1694 = vadd.f32 %v1678, %v1692
        %1695 = vset.pattern.permute.xlu0 24
        %1696 = vperm.xlu0 %1695, %v1242
        %v1697 = vpop.permute.xlu0 %1696
        %v1699 = vlaneseq
        %v1700 = vshrl.u32 %v1699, 7
        %v1701 = vsub.s32 2, %v1700
        %v1702 = vrot.slane %v1292, %v1701
        %v1703 = vlaneseq
        %v1704 = vshrl.u32 %v1703, 7
        %v1705 = vsub.s32 2, %v1704
        %v1706 = vrot.slane %v1293, %v1705
        %v1707 = vmul.f32 %v1697, %v1702
        %v1708 = vmul.f32 %v1697, %v1706
        %v1709 = vadd.f32 %v1693, %v1707
        %v1710 = vadd.f32 %v1694, %v1708
        %1711 = vset.pattern.permute.xlu0 25
        %1712 = vperm.xlu0 %1711, %v1242
        %v1713 = vpop.permute.xlu0 %1712
        %v1715 = vlaneseq
        %v1716 = vshrl.u32 %v1715, 7
        %v1717 = vsub.s32 2, %v1716
        %v1718 = vrot.slane %v1300, %v1717
        %v1719 = vlaneseq
        %v1720 = vshrl.u32 %v1719, 7
        %v1721 = vsub.s32 2, %v1720
        %v1722 = vrot.slane %v1301, %v1721
        %v1723 = vmul.f32 %v1713, %v1718
        %v1724 = vmul.f32 %v1713, %v1722
        %v1725 = vadd.f32 %v1709, %v1723
        %v1726 = vadd.f32 %v1710, %v1724
        %1727 = vset.pattern.permute.xlu0 26
        %1728 = vperm.xlu0 %1727, %v1242
        %v1729 = vpop.permute.xlu0 %1728
        %v1731 = vlaneseq
        %v1732 = vshrl.u32 %v1731, 7
        %v1733 = vsub.s32 2, %v1732
        %v1734 = vrot.slane %v1308, %v1733
        %v1735 = vlaneseq
        %v1736 = vshrl.u32 %v1735, 7
        %v1737 = vsub.s32 2, %v1736
        %v1738 = vrot.slane %v1309, %v1737
        %v1739 = vmul.f32 %v1729, %v1734
        %v1740 = vmul.f32 %v1729, %v1738
        %v1741 = vadd.f32 %v1725, %v1739
        %v1742 = vadd.f32 %v1726, %v1740
        %1743 = vset.pattern.permute.xlu0 27
        %1744 = vperm.xlu0 %1743, %v1242
        %v1745 = vpop.permute.xlu0 %1744
        %v1747 = vlaneseq
        %v1748 = vshrl.u32 %v1747, 7
        %v1749 = vsub.s32 3, %v1748
        %v1750 = vrot.slane %v1250, %v1749
        %v1751 = vlaneseq
        %v1752 = vshrl.u32 %v1751, 7
        %v1753 = vsub.s32 3, %v1752
        %v1754 = vrot.slane %v1251, %v1753
        %v1755 = vmul.f32 %v1745, %v1750
        %v1756 = vmul.f32 %v1745, %v1754
        %v1757 = vadd.f32 %v1741, %v1755
        %v1758 = vadd.f32 %v1742, %v1756
        %1759 = vset.pattern.permute.xlu0 28
        %1760 = vperm.xlu0 %1759, %v1242
        %v1761 = vpop.permute.xlu0 %1760
        %v1763 = vlaneseq
        %v1764 = vshrl.u32 %v1763, 7
        %v1765 = vsub.s32 3, %v1764
        %v1766 = vrot.slane %v1258, %v1765
        %v1767 = vlaneseq
        %v1768 = vshrl.u32 %v1767, 7
        %v1769 = vsub.s32 3, %v1768
        %v1770 = vrot.slane %v1259, %v1769
        %v1771 = vmul.f32 %v1761, %v1766
        %v1772 = vmul.f32 %v1761, %v1770
        %v1773 = vadd.f32 %v1757, %v1771
        %v1774 = vadd.f32 %v1758, %v1772
        %1775 = vset.pattern.permute.xlu0 29
        %1776 = vperm.xlu0 %1775, %v1242
        %v1777 = vpop.permute.xlu0 %1776
        %v1779 = vlaneseq
        %v1780 = vshrl.u32 %v1779, 7
        %v1781 = vsub.s32 3, %v1780
        %v1782 = vrot.slane %v1266, %v1781
        %v1783 = vlaneseq
        %v1784 = vshrl.u32 %v1783, 7
        %v1785 = vsub.s32 3, %v1784
        %v1786 = vrot.slane %v1267, %v1785
        %v1787 = vmul.f32 %v1777, %v1782
        %v1788 = vmul.f32 %v1777, %v1786
        %v1789 = vadd.f32 %v1773, %v1787
        %v1790 = vadd.f32 %v1774, %v1788
        %1791 = vset.pattern.permute.xlu0 30
        %1792 = vperm.xlu0 %1791, %v1242
        %v1793 = vpop.permute.xlu0 %1792
        %v1795 = vlaneseq
        %v1796 = vshrl.u32 %v1795, 7
        %v1797 = vsub.s32 3, %v1796
        %v1798 = vrot.slane %v1274, %v1797
        %v1799 = vlaneseq
        %v1800 = vshrl.u32 %v1799, 7
        %v1801 = vsub.s32 3, %v1800
        %v1802 = vrot.slane %v1275, %v1801
        %v1803 = vmul.f32 %v1793, %v1798
        %v1804 = vmul.f32 %v1793, %v1802
        %v1805 = vadd.f32 %v1789, %v1803
        %v1806 = vadd.f32 %v1790, %v1804
        %1807 = vset.pattern.permute.xlu0 31
        %1808 = vperm.xlu0 %1807, %v1242
        %v1809 = vpop.permute.xlu0 %1808
        %v1811 = vlaneseq
        %v1812 = vshrl.u32 %v1811, 7
        %v1813 = vsub.s32 3, %v1812
        %v1814 = vrot.slane %v1276, %v1813
        %v1815 = vlaneseq
        %v1816 = vshrl.u32 %v1815, 7
        %v1817 = vsub.s32 3, %v1816
        %v1818 = vrot.slane %v1277, %v1817
        %v1819 = vmul.f32 %v1809, %v1814
        %v1820 = vmul.f32 %v1809, %v1818
        %v1821 = vadd.f32 %v1805, %v1819
        %v1822 = vadd.f32 %v1806, %v1820
        %1823 = vset.pattern.permute.xlu0 32
        %1824 = vperm.xlu0 %1823, %v1242
        %v1825 = vpop.permute.xlu0 %1824
        %v1827 = vlaneseq
        %v1828 = vshrl.u32 %v1827, 7
        %v1829 = vsub.s32 3, %v1828
        %v1830 = vrot.slane %v1284, %v1829
        %v1831 = vlaneseq
        %v1832 = vshrl.u32 %v1831, 7
        %v1833 = vsub.s32 3, %v1832
        %v1834 = vrot.slane %v1285, %v1833
        %v1835 = vmul.f32 %v1825, %v1830
        %v1836 = vmul.f32 %v1825, %v1834
        %v1837 = vadd.f32 %v1821, %v1835
        %v1838 = vadd.f32 %v1822, %v1836
        %1839 = vset.pattern.permute.xlu0 33
        %1840 = vperm.xlu0 %1839, %v1242
        %v1841 = vpop.permute.xlu0 %1840
        %v1843 = vlaneseq
        %v1844 = vshrl.u32 %v1843, 7
        %v1845 = vsub.s32 3, %v1844
        %v1846 = vrot.slane %v1292, %v1845
        %v1847 = vlaneseq
        %v1848 = vshrl.u32 %v1847, 7
        %v1849 = vsub.s32 3, %v1848
        %v1850 = vrot.slane %v1293, %v1849
        %v1851 = vmul.f32 %v1841, %v1846
        %v1852 = vmul.f32 %v1841, %v1850
        %v1853 = vadd.f32 %v1837, %v1851
        %v1854 = vadd.f32 %v1838, %v1852
        %1855 = vset.pattern.permute.xlu0 34
        %1856 = vperm.xlu0 %1855, %v1242
        %v1857 = vpop.permute.xlu0 %1856
        %v1859 = vlaneseq
        %v1860 = vshrl.u32 %v1859, 7
        %v1861 = vsub.s32 3, %v1860
        %v1862 = vrot.slane %v1300, %v1861
        %v1863 = vlaneseq
        %v1864 = vshrl.u32 %v1863, 7
        %v1865 = vsub.s32 3, %v1864
        %v1866 = vrot.slane %v1301, %v1865
        %v1867 = vmul.f32 %v1857, %v1862
        %v1868 = vmul.f32 %v1857, %v1866
        %v1869 = vadd.f32 %v1853, %v1867
        %v1870 = vadd.f32 %v1854, %v1868
        %1871 = vset.pattern.permute.xlu0 35
        %1872 = vperm.xlu0 %1871, %v1242
        %v1873 = vpop.permute.xlu0 %1872
        %v1875 = vlaneseq
        %v1876 = vshrl.u32 %v1875, 7
        %v1877 = vsub.s32 3, %v1876
        %v1878 = vrot.slane %v1308, %v1877
        %v1879 = vlaneseq
        %v1880 = vshrl.u32 %v1879, 7
        %v1881 = vsub.s32 3, %v1880
        %v1882 = vrot.slane %v1309, %v1881
        %v1883 = vmul.f32 %v1873, %v1878
        %v1884 = vmul.f32 %v1873, %v1882
        %v1885 = vadd.f32 %v1869, %v1883
        %v1886 = vadd.f32 %v1870, %v1884
        %1888 = vset.pattern.permute.xlu0 0
        %1889 = vperm.xlu0 %1888, %v1243
        %v1890 = vpop.permute.xlu0 %1889
        %v1892 = vadd.f32 %v1885, %v1890
        %v1893 = vadd.f32 %v1886, %v1890
        %v1894 = vadd.f32 %v1892, %v454
        %v1895 = vadd.f32 %v1893, %v462
        %v1896 = vld [vmem:[%s6] sm:$0xf]
        %v1897 = vld [vmem:[%s7] sm:$0xf]
        %1898 = vrot.lane.b32.xlu0 %v1894, 17
        %v1899 = vpop.permute.xlu0 %1898
        %1900 = vrot.lane.b32.xlu0 %v1895, 17
        %v1901 = vpop.permute.xlu0 %1900
        %v1902 = vsel %vm470, %v1899, %v1901
        %v1903 = vsel %vm470, %v1901, %v1899
        %v1904 = vmul.f32 %v1903, %v476
        %v1905 = vmul.f32 %v1902, %v480
        %1906 = vrot.lane.b32.xlu0 %v1894, 16
        %v1907 = vpop.permute.xlu0 %1906
        %1908 = vrot.lane.b32.xlu0 %v1895, 16
        %v1909 = vpop.permute.xlu0 %1908
        %v1910 = vsel %vm487, %v1907, %v1909
        %v1911 = vsel %vm487, %v1909, %v1907
        %v1912 = vmul.f32 %v1911, %v493
        %v1913 = vmul.f32 %v1910, %v497
        %1914 = vrot.lane.b32.xlu0 %v1894, 15
        %v1915 = vpop.permute.xlu0 %1914
        %1916 = vrot.lane.b32.xlu0 %v1895, 15
        %v1917 = vpop.permute.xlu0 %1916
        %v1918 = vsel %vm504, %v1915, %v1917
        %v1919 = vsel %vm504, %v1917, %v1915
        %v1920 = vmul.f32 %v1919, %v510
        %v1921 = vmul.f32 %v1918, %v514
        %1922 = vrot.lane.b32.xlu0 %v1894, 1
        %v1923 = vpop.permute.xlu0 %1922
        %1924 = vrot.lane.b32.xlu0 %v1895, 1
        %v1925 = vpop.permute.xlu0 %1924
        %v1926 = vsel %vm521, %v1923, %v1925
        %v1927 = vsel %vm521, %v1925, %v1923
        %v1928 = vmul.f32 %v1927, %v527
        %v1929 = vmul.f32 %v1926, %v531
        %v1930 = vmul.f32 %v1894, %v537
        %v1931 = vmul.f32 %v1895, %v541
        %1932 = vrot.lane.b32.xlu0 %v1894, 127
        %v1933 = vpop.permute.xlu0 %1932
        %1934 = vrot.lane.b32.xlu0 %v1895, 127
        %v1935 = vpop.permute.xlu0 %1934
        %v1936 = vsel %vm551, %v1933, %v1935
        %v1937 = vsel %vm551, %v1935, %v1933
        %v1938 = vmul.f32 %v1936, %v557
        %v1939 = vmul.f32 %v1937, %v561
        %1940 = vrot.lane.b32.xlu0 %v1894, 113
        %v1941 = vpop.permute.xlu0 %1940
        %1942 = vrot.lane.b32.xlu0 %v1895, 113
        %v1943 = vpop.permute.xlu0 %1942
        %v1944 = vsel %vm568, %v1941, %v1943
        %v1945 = vsel %vm568, %v1943, %v1941
        %v1946 = vmul.f32 %v1944, %v574
        %v1947 = vmul.f32 %v1945, %v578
        %1948 = vrot.lane.b32.xlu0 %v1894, 112
        %v1949 = vpop.permute.xlu0 %1948
        %1950 = vrot.lane.b32.xlu0 %v1895, 112
        %v1951 = vpop.permute.xlu0 %1950
        %v1952 = vsel %vm585, %v1949, %v1951
        %v1953 = vsel %vm585, %v1951, %v1949
        %v1954 = vmul.f32 %v1952, %v591
        %v1955 = vmul.f32 %v1953, %v595
        %1956 = vrot.lane.b32.xlu0 %v1894, 111
        %v1957 = vpop.permute.xlu0 %1956
        %1958 = vrot.lane.b32.xlu0 %v1895, 111
        %v1959 = vpop.permute.xlu0 %1958
        %v1960 = vsel %vm602, %v1957, %v1959
        %v1961 = vsel %vm602, %v1959, %v1957
        %v1962 = vmul.f32 %v1960, %v608
        %v1963 = vmul.f32 %v1961, %v612
        %1965 = vset.pattern.permute.xlu0 0
        %1966 = vperm.xlu0 %1965, %v1896
        %v1967 = vpop.permute.xlu0 %1966
        %v1969 = vlaneseq
        %v1970 = vshrl.u32 %v1969, 7
        %v1971 = vsub.s32 0, %v1970
        %v1972 = vrot.slane %v1904, %v1971
        %v1973 = vlaneseq
        %v1974 = vshrl.u32 %v1973, 7
        %v1975 = vsub.s32 0, %v1974
        %v1976 = vrot.slane %v1905, %v1975
        %v1977 = vmul.f32 %v1967, %v1972
        %v1978 = vmul.f32 %v1967, %v1976
        %v1979 = vadd.f32 %v1977, 0.0
        %v1980 = vadd.f32 %v1978, 0.0
        %1981 = vset.pattern.permute.xlu0 1
        %1982 = vperm.xlu0 %1981, %v1896
        %v1983 = vpop.permute.xlu0 %1982
        %v1985 = vlaneseq
        %v1986 = vshrl.u32 %v1985, 7
        %v1987 = vsub.s32 0, %v1986
        %v1988 = vrot.slane %v1912, %v1987
        %v1989 = vlaneseq
        %v1990 = vshrl.u32 %v1989, 7
        %v1991 = vsub.s32 0, %v1990
        %v1992 = vrot.slane %v1913, %v1991
        %v1993 = vmul.f32 %v1983, %v1988
        %v1994 = vmul.f32 %v1983, %v1992
        %v1995 = vadd.f32 %v1979, %v1993
        %v1996 = vadd.f32 %v1980, %v1994
        %1997 = vset.pattern.permute.xlu0 2
        %1998 = vperm.xlu0 %1997, %v1896
        %v1999 = vpop.permute.xlu0 %1998
        %v2001 = vlaneseq
        %v2002 = vshrl.u32 %v2001, 7
        %v2003 = vsub.s32 0, %v2002
        %v2004 = vrot.slane %v1920, %v2003
        %v2005 = vlaneseq
        %v2006 = vshrl.u32 %v2005, 7
        %v2007 = vsub.s32 0, %v2006
        %v2008 = vrot.slane %v1921, %v2007
        %v2009 = vmul.f32 %v1999, %v2004
        %v2010 = vmul.f32 %v1999, %v2008
        %v2011 = vadd.f32 %v1995, %v2009
        %v2012 = vadd.f32 %v1996, %v2010
        %2013 = vset.pattern.permute.xlu0 3
        %2014 = vperm.xlu0 %2013, %v1896
        %v2015 = vpop.permute.xlu0 %2014
        %v2017 = vlaneseq
        %v2018 = vshrl.u32 %v2017, 7
        %v2019 = vsub.s32 0, %v2018
        %v2020 = vrot.slane %v1928, %v2019
        %v2021 = vlaneseq
        %v2022 = vshrl.u32 %v2021, 7
        %v2023 = vsub.s32 0, %v2022
        %v2024 = vrot.slane %v1929, %v2023
        %v2025 = vmul.f32 %v2015, %v2020
        %v2026 = vmul.f32 %v2015, %v2024
        %v2027 = vadd.f32 %v2011, %v2025
        %v2028 = vadd.f32 %v2012, %v2026
        %2029 = vset.pattern.permute.xlu0 4
        %2030 = vperm.xlu0 %2029, %v1896
        %v2031 = vpop.permute.xlu0 %2030
        %v2033 = vlaneseq
        %v2034 = vshrl.u32 %v2033, 7
        %v2035 = vsub.s32 0, %v2034
        %v2036 = vrot.slane %v1930, %v2035
        %v2037 = vlaneseq
        %v2038 = vshrl.u32 %v2037, 7
        %v2039 = vsub.s32 0, %v2038
        %v2040 = vrot.slane %v1931, %v2039
        %v2041 = vmul.f32 %v2031, %v2036
        %v2042 = vmul.f32 %v2031, %v2040
        %v2043 = vadd.f32 %v2027, %v2041
        %v2044 = vadd.f32 %v2028, %v2042
        %2045 = vset.pattern.permute.xlu0 5
        %2046 = vperm.xlu0 %2045, %v1896
        %v2047 = vpop.permute.xlu0 %2046
        %v2049 = vlaneseq
        %v2050 = vshrl.u32 %v2049, 7
        %v2051 = vsub.s32 0, %v2050
        %v2052 = vrot.slane %v1938, %v2051
        %v2053 = vlaneseq
        %v2054 = vshrl.u32 %v2053, 7
        %v2055 = vsub.s32 0, %v2054
        %v2056 = vrot.slane %v1939, %v2055
        %v2057 = vmul.f32 %v2047, %v2052
        %v2058 = vmul.f32 %v2047, %v2056
        %v2059 = vadd.f32 %v2043, %v2057
        %v2060 = vadd.f32 %v2044, %v2058
        %2061 = vset.pattern.permute.xlu0 6
        %2062 = vperm.xlu0 %2061, %v1896
        %v2063 = vpop.permute.xlu0 %2062
        %v2065 = vlaneseq
        %v2066 = vshrl.u32 %v2065, 7
        %v2067 = vsub.s32 0, %v2066
        %v2068 = vrot.slane %v1946, %v2067
        %v2069 = vlaneseq
        %v2070 = vshrl.u32 %v2069, 7
        %v2071 = vsub.s32 0, %v2070
        %v2072 = vrot.slane %v1947, %v2071
        %v2073 = vmul.f32 %v2063, %v2068
        %v2074 = vmul.f32 %v2063, %v2072
        %v2075 = vadd.f32 %v2059, %v2073
        %v2076 = vadd.f32 %v2060, %v2074
        %2077 = vset.pattern.permute.xlu0 7
        %2078 = vperm.xlu0 %2077, %v1896
        %v2079 = vpop.permute.xlu0 %2078
        %v2081 = vlaneseq
        %v2082 = vshrl.u32 %v2081, 7
        %v2083 = vsub.s32 0, %v2082
        %v2084 = vrot.slane %v1954, %v2083
        %v2085 = vlaneseq
        %v2086 = vshrl.u32 %v2085, 7
        %v2087 = vsub.s32 0, %v2086
        %v2088 = vrot.slane %v1955, %v2087
        %v2089 = vmul.f32 %v2079, %v2084
        %v2090 = vmul.f32 %v2079, %v2088
        %v2091 = vadd.f32 %v2075, %v2089
        %v2092 = vadd.f32 %v2076, %v2090
        %2093 = vset.pattern.permute.xlu0 8
        %2094 = vperm.xlu0 %2093, %v1896
        %v2095 = vpop.permute.xlu0 %2094
        %v2097 = vlaneseq
        %v2098 = vshrl.u32 %v2097, 7
        %v2099 = vsub.s32 0, %v2098
        %v2100 = vrot.slane %v1962, %v2099
        %v2101 = vlaneseq
        %v2102 = vshrl.u32 %v2101, 7
        %v2103 = vsub.s32 0, %v2102
        %v2104 = vrot.slane %v1963, %v2103
        %v2105 = vmul.f32 %v2095, %v2100
        %v2106 = vmul.f32 %v2095, %v2104
        %v2107 = vadd.f32 %v2091, %v2105
        %v2108 = vadd.f32 %v2092, %v2106
        %2109 = vset.pattern.permute.xlu0 9
        %2110 = vperm.xlu0 %2109, %v1896
        %v2111 = vpop.permute.xlu0 %2110
        %v2113 = vlaneseq
        %v2114 = vshrl.u32 %v2113, 7
        %v2115 = vsub.s32 1, %v2114
        %v2116 = vrot.slane %v1904, %v2115
        %v2117 = vlaneseq
        %v2118 = vshrl.u32 %v2117, 7
        %v2119 = vsub.s32 1, %v2118
        %v2120 = vrot.slane %v1905, %v2119
        %v2121 = vmul.f32 %v2111, %v2116
        %v2122 = vmul.f32 %v2111, %v2120
        %v2123 = vadd.f32 %v2107, %v2121
        %v2124 = vadd.f32 %v2108, %v2122
        %2125 = vset.pattern.permute.xlu0 10
        %2126 = vperm.xlu0 %2125, %v1896
        %v2127 = vpop.permute.xlu0 %2126
        %v2129 = vlaneseq
        %v2130 = vshrl.u32 %v2129, 7
        %v2131 = vsub.s32 1, %v2130
        %v2132 = vrot.slane %v1912, %v2131
        %v2133 = vlaneseq
        %v2134 = vshrl.u32 %v2133, 7
        %v2135 = vsub.s32 1, %v2134
        %v2136 = vrot.slane %v1913, %v2135
        %v2137 = vmul.f32 %v2127, %v2132
        %v2138 = vmul.f32 %v2127, %v2136
        %v2139 = vadd.f32 %v2123, %v2137
        %v2140 = vadd.f32 %v2124, %v2138
        %2141 = vset.pattern.permute.xlu0 11
        %2142 = vperm.xlu0 %2141, %v1896
        %v2143 = vpop.permute.xlu0 %2142
        %v2145 = vlaneseq
        %v2146 = vshrl.u32 %v2145, 7
        %v2147 = vsub.s32 1, %v2146
        %v2148 = vrot.slane %v1920, %v2147
        %v2149 = vlaneseq
        %v2150 = vshrl.u32 %v2149, 7
        %v2151 = vsub.s32 1, %v2150
        %v2152 = vrot.slane %v1921, %v2151
        %v2153 = vmul.f32 %v2143, %v2148
        %v2154 = vmul.f32 %v2143, %v2152
        %v2155 = vadd.f32 %v2139, %v2153
        %v2156 = vadd.f32 %v2140, %v2154
        %2157 = vset.pattern.permute.xlu0 12
        %2158 = vperm.xlu0 %2157, %v1896
        %v2159 = vpop.permute.xlu0 %2158
        %v2161 = vlaneseq
        %v2162 = vshrl.u32 %v2161, 7
        %v2163 = vsub.s32 1, %v2162
        %v2164 = vrot.slane %v1928, %v2163
        %v2165 = vlaneseq
        %v2166 = vshrl.u32 %v2165, 7
        %v2167 = vsub.s32 1, %v2166
        %v2168 = vrot.slane %v1929, %v2167
        %v2169 = vmul.f32 %v2159, %v2164
        %v2170 = vmul.f32 %v2159, %v2168
        %v2171 = vadd.f32 %v2155, %v2169
        %v2172 = vadd.f32 %v2156, %v2170
        %2173 = vset.pattern.permute.xlu0 13
        %2174 = vperm.xlu0 %2173, %v1896
        %v2175 = vpop.permute.xlu0 %2174
        %v2177 = vlaneseq
        %v2178 = vshrl.u32 %v2177, 7
        %v2179 = vsub.s32 1, %v2178
        %v2180 = vrot.slane %v1930, %v2179
        %v2181 = vlaneseq
        %v2182 = vshrl.u32 %v2181, 7
        %v2183 = vsub.s32 1, %v2182
        %v2184 = vrot.slane %v1931, %v2183
        %v2185 = vmul.f32 %v2175, %v2180
        %v2186 = vmul.f32 %v2175, %v2184
        %v2187 = vadd.f32 %v2171, %v2185
        %v2188 = vadd.f32 %v2172, %v2186
        %2189 = vset.pattern.permute.xlu0 14
        %2190 = vperm.xlu0 %2189, %v1896
        %v2191 = vpop.permute.xlu0 %2190
        %v2193 = vlaneseq
        %v2194 = vshrl.u32 %v2193, 7
        %v2195 = vsub.s32 1, %v2194
        %v2196 = vrot.slane %v1938, %v2195
        %v2197 = vlaneseq
        %v2198 = vshrl.u32 %v2197, 7
        %v2199 = vsub.s32 1, %v2198
        %v2200 = vrot.slane %v1939, %v2199
        %v2201 = vmul.f32 %v2191, %v2196
        %v2202 = vmul.f32 %v2191, %v2200
        %v2203 = vadd.f32 %v2187, %v2201
        %v2204 = vadd.f32 %v2188, %v2202
        %2205 = vset.pattern.permute.xlu0 15
        %2206 = vperm.xlu0 %2205, %v1896
        %v2207 = vpop.permute.xlu0 %2206
        %v2209 = vlaneseq
        %v2210 = vshrl.u32 %v2209, 7
        %v2211 = vsub.s32 1, %v2210
        %v2212 = vrot.slane %v1946, %v2211
        %v2213 = vlaneseq
        %v2214 = vshrl.u32 %v2213, 7
        %v2215 = vsub.s32 1, %v2214
        %v2216 = vrot.slane %v1947, %v2215
        %v2217 = vmul.f32 %v2207, %v2212
        %v2218 = vmul.f32 %v2207, %v2216
        %v2219 = vadd.f32 %v2203, %v2217
        %v2220 = vadd.f32 %v2204, %v2218
        %2221 = vset.pattern.permute.xlu0 16
        %2222 = vperm.xlu0 %2221, %v1896
        %v2223 = vpop.permute.xlu0 %2222
        %v2225 = vlaneseq
        %v2226 = vshrl.u32 %v2225, 7
        %v2227 = vsub.s32 1, %v2226
        %v2228 = vrot.slane %v1954, %v2227
        %v2229 = vlaneseq
        %v2230 = vshrl.u32 %v2229, 7
        %v2231 = vsub.s32 1, %v2230
        %v2232 = vrot.slane %v1955, %v2231
        %v2233 = vmul.f32 %v2223, %v2228
        %v2234 = vmul.f32 %v2223, %v2232
        %v2235 = vadd.f32 %v2219, %v2233
        %v2236 = vadd.f32 %v2220, %v2234
        %2237 = vset.pattern.permute.xlu0 17
        %2238 = vperm.xlu0 %2237, %v1896
        %v2239 = vpop.permute.xlu0 %2238
        %v2241 = vlaneseq
        %v2242 = vshrl.u32 %v2241, 7
        %v2243 = vsub.s32 1, %v2242
        %v2244 = vrot.slane %v1962, %v2243
        %v2245 = vlaneseq
        %v2246 = vshrl.u32 %v2245, 7
        %v2247 = vsub.s32 1, %v2246
        %v2248 = vrot.slane %v1963, %v2247
        %v2249 = vmul.f32 %v2239, %v2244
        %v2250 = vmul.f32 %v2239, %v2248
        %v2251 = vadd.f32 %v2235, %v2249
        %v2252 = vadd.f32 %v2236, %v2250
        %2253 = vset.pattern.permute.xlu0 18
        %2254 = vperm.xlu0 %2253, %v1896
        %v2255 = vpop.permute.xlu0 %2254
        %v2257 = vlaneseq
        %v2258 = vshrl.u32 %v2257, 7
        %v2259 = vsub.s32 2, %v2258
        %v2260 = vrot.slane %v1904, %v2259
        %v2261 = vlaneseq
        %v2262 = vshrl.u32 %v2261, 7
        %v2263 = vsub.s32 2, %v2262
        %v2264 = vrot.slane %v1905, %v2263
        %v2265 = vmul.f32 %v2255, %v2260
        %v2266 = vmul.f32 %v2255, %v2264
        %v2267 = vadd.f32 %v2251, %v2265
        %v2268 = vadd.f32 %v2252, %v2266
        %2269 = vset.pattern.permute.xlu0 19
        %2270 = vperm.xlu0 %2269, %v1896
        %v2271 = vpop.permute.xlu0 %2270
        %v2273 = vlaneseq
        %v2274 = vshrl.u32 %v2273, 7
        %v2275 = vsub.s32 2, %v2274
        %v2276 = vrot.slane %v1912, %v2275
        %v2277 = vlaneseq
        %v2278 = vshrl.u32 %v2277, 7
        %v2279 = vsub.s32 2, %v2278
        %v2280 = vrot.slane %v1913, %v2279
        %v2281 = vmul.f32 %v2271, %v2276
        %v2282 = vmul.f32 %v2271, %v2280
        %v2283 = vadd.f32 %v2267, %v2281
        %v2284 = vadd.f32 %v2268, %v2282
        %2285 = vset.pattern.permute.xlu0 20
        %2286 = vperm.xlu0 %2285, %v1896
        %v2287 = vpop.permute.xlu0 %2286
        %v2289 = vlaneseq
        %v2290 = vshrl.u32 %v2289, 7
        %v2291 = vsub.s32 2, %v2290
        %v2292 = vrot.slane %v1920, %v2291
        %v2293 = vlaneseq
        %v2294 = vshrl.u32 %v2293, 7
        %v2295 = vsub.s32 2, %v2294
        %v2296 = vrot.slane %v1921, %v2295
        %v2297 = vmul.f32 %v2287, %v2292
        %v2298 = vmul.f32 %v2287, %v2296
        %v2299 = vadd.f32 %v2283, %v2297
        %v2300 = vadd.f32 %v2284, %v2298
        %2301 = vset.pattern.permute.xlu0 21
        %2302 = vperm.xlu0 %2301, %v1896
        %v2303 = vpop.permute.xlu0 %2302
        %v2305 = vlaneseq
        %v2306 = vshrl.u32 %v2305, 7
        %v2307 = vsub.s32 2, %v2306
        %v2308 = vrot.slane %v1928, %v2307
        %v2309 = vlaneseq
        %v2310 = vshrl.u32 %v2309, 7
        %v2311 = vsub.s32 2, %v2310
        %v2312 = vrot.slane %v1929, %v2311
        %v2313 = vmul.f32 %v2303, %v2308
        %v2314 = vmul.f32 %v2303, %v2312
        %v2315 = vadd.f32 %v2299, %v2313
        %v2316 = vadd.f32 %v2300, %v2314
        %2317 = vset.pattern.permute.xlu0 22
        %2318 = vperm.xlu0 %2317, %v1896
        %v2319 = vpop.permute.xlu0 %2318
        %v2321 = vlaneseq
        %v2322 = vshrl.u32 %v2321, 7
        %v2323 = vsub.s32 2, %v2322
        %v2324 = vrot.slane %v1930, %v2323
        %v2325 = vlaneseq
        %v2326 = vshrl.u32 %v2325, 7
        %v2327 = vsub.s32 2, %v2326
        %v2328 = vrot.slane %v1931, %v2327
        %v2329 = vmul.f32 %v2319, %v2324
        %v2330 = vmul.f32 %v2319, %v2328
        %v2331 = vadd.f32 %v2315, %v2329
        %v2332 = vadd.f32 %v2316, %v2330
        %2333 = vset.pattern.permute.xlu0 23
        %2334 = vperm.xlu0 %2333, %v1896
        %v2335 = vpop.permute.xlu0 %2334
        %v2337 = vlaneseq
        %v2338 = vshrl.u32 %v2337, 7
        %v2339 = vsub.s32 2, %v2338
        %v2340 = vrot.slane %v1938, %v2339
        %v2341 = vlaneseq
        %v2342 = vshrl.u32 %v2341, 7
        %v2343 = vsub.s32 2, %v2342
        %v2344 = vrot.slane %v1939, %v2343
        %v2345 = vmul.f32 %v2335, %v2340
        %v2346 = vmul.f32 %v2335, %v2344
        %v2347 = vadd.f32 %v2331, %v2345
        %v2348 = vadd.f32 %v2332, %v2346
        %2349 = vset.pattern.permute.xlu0 24
        %2350 = vperm.xlu0 %2349, %v1896
        %v2351 = vpop.permute.xlu0 %2350
        %v2353 = vlaneseq
        %v2354 = vshrl.u32 %v2353, 7
        %v2355 = vsub.s32 2, %v2354
        %v2356 = vrot.slane %v1946, %v2355
        %v2357 = vlaneseq
        %v2358 = vshrl.u32 %v2357, 7
        %v2359 = vsub.s32 2, %v2358
        %v2360 = vrot.slane %v1947, %v2359
        %v2361 = vmul.f32 %v2351, %v2356
        %v2362 = vmul.f32 %v2351, %v2360
        %v2363 = vadd.f32 %v2347, %v2361
        %v2364 = vadd.f32 %v2348, %v2362
        %2365 = vset.pattern.permute.xlu0 25
        %2366 = vperm.xlu0 %2365, %v1896
        %v2367 = vpop.permute.xlu0 %2366
        %v2369 = vlaneseq
        %v2370 = vshrl.u32 %v2369, 7
        %v2371 = vsub.s32 2, %v2370
        %v2372 = vrot.slane %v1954, %v2371
        %v2373 = vlaneseq
        %v2374 = vshrl.u32 %v2373, 7
        %v2375 = vsub.s32 2, %v2374
        %v2376 = vrot.slane %v1955, %v2375
        %v2377 = vmul.f32 %v2367, %v2372
        %v2378 = vmul.f32 %v2367, %v2376
        %v2379 = vadd.f32 %v2363, %v2377
        %v2380 = vadd.f32 %v2364, %v2378
        %2381 = vset.pattern.permute.xlu0 26
        %2382 = vperm.xlu0 %2381, %v1896
        %v2383 = vpop.permute.xlu0 %2382
        %v2385 = vlaneseq
        %v2386 = vshrl.u32 %v2385, 7
        %v2387 = vsub.s32 2, %v2386
        %v2388 = vrot.slane %v1962, %v2387
        %v2389 = vlaneseq
        %v2390 = vshrl.u32 %v2389, 7
        %v2391 = vsub.s32 2, %v2390
        %v2392 = vrot.slane %v1963, %v2391
        %v2393 = vmul.f32 %v2383, %v2388
        %v2394 = vmul.f32 %v2383, %v2392
        %v2395 = vadd.f32 %v2379, %v2393
        %v2396 = vadd.f32 %v2380, %v2394
        %2397 = vset.pattern.permute.xlu0 27
        %2398 = vperm.xlu0 %2397, %v1896
        %v2399 = vpop.permute.xlu0 %2398
        %v2401 = vlaneseq
        %v2402 = vshrl.u32 %v2401, 7
        %v2403 = vsub.s32 3, %v2402
        %v2404 = vrot.slane %v1904, %v2403
        %v2405 = vlaneseq
        %v2406 = vshrl.u32 %v2405, 7
        %v2407 = vsub.s32 3, %v2406
        %v2408 = vrot.slane %v1905, %v2407
        %v2409 = vmul.f32 %v2399, %v2404
        %v2410 = vmul.f32 %v2399, %v2408
        %v2411 = vadd.f32 %v2395, %v2409
        %v2412 = vadd.f32 %v2396, %v2410
        %2413 = vset.pattern.permute.xlu0 28
        %2414 = vperm.xlu0 %2413, %v1896
        %v2415 = vpop.permute.xlu0 %2414
        %v2417 = vlaneseq
        %v2418 = vshrl.u32 %v2417, 7
        %v2419 = vsub.s32 3, %v2418
        %v2420 = vrot.slane %v1912, %v2419
        %v2421 = vlaneseq
        %v2422 = vshrl.u32 %v2421, 7
        %v2423 = vsub.s32 3, %v2422
        %v2424 = vrot.slane %v1913, %v2423
        %v2425 = vmul.f32 %v2415, %v2420
        %v2426 = vmul.f32 %v2415, %v2424
        %v2427 = vadd.f32 %v2411, %v2425
        %v2428 = vadd.f32 %v2412, %v2426
        %2429 = vset.pattern.permute.xlu0 29
        %2430 = vperm.xlu0 %2429, %v1896
        %v2431 = vpop.permute.xlu0 %2430
        %v2433 = vlaneseq
        %v2434 = vshrl.u32 %v2433, 7
        %v2435 = vsub.s32 3, %v2434
        %v2436 = vrot.slane %v1920, %v2435
        %v2437 = vlaneseq
        %v2438 = vshrl.u32 %v2437, 7
        %v2439 = vsub.s32 3, %v2438
        %v2440 = vrot.slane %v1921, %v2439
        %v2441 = vmul.f32 %v2431, %v2436
        %v2442 = vmul.f32 %v2431, %v2440
        %v2443 = vadd.f32 %v2427, %v2441
        %v2444 = vadd.f32 %v2428, %v2442
        %2445 = vset.pattern.permute.xlu0 30
        %2446 = vperm.xlu0 %2445, %v1896
        %v2447 = vpop.permute.xlu0 %2446
        %v2449 = vlaneseq
        %v2450 = vshrl.u32 %v2449, 7
        %v2451 = vsub.s32 3, %v2450
        %v2452 = vrot.slane %v1928, %v2451
        %v2453 = vlaneseq
        %v2454 = vshrl.u32 %v2453, 7
        %v2455 = vsub.s32 3, %v2454
        %v2456 = vrot.slane %v1929, %v2455
        %v2457 = vmul.f32 %v2447, %v2452
        %v2458 = vmul.f32 %v2447, %v2456
        %v2459 = vadd.f32 %v2443, %v2457
        %v2460 = vadd.f32 %v2444, %v2458
        %2461 = vset.pattern.permute.xlu0 31
        %2462 = vperm.xlu0 %2461, %v1896
        %v2463 = vpop.permute.xlu0 %2462
        %v2465 = vlaneseq
        %v2466 = vshrl.u32 %v2465, 7
        %v2467 = vsub.s32 3, %v2466
        %v2468 = vrot.slane %v1930, %v2467
        %v2469 = vlaneseq
        %v2470 = vshrl.u32 %v2469, 7
        %v2471 = vsub.s32 3, %v2470
        %v2472 = vrot.slane %v1931, %v2471
        %v2473 = vmul.f32 %v2463, %v2468
        %v2474 = vmul.f32 %v2463, %v2472
        %v2475 = vadd.f32 %v2459, %v2473
        %v2476 = vadd.f32 %v2460, %v2474
        %2477 = vset.pattern.permute.xlu0 32
        %2478 = vperm.xlu0 %2477, %v1896
        %v2479 = vpop.permute.xlu0 %2478
        %v2481 = vlaneseq
        %v2482 = vshrl.u32 %v2481, 7
        %v2483 = vsub.s32 3, %v2482
        %v2484 = vrot.slane %v1938, %v2483
        %v2485 = vlaneseq
        %v2486 = vshrl.u32 %v2485, 7
        %v2487 = vsub.s32 3, %v2486
        %v2488 = vrot.slane %v1939, %v2487
        %v2489 = vmul.f32 %v2479, %v2484
        %v2490 = vmul.f32 %v2479, %v2488
        %v2491 = vadd.f32 %v2475, %v2489
        %v2492 = vadd.f32 %v2476, %v2490
        %2493 = vset.pattern.permute.xlu0 33
        %2494 = vperm.xlu0 %2493, %v1896
        %v2495 = vpop.permute.xlu0 %2494
        %v2497 = vlaneseq
        %v2498 = vshrl.u32 %v2497, 7
        %v2499 = vsub.s32 3, %v2498
        %v2500 = vrot.slane %v1946, %v2499
        %v2501 = vlaneseq
        %v2502 = vshrl.u32 %v2501, 7
        %v2503 = vsub.s32 3, %v2502
        %v2504 = vrot.slane %v1947, %v2503
        %v2505 = vmul.f32 %v2495, %v2500
        %v2506 = vmul.f32 %v2495, %v2504
        %v2507 = vadd.f32 %v2491, %v2505
        %v2508 = vadd.f32 %v2492, %v2506
        %2509 = vset.pattern.permute.xlu0 34
        %2510 = vperm.xlu0 %2509, %v1896
        %v2511 = vpop.permute.xlu0 %2510
        %v2513 = vlaneseq
        %v2514 = vshrl.u32 %v2513, 7
        %v2515 = vsub.s32 3, %v2514
        %v2516 = vrot.slane %v1954, %v2515
        %v2517 = vlaneseq
        %v2518 = vshrl.u32 %v2517, 7
        %v2519 = vsub.s32 3, %v2518
        %v2520 = vrot.slane %v1955, %v2519
        %v2521 = vmul.f32 %v2511, %v2516
        %v2522 = vmul.f32 %v2511, %v2520
        %v2523 = vadd.f32 %v2507, %v2521
        %v2524 = vadd.f32 %v2508, %v2522
        %2525 = vset.pattern.permute.xlu0 35
        %2526 = vperm.xlu0 %2525, %v1896
        %v2527 = vpop.permute.xlu0 %2526
        %v2529 = vlaneseq
        %v2530 = vshrl.u32 %v2529, 7
        %v2531 = vsub.s32 3, %v2530
        %v2532 = vrot.slane %v1962, %v2531
        %v2533 = vlaneseq
        %v2534 = vshrl.u32 %v2533, 7
        %v2535 = vsub.s32 3, %v2534
        %v2536 = vrot.slane %v1963, %v2535
        %v2537 = vmul.f32 %v2527, %v2532
        %v2538 = vmul.f32 %v2527, %v2536
        %v2539 = vadd.f32 %v2523, %v2537
        %v2540 = vadd.f32 %v2524, %v2538
        %2542 = vset.pattern.permute.xlu0 0
        %2543 = vperm.xlu0 %2542, %v1897
        %v2544 = vpop.permute.xlu0 %2543
        %v2546 = vadd.f32 %v2539, %v2544
        %v2547 = vadd.f32 %v2540, %v2544
        %v2548 = vmax.f32 %v2546, 0.0
        %v2549 = vmax.f32 %v2547, 0.0
        %v2550 = vld [vmem:[%s8] sm:$0xf]
        %v2551 = vld [vmem:[%s9] sm:$0xf]
        %2552 = vrot.lane.b32.xlu0 %v2548, 17
        %v2553 = vpop.permute.xlu0 %2552
        %2554 = vrot.lane.b32.xlu0 %v2549, 17
        %v2555 = vpop.permute.xlu0 %2554
        %v2556 = vsel %vm470, %v2553, %v2555
        %v2557 = vsel %vm470, %v2555, %v2553
        %v2558 = vmul.f32 %v2557, %v476
        %v2559 = vmul.f32 %v2556, %v480
        %2560 = vrot.lane.b32.xlu0 %v2548, 16
        %v2561 = vpop.permute.xlu0 %2560
        %2562 = vrot.lane.b32.xlu0 %v2549, 16
        %v2563 = vpop.permute.xlu0 %2562
        %v2564 = vsel %vm487, %v2561, %v2563
        %v2565 = vsel %vm487, %v2563, %v2561
        %v2566 = vmul.f32 %v2565, %v493
        %v2567 = vmul.f32 %v2564, %v497
        %2568 = vrot.lane.b32.xlu0 %v2548, 15
        %v2569 = vpop.permute.xlu0 %2568
        %2570 = vrot.lane.b32.xlu0 %v2549, 15
        %v2571 = vpop.permute.xlu0 %2570
        %v2572 = vsel %vm504, %v2569, %v2571
        %v2573 = vsel %vm504, %v2571, %v2569
        %v2574 = vmul.f32 %v2573, %v510
        %v2575 = vmul.f32 %v2572, %v514
        %2576 = vrot.lane.b32.xlu0 %v2548, 1
        %v2577 = vpop.permute.xlu0 %2576
        %2578 = vrot.lane.b32.xlu0 %v2549, 1
        %v2579 = vpop.permute.xlu0 %2578
        %v2580 = vsel %vm521, %v2577, %v2579
        %v2581 = vsel %vm521, %v2579, %v2577
        %v2582 = vmul.f32 %v2581, %v527
        %v2583 = vmul.f32 %v2580, %v531
        %v2584 = vmul.f32 %v2548, %v537
        %v2585 = vmul.f32 %v2549, %v541
        %2586 = vrot.lane.b32.xlu0 %v2548, 127
        %v2587 = vpop.permute.xlu0 %2586
        %2588 = vrot.lane.b32.xlu0 %v2549, 127
        %v2589 = vpop.permute.xlu0 %2588
        %v2590 = vsel %vm551, %v2587, %v2589
        %v2591 = vsel %vm551, %v2589, %v2587
        %v2592 = vmul.f32 %v2590, %v557
        %v2593 = vmul.f32 %v2591, %v561
        %2594 = vrot.lane.b32.xlu0 %v2548, 113
        %v2595 = vpop.permute.xlu0 %2594
        %2596 = vrot.lane.b32.xlu0 %v2549, 113
        %v2597 = vpop.permute.xlu0 %2596
        %v2598 = vsel %vm568, %v2595, %v2597
        %v2599 = vsel %vm568, %v2597, %v2595
        %v2600 = vmul.f32 %v2598, %v574
        %v2601 = vmul.f32 %v2599, %v578
        %2602 = vrot.lane.b32.xlu0 %v2548, 112
        %v2603 = vpop.permute.xlu0 %2602
        %2604 = vrot.lane.b32.xlu0 %v2549, 112
        %v2605 = vpop.permute.xlu0 %2604
        %v2606 = vsel %vm585, %v2603, %v2605
        %v2607 = vsel %vm585, %v2605, %v2603
        %v2608 = vmul.f32 %v2606, %v591
        %v2609 = vmul.f32 %v2607, %v595
        %2610 = vrot.lane.b32.xlu0 %v2548, 111
        %v2611 = vpop.permute.xlu0 %2610
        %2612 = vrot.lane.b32.xlu0 %v2549, 111
        %v2613 = vpop.permute.xlu0 %2612
        %v2614 = vsel %vm602, %v2611, %v2613
        %v2615 = vsel %vm602, %v2613, %v2611
        %v2616 = vmul.f32 %v2614, %v608
        %v2617 = vmul.f32 %v2615, %v612
        %2619 = vset.pattern.permute.xlu0 0
        %2620 = vperm.xlu0 %2619, %v2550
        %v2621 = vpop.permute.xlu0 %2620
        %v2623 = vlaneseq
        %v2624 = vshrl.u32 %v2623, 7
        %v2625 = vsub.s32 0, %v2624
        %v2626 = vrot.slane %v2558, %v2625
        %v2627 = vlaneseq
        %v2628 = vshrl.u32 %v2627, 7
        %v2629 = vsub.s32 0, %v2628
        %v2630 = vrot.slane %v2559, %v2629
        %v2631 = vmul.f32 %v2621, %v2626
        %v2632 = vmul.f32 %v2621, %v2630
        %v2633 = vadd.f32 %v2631, 0.0
        %v2634 = vadd.f32 %v2632, 0.0
        %2635 = vset.pattern.permute.xlu0 1
        %2636 = vperm.xlu0 %2635, %v2550
        %v2637 = vpop.permute.xlu0 %2636
        %v2639 = vlaneseq
        %v2640 = vshrl.u32 %v2639, 7
        %v2641 = vsub.s32 0, %v2640
        %v2642 = vrot.slane %v2566, %v2641
        %v2643 = vlaneseq
        %v2644 = vshrl.u32 %v2643, 7
        %v2645 = vsub.s32 0, %v2644
        %v2646 = vrot.slane %v2567, %v2645
        %v2647 = vmul.f32 %v2637, %v2642
        %v2648 = vmul.f32 %v2637, %v2646
        %v2649 = vadd.f32 %v2633, %v2647
        %v2650 = vadd.f32 %v2634, %v2648
        %2651 = vset.pattern.permute.xlu0 2
        %2652 = vperm.xlu0 %2651, %v2550
        %v2653 = vpop.permute.xlu0 %2652
        %v2655 = vlaneseq
        %v2656 = vshrl.u32 %v2655, 7
        %v2657 = vsub.s32 0, %v2656
        %v2658 = vrot.slane %v2574, %v2657
        %v2659 = vlaneseq
        %v2660 = vshrl.u32 %v2659, 7
        %v2661 = vsub.s32 0, %v2660
        %v2662 = vrot.slane %v2575, %v2661
        %v2663 = vmul.f32 %v2653, %v2658
        %v2664 = vmul.f32 %v2653, %v2662
        %v2665 = vadd.f32 %v2649, %v2663
        %v2666 = vadd.f32 %v2650, %v2664
        %2667 = vset.pattern.permute.xlu0 3
        %2668 = vperm.xlu0 %2667, %v2550
        %v2669 = vpop.permute.xlu0 %2668
        %v2671 = vlaneseq
        %v2672 = vshrl.u32 %v2671, 7
        %v2673 = vsub.s32 0, %v2672
        %v2674 = vrot.slane %v2582, %v2673
        %v2675 = vlaneseq
        %v2676 = vshrl.u32 %v2675, 7
        %v2677 = vsub.s32 0, %v2676
        %v2678 = vrot.slane %v2583, %v2677
        %v2679 = vmul.f32 %v2669, %v2674
        %v2680 = vmul.f32 %v2669, %v2678
        %v2681 = vadd.f32 %v2665, %v2679
        %v2682 = vadd.f32 %v2666, %v2680
        %2683 = vset.pattern.permute.xlu0 4
        %2684 = vperm.xlu0 %2683, %v2550
        %v2685 = vpop.permute.xlu0 %2684
        %v2687 = vlaneseq
        %v2688 = vshrl.u32 %v2687, 7
        %v2689 = vsub.s32 0, %v2688
        %v2690 = vrot.slane %v2584, %v2689
        %v2691 = vlaneseq
        %v2692 = vshrl.u32 %v2691, 7
        %v2693 = vsub.s32 0, %v2692
        %v2694 = vrot.slane %v2585, %v2693
        %v2695 = vmul.f32 %v2685, %v2690
        %v2696 = vmul.f32 %v2685, %v2694
        %v2697 = vadd.f32 %v2681, %v2695
        %v2698 = vadd.f32 %v2682, %v2696
        %2699 = vset.pattern.permute.xlu0 5
        %2700 = vperm.xlu0 %2699, %v2550
        %v2701 = vpop.permute.xlu0 %2700
        %v2703 = vlaneseq
        %v2704 = vshrl.u32 %v2703, 7
        %v2705 = vsub.s32 0, %v2704
        %v2706 = vrot.slane %v2592, %v2705
        %v2707 = vlaneseq
        %v2708 = vshrl.u32 %v2707, 7
        %v2709 = vsub.s32 0, %v2708
        %v2710 = vrot.slane %v2593, %v2709
        %v2711 = vmul.f32 %v2701, %v2706
        %v2712 = vmul.f32 %v2701, %v2710
        %v2713 = vadd.f32 %v2697, %v2711
        %v2714 = vadd.f32 %v2698, %v2712
        %2715 = vset.pattern.permute.xlu0 6
        %2716 = vperm.xlu0 %2715, %v2550
        %v2717 = vpop.permute.xlu0 %2716
        %v2719 = vlaneseq
        %v2720 = vshrl.u32 %v2719, 7
        %v2721 = vsub.s32 0, %v2720
        %v2722 = vrot.slane %v2600, %v2721
        %v2723 = vlaneseq
        %v2724 = vshrl.u32 %v2723, 7
        %v2725 = vsub.s32 0, %v2724
        %v2726 = vrot.slane %v2601, %v2725
        %v2727 = vmul.f32 %v2717, %v2722
        %v2728 = vmul.f32 %v2717, %v2726
        %v2729 = vadd.f32 %v2713, %v2727
        %v2730 = vadd.f32 %v2714, %v2728
        %2731 = vset.pattern.permute.xlu0 7
        %2732 = vperm.xlu0 %2731, %v2550
        %v2733 = vpop.permute.xlu0 %2732
        %v2735 = vlaneseq
        %v2736 = vshrl.u32 %v2735, 7
        %v2737 = vsub.s32 0, %v2736
        %v2738 = vrot.slane %v2608, %v2737
        %v2739 = vlaneseq
        %v2740 = vshrl.u32 %v2739, 7
        %v2741 = vsub.s32 0, %v2740
        %v2742 = vrot.slane %v2609, %v2741
        %v2743 = vmul.f32 %v2733, %v2738
        %v2744 = vmul.f32 %v2733, %v2742
        %v2745 = vadd.f32 %v2729, %v2743
        %v2746 = vadd.f32 %v2730, %v2744
        %2747 = vset.pattern.permute.xlu0 8
        %2748 = vperm.xlu0 %2747, %v2550
        %v2749 = vpop.permute.xlu0 %2748
        %v2751 = vlaneseq
        %v2752 = vshrl.u32 %v2751, 7
        %v2753 = vsub.s32 0, %v2752
        %v2754 = vrot.slane %v2616, %v2753
        %v2755 = vlaneseq
        %v2756 = vshrl.u32 %v2755, 7
        %v2757 = vsub.s32 0, %v2756
        %v2758 = vrot.slane %v2617, %v2757
        %v2759 = vmul.f32 %v2749, %v2754
        %v2760 = vmul.f32 %v2749, %v2758
        %v2761 = vadd.f32 %v2745, %v2759
        %v2762 = vadd.f32 %v2746, %v2760
        %2763 = vset.pattern.permute.xlu0 9
        %2764 = vperm.xlu0 %2763, %v2550
        %v2765 = vpop.permute.xlu0 %2764
        %v2767 = vlaneseq
        %v2768 = vshrl.u32 %v2767, 7
        %v2769 = vsub.s32 1, %v2768
        %v2770 = vrot.slane %v2558, %v2769
        %v2771 = vlaneseq
        %v2772 = vshrl.u32 %v2771, 7
        %v2773 = vsub.s32 1, %v2772
        %v2774 = vrot.slane %v2559, %v2773
        %v2775 = vmul.f32 %v2765, %v2770
        %v2776 = vmul.f32 %v2765, %v2774
        %v2777 = vadd.f32 %v2761, %v2775
        %v2778 = vadd.f32 %v2762, %v2776
        %2779 = vset.pattern.permute.xlu0 10
        %2780 = vperm.xlu0 %2779, %v2550
        %v2781 = vpop.permute.xlu0 %2780
        %v2783 = vlaneseq
        %v2784 = vshrl.u32 %v2783, 7
        %v2785 = vsub.s32 1, %v2784
        %v2786 = vrot.slane %v2566, %v2785
        %v2787 = vlaneseq
        %v2788 = vshrl.u32 %v2787, 7
        %v2789 = vsub.s32 1, %v2788
        %v2790 = vrot.slane %v2567, %v2789
        %v2791 = vmul.f32 %v2781, %v2786
        %v2792 = vmul.f32 %v2781, %v2790
        %v2793 = vadd.f32 %v2777, %v2791
        %v2794 = vadd.f32 %v2778, %v2792
        %2795 = vset.pattern.permute.xlu0 11
        %2796 = vperm.xlu0 %2795, %v2550
        %v2797 = vpop.permute.xlu0 %2796
        %v2799 = vlaneseq
        %v2800 = vshrl.u32 %v2799, 7
        %v2801 = vsub.s32 1, %v2800
        %v2802 = vrot.slane %v2574, %v2801
        %v2803 = vlaneseq
        %v2804 = vshrl.u32 %v2803, 7
        %v2805 = vsub.s32 1, %v2804
        %v2806 = vrot.slane %v2575, %v2805
        %v2807 = vmul.f32 %v2797, %v2802
        %v2808 = vmul.f32 %v2797, %v2806
        %v2809 = vadd.f32 %v2793, %v2807
        %v2810 = vadd.f32 %v2794, %v2808
        %2811 = vset.pattern.permute.xlu0 12
        %2812 = vperm.xlu0 %2811, %v2550
        %v2813 = vpop.permute.xlu0 %2812
        %v2815 = vlaneseq
        %v2816 = vshrl.u32 %v2815, 7
        %v2817 = vsub.s32 1, %v2816
        %v2818 = vrot.slane %v2582, %v2817
        %v2819 = vlaneseq
        %v2820 = vshrl.u32 %v2819, 7
        %v2821 = vsub.s32 1, %v2820
        %v2822 = vrot.slane %v2583, %v2821
        %v2823 = vmul.f32 %v2813, %v2818
        %v2824 = vmul.f32 %v2813, %v2822
        %v2825 = vadd.f32 %v2809, %v2823
        %v2826 = vadd.f32 %v2810, %v2824
        %2827 = vset.pattern.permute.xlu0 13
        %2828 = vperm.xlu0 %2827, %v2550
        %v2829 = vpop.permute.xlu0 %2828
        %v2831 = vlaneseq
        %v2832 = vshrl.u32 %v2831, 7
        %v2833 = vsub.s32 1, %v2832
        %v2834 = vrot.slane %v2584, %v2833
        %v2835 = vlaneseq
        %v2836 = vshrl.u32 %v2835, 7
        %v2837 = vsub.s32 1, %v2836
        %v2838 = vrot.slane %v2585, %v2837
        %v2839 = vmul.f32 %v2829, %v2834
        %v2840 = vmul.f32 %v2829, %v2838
        %v2841 = vadd.f32 %v2825, %v2839
        %v2842 = vadd.f32 %v2826, %v2840
        %2843 = vset.pattern.permute.xlu0 14
        %2844 = vperm.xlu0 %2843, %v2550
        %v2845 = vpop.permute.xlu0 %2844
        %v2847 = vlaneseq
        %v2848 = vshrl.u32 %v2847, 7
        %v2849 = vsub.s32 1, %v2848
        %v2850 = vrot.slane %v2592, %v2849
        %v2851 = vlaneseq
        %v2852 = vshrl.u32 %v2851, 7
        %v2853 = vsub.s32 1, %v2852
        %v2854 = vrot.slane %v2593, %v2853
        %v2855 = vmul.f32 %v2845, %v2850
        %v2856 = vmul.f32 %v2845, %v2854
        %v2857 = vadd.f32 %v2841, %v2855
        %v2858 = vadd.f32 %v2842, %v2856
        %2859 = vset.pattern.permute.xlu0 15
        %2860 = vperm.xlu0 %2859, %v2550
        %v2861 = vpop.permute.xlu0 %2860
        %v2863 = vlaneseq
        %v2864 = vshrl.u32 %v2863, 7
        %v2865 = vsub.s32 1, %v2864
        %v2866 = vrot.slane %v2600, %v2865
        %v2867 = vlaneseq
        %v2868 = vshrl.u32 %v2867, 7
        %v2869 = vsub.s32 1, %v2868
        %v2870 = vrot.slane %v2601, %v2869
        %v2871 = vmul.f32 %v2861, %v2866
        %v2872 = vmul.f32 %v2861, %v2870
        %v2873 = vadd.f32 %v2857, %v2871
        %v2874 = vadd.f32 %v2858, %v2872
        %2875 = vset.pattern.permute.xlu0 16
        %2876 = vperm.xlu0 %2875, %v2550
        %v2877 = vpop.permute.xlu0 %2876
        %v2879 = vlaneseq
        %v2880 = vshrl.u32 %v2879, 7
        %v2881 = vsub.s32 1, %v2880
        %v2882 = vrot.slane %v2608, %v2881
        %v2883 = vlaneseq
        %v2884 = vshrl.u32 %v2883, 7
        %v2885 = vsub.s32 1, %v2884
        %v2886 = vrot.slane %v2609, %v2885
        %v2887 = vmul.f32 %v2877, %v2882
        %v2888 = vmul.f32 %v2877, %v2886
        %v2889 = vadd.f32 %v2873, %v2887
        %v2890 = vadd.f32 %v2874, %v2888
        %2891 = vset.pattern.permute.xlu0 17
        %2892 = vperm.xlu0 %2891, %v2550
        %v2893 = vpop.permute.xlu0 %2892
        %v2895 = vlaneseq
        %v2896 = vshrl.u32 %v2895, 7
        %v2897 = vsub.s32 1, %v2896
        %v2898 = vrot.slane %v2616, %v2897
        %v2899 = vlaneseq
        %v2900 = vshrl.u32 %v2899, 7
        %v2901 = vsub.s32 1, %v2900
        %v2902 = vrot.slane %v2617, %v2901
        %v2903 = vmul.f32 %v2893, %v2898
        %v2904 = vmul.f32 %v2893, %v2902
        %v2905 = vadd.f32 %v2889, %v2903
        %v2906 = vadd.f32 %v2890, %v2904
        %2907 = vset.pattern.permute.xlu0 18
        %2908 = vperm.xlu0 %2907, %v2550
        %v2909 = vpop.permute.xlu0 %2908
        %v2911 = vlaneseq
        %v2912 = vshrl.u32 %v2911, 7
        %v2913 = vsub.s32 2, %v2912
        %v2914 = vrot.slane %v2558, %v2913
        %v2915 = vlaneseq
        %v2916 = vshrl.u32 %v2915, 7
        %v2917 = vsub.s32 2, %v2916
        %v2918 = vrot.slane %v2559, %v2917
        %v2919 = vmul.f32 %v2909, %v2914
        %v2920 = vmul.f32 %v2909, %v2918
        %v2921 = vadd.f32 %v2905, %v2919
        %v2922 = vadd.f32 %v2906, %v2920
        %2923 = vset.pattern.permute.xlu0 19
        %2924 = vperm.xlu0 %2923, %v2550
        %v2925 = vpop.permute.xlu0 %2924
        %v2927 = vlaneseq
        %v2928 = vshrl.u32 %v2927, 7
        %v2929 = vsub.s32 2, %v2928
        %v2930 = vrot.slane %v2566, %v2929
        %v2931 = vlaneseq
        %v2932 = vshrl.u32 %v2931, 7
        %v2933 = vsub.s32 2, %v2932
        %v2934 = vrot.slane %v2567, %v2933
        %v2935 = vmul.f32 %v2925, %v2930
        %v2936 = vmul.f32 %v2925, %v2934
        %v2937 = vadd.f32 %v2921, %v2935
        %v2938 = vadd.f32 %v2922, %v2936
        %2939 = vset.pattern.permute.xlu0 20
        %2940 = vperm.xlu0 %2939, %v2550
        %v2941 = vpop.permute.xlu0 %2940
        %v2943 = vlaneseq
        %v2944 = vshrl.u32 %v2943, 7
        %v2945 = vsub.s32 2, %v2944
        %v2946 = vrot.slane %v2574, %v2945
        %v2947 = vlaneseq
        %v2948 = vshrl.u32 %v2947, 7
        %v2949 = vsub.s32 2, %v2948
        %v2950 = vrot.slane %v2575, %v2949
        %v2951 = vmul.f32 %v2941, %v2946
        %v2952 = vmul.f32 %v2941, %v2950
        %v2953 = vadd.f32 %v2937, %v2951
        %v2954 = vadd.f32 %v2938, %v2952
        %2955 = vset.pattern.permute.xlu0 21
        %2956 = vperm.xlu0 %2955, %v2550
        %v2957 = vpop.permute.xlu0 %2956
        %v2959 = vlaneseq
        %v2960 = vshrl.u32 %v2959, 7
        %v2961 = vsub.s32 2, %v2960
        %v2962 = vrot.slane %v2582, %v2961
        %v2963 = vlaneseq
        %v2964 = vshrl.u32 %v2963, 7
        %v2965 = vsub.s32 2, %v2964
        %v2966 = vrot.slane %v2583, %v2965
        %v2967 = vmul.f32 %v2957, %v2962
        %v2968 = vmul.f32 %v2957, %v2966
        %v2969 = vadd.f32 %v2953, %v2967
        %v2970 = vadd.f32 %v2954, %v2968
        %2971 = vset.pattern.permute.xlu0 22
        %2972 = vperm.xlu0 %2971, %v2550
        %v2973 = vpop.permute.xlu0 %2972
        %v2975 = vlaneseq
        %v2976 = vshrl.u32 %v2975, 7
        %v2977 = vsub.s32 2, %v2976
        %v2978 = vrot.slane %v2584, %v2977
        %v2979 = vlaneseq
        %v2980 = vshrl.u32 %v2979, 7
        %v2981 = vsub.s32 2, %v2980
        %v2982 = vrot.slane %v2585, %v2981
        %v2983 = vmul.f32 %v2973, %v2978
        %v2984 = vmul.f32 %v2973, %v2982
        %v2985 = vadd.f32 %v2969, %v2983
        %v2986 = vadd.f32 %v2970, %v2984
        %2987 = vset.pattern.permute.xlu0 23
        %2988 = vperm.xlu0 %2987, %v2550
        %v2989 = vpop.permute.xlu0 %2988
        %v2991 = vlaneseq
        %v2992 = vshrl.u32 %v2991, 7
        %v2993 = vsub.s32 2, %v2992
        %v2994 = vrot.slane %v2592, %v2993
        %v2995 = vlaneseq
        %v2996 = vshrl.u32 %v2995, 7
        %v2997 = vsub.s32 2, %v2996
        %v2998 = vrot.slane %v2593, %v2997
        %v2999 = vmul.f32 %v2989, %v2994
        %v3000 = vmul.f32 %v2989, %v2998
        %v3001 = vadd.f32 %v2985, %v2999
        %v3002 = vadd.f32 %v2986, %v3000
        %3003 = vset.pattern.permute.xlu0 24
        %3004 = vperm.xlu0 %3003, %v2550
        %v3005 = vpop.permute.xlu0 %3004
        %v3007 = vlaneseq
        %v3008 = vshrl.u32 %v3007, 7
        %v3009 = vsub.s32 2, %v3008
        %v3010 = vrot.slane %v2600, %v3009
        %v3011 = vlaneseq
        %v3012 = vshrl.u32 %v3011, 7
        %v3013 = vsub.s32 2, %v3012
        %v3014 = vrot.slane %v2601, %v3013
        %v3015 = vmul.f32 %v3005, %v3010
        %v3016 = vmul.f32 %v3005, %v3014
        %v3017 = vadd.f32 %v3001, %v3015
        %v3018 = vadd.f32 %v3002, %v3016
        %3019 = vset.pattern.permute.xlu0 25
        %3020 = vperm.xlu0 %3019, %v2550
        %v3021 = vpop.permute.xlu0 %3020
        %v3023 = vlaneseq
        %v3024 = vshrl.u32 %v3023, 7
        %v3025 = vsub.s32 2, %v3024
        %v3026 = vrot.slane %v2608, %v3025
        %v3027 = vlaneseq
        %v3028 = vshrl.u32 %v3027, 7
        %v3029 = vsub.s32 2, %v3028
        %v3030 = vrot.slane %v2609, %v3029
        %v3031 = vmul.f32 %v3021, %v3026
        %v3032 = vmul.f32 %v3021, %v3030
        %v3033 = vadd.f32 %v3017, %v3031
        %v3034 = vadd.f32 %v3018, %v3032
        %3035 = vset.pattern.permute.xlu0 26
        %3036 = vperm.xlu0 %3035, %v2550
        %v3037 = vpop.permute.xlu0 %3036
        %v3039 = vlaneseq
        %v3040 = vshrl.u32 %v3039, 7
        %v3041 = vsub.s32 2, %v3040
        %v3042 = vrot.slane %v2616, %v3041
        %v3043 = vlaneseq
        %v3044 = vshrl.u32 %v3043, 7
        %v3045 = vsub.s32 2, %v3044
        %v3046 = vrot.slane %v2617, %v3045
        %v3047 = vmul.f32 %v3037, %v3042
        %v3048 = vmul.f32 %v3037, %v3046
        %v3049 = vadd.f32 %v3033, %v3047
        %v3050 = vadd.f32 %v3034, %v3048
        %3051 = vset.pattern.permute.xlu0 27
        %3052 = vperm.xlu0 %3051, %v2550
        %v3053 = vpop.permute.xlu0 %3052
        %v3055 = vlaneseq
        %v3056 = vshrl.u32 %v3055, 7
        %v3057 = vsub.s32 3, %v3056
        %v3058 = vrot.slane %v2558, %v3057
        %v3059 = vlaneseq
        %v3060 = vshrl.u32 %v3059, 7
        %v3061 = vsub.s32 3, %v3060
        %v3062 = vrot.slane %v2559, %v3061
        %v3063 = vmul.f32 %v3053, %v3058
        %v3064 = vmul.f32 %v3053, %v3062
        %v3065 = vadd.f32 %v3049, %v3063
        %v3066 = vadd.f32 %v3050, %v3064
        %3067 = vset.pattern.permute.xlu0 28
        %3068 = vperm.xlu0 %3067, %v2550
        %v3069 = vpop.permute.xlu0 %3068
        %v3071 = vlaneseq
        %v3072 = vshrl.u32 %v3071, 7
        %v3073 = vsub.s32 3, %v3072
        %v3074 = vrot.slane %v2566, %v3073
        %v3075 = vlaneseq
        %v3076 = vshrl.u32 %v3075, 7
        %v3077 = vsub.s32 3, %v3076
        %v3078 = vrot.slane %v2567, %v3077
        %v3079 = vmul.f32 %v3069, %v3074
        %v3080 = vmul.f32 %v3069, %v3078
        %v3081 = vadd.f32 %v3065, %v3079
        %v3082 = vadd.f32 %v3066, %v3080
        %3083 = vset.pattern.permute.xlu0 29
        %3084 = vperm.xlu0 %3083, %v2550
        %v3085 = vpop.permute.xlu0 %3084
        %v3087 = vlaneseq
        %v3088 = vshrl.u32 %v3087, 7
        %v3089 = vsub.s32 3, %v3088
        %v3090 = vrot.slane %v2574, %v3089
        %v3091 = vlaneseq
        %v3092 = vshrl.u32 %v3091, 7
        %v3093 = vsub.s32 3, %v3092
        %v3094 = vrot.slane %v2575, %v3093
        %v3095 = vmul.f32 %v3085, %v3090
        %v3096 = vmul.f32 %v3085, %v3094
        %v3097 = vadd.f32 %v3081, %v3095
        %v3098 = vadd.f32 %v3082, %v3096
        %3099 = vset.pattern.permute.xlu0 30
        %3100 = vperm.xlu0 %3099, %v2550
        %v3101 = vpop.permute.xlu0 %3100
        %v3103 = vlaneseq
        %v3104 = vshrl.u32 %v3103, 7
        %v3105 = vsub.s32 3, %v3104
        %v3106 = vrot.slane %v2582, %v3105
        %v3107 = vlaneseq
        %v3108 = vshrl.u32 %v3107, 7
        %v3109 = vsub.s32 3, %v3108
        %v3110 = vrot.slane %v2583, %v3109
        %v3111 = vmul.f32 %v3101, %v3106
        %v3112 = vmul.f32 %v3101, %v3110
        %v3113 = vadd.f32 %v3097, %v3111
        %v3114 = vadd.f32 %v3098, %v3112
        %3115 = vset.pattern.permute.xlu0 31
        %3116 = vperm.xlu0 %3115, %v2550
        %v3117 = vpop.permute.xlu0 %3116
        %v3119 = vlaneseq
        %v3120 = vshrl.u32 %v3119, 7
        %v3121 = vsub.s32 3, %v3120
        %v3122 = vrot.slane %v2584, %v3121
        %v3123 = vlaneseq
        %v3124 = vshrl.u32 %v3123, 7
        %v3125 = vsub.s32 3, %v3124
        %v3126 = vrot.slane %v2585, %v3125
        %v3127 = vmul.f32 %v3117, %v3122
        %v3128 = vmul.f32 %v3117, %v3126
        %v3129 = vadd.f32 %v3113, %v3127
        %v3130 = vadd.f32 %v3114, %v3128
        %3131 = vset.pattern.permute.xlu0 32
        %3132 = vperm.xlu0 %3131, %v2550
        %v3133 = vpop.permute.xlu0 %3132
        %v3135 = vlaneseq
        %v3136 = vshrl.u32 %v3135, 7
        %v3137 = vsub.s32 3, %v3136
        %v3138 = vrot.slane %v2592, %v3137
        %v3139 = vlaneseq
        %v3140 = vshrl.u32 %v3139, 7
        %v3141 = vsub.s32 3, %v3140
        %v3142 = vrot.slane %v2593, %v3141
        %v3143 = vmul.f32 %v3133, %v3138
        %v3144 = vmul.f32 %v3133, %v3142
        %v3145 = vadd.f32 %v3129, %v3143
        %v3146 = vadd.f32 %v3130, %v3144
        %3147 = vset.pattern.permute.xlu0 33
        %3148 = vperm.xlu0 %3147, %v2550
        %v3149 = vpop.permute.xlu0 %3148
        %v3151 = vlaneseq
        %v3152 = vshrl.u32 %v3151, 7
        %v3153 = vsub.s32 3, %v3152
        %v3154 = vrot.slane %v2600, %v3153
        %v3155 = vlaneseq
        %v3156 = vshrl.u32 %v3155, 7
        %v3157 = vsub.s32 3, %v3156
        %v3158 = vrot.slane %v2601, %v3157
        %v3159 = vmul.f32 %v3149, %v3154
        %v3160 = vmul.f32 %v3149, %v3158
        %v3161 = vadd.f32 %v3145, %v3159
        %v3162 = vadd.f32 %v3146, %v3160
        %3163 = vset.pattern.permute.xlu0 34
        %3164 = vperm.xlu0 %3163, %v2550
        %v3165 = vpop.permute.xlu0 %3164
        %v3167 = vlaneseq
        %v3168 = vshrl.u32 %v3167, 7
        %v3169 = vsub.s32 3, %v3168
        %v3170 = vrot.slane %v2608, %v3169
        %v3171 = vlaneseq
        %v3172 = vshrl.u32 %v3171, 7
        %v3173 = vsub.s32 3, %v3172
        %v3174 = vrot.slane %v2609, %v3173
        %v3175 = vmul.f32 %v3165, %v3170
        %v3176 = vmul.f32 %v3165, %v3174
        %v3177 = vadd.f32 %v3161, %v3175
        %v3178 = vadd.f32 %v3162, %v3176
        %3179 = vset.pattern.permute.xlu0 35
        %3180 = vperm.xlu0 %3179, %v2550
        %v3181 = vpop.permute.xlu0 %3180
        %v3183 = vlaneseq
        %v3184 = vshrl.u32 %v3183, 7
        %v3185 = vsub.s32 3, %v3184
        %v3186 = vrot.slane %v2616, %v3185
        %v3187 = vlaneseq
        %v3188 = vshrl.u32 %v3187, 7
        %v3189 = vsub.s32 3, %v3188
        %v3190 = vrot.slane %v2617, %v3189
        %v3191 = vmul.f32 %v3181, %v3186
        %v3192 = vmul.f32 %v3181, %v3190
        %v3193 = vadd.f32 %v3177, %v3191
        %v3194 = vadd.f32 %v3178, %v3192
        %3196 = vset.pattern.permute.xlu0 0
        %3197 = vperm.xlu0 %3196, %v2551
        %v3198 = vpop.permute.xlu0 %3197
        %v3200 = vadd.f32 %v3193, %v3198
        %v3201 = vadd.f32 %v3194, %v3198
        %vm3202 = vcmask 1043456
        %v3203 = vsel %vm3202, %v1892, 0.0
        %v3204 = vsel %vm3202, %v1893, 0.0
        %v3205 = vadd.f32 %v3203, %v3204
        %3206 = vadd.xlane.f32.xlu0 %v3205
        %v3207 = vpop.xlane.xlu0 %3206
        %v3208 = vmul.f32 %v3207, 0.00390625
        %v3209 = vsel %vm3202, %v3200, 0.0
        %v3210 = vsel %vm3202, %v3201, 0.0
        %v3211 = vadd.f32 %v3209, %v3210
        %3212 = vadd.xlane.f32.xlu0 %v3211
        %v3213 = vpop.xlane.xlu0 %3212
        %v3214 = vmul.f32 %v3213, 0.00390625
        %v3215 = vsel %vm3202, %v1892, -inf
        %v3216 = vsel %vm3202, %v1893, -inf
        %v3217 = vmax.f32 %v3215, %v3216
        %3218 = vmax.xlane.f32.xlu0 %v3217
        %v3219 = vpop.xlane.xlu0 %3218
        %v3220 = vsel %vm3202, %v3200, -inf
        %v3221 = vsel %vm3202, %v3201, -inf
        %v3222 = vmax.f32 %v3220, %v3221
        %3223 = vmax.xlane.f32.xlu0 %v3222
        %v3224 = vpop.xlane.xlu0 %3223
        %v3225 = vld [vmem:[%s10] sm:$0xf]
        %v3226 = vld [vmem:[%s11] sm:$0xf]
        %v3227 = vld [vmem:[%s12] sm:$0x1]
        %v3228 = vmul.f32 %v3225, %v3208
        %vm3229 = vcmask 27648
        %v3230 = vsel %vm3229, %v3228, 0.0
        %v3231 = vrot.slane %v3230, 4
        %v3232 = vadd.f32 %v3230, %v3231
        %v3233 = vrot.slane %v3232, 2
        %v3234 = vadd.f32 %v3232, %v3233
        %v3235 = vrot.slane %v3234, 1
        %v3236 = vadd.f32 %v3234, %v3235
        %v3237 = vmul.f32 %v3226, %v3214
        %v3238 = vsel %vm3229, %v3237, 0.0
        %v3239 = vrot.slane %v3238, 4
        %v3240 = vadd.f32 %v3238, %v3239
        %v3241 = vrot.slane %v3240, 2
        %v3242 = vadd.f32 %v3240, %v3241
        %v3243 = vrot.slane %v3242, 1
        %v3244 = vadd.f32 %v3242, %v3243
        %v3245 = vadd.f32 %v3236, %v3244
        %v3246 = vmax.f32 %v3245, 0.0
        %v3247 = vmul.f32 %v3246, %v3227
        %vm3248 = vcmask 24576
        %v3249 = vsel %vm3248, %v3247, 0.0
        %3250 = vadd.xlane.f32.xlu0 %v3249
        %v3251 = vpop.xlane.xlu0 %3250
        %v3252 = vmul.f32 %v3225, %v3219
        %v3253 = vsel %vm3229, %v3252, 0.0
        %v3254 = vrot.slane %v3253, 4
        %v3255 = vadd.f32 %v3253, %v3254
        %v3256 = vrot.slane %v3255, 2
        %v3257 = vadd.f32 %v3255, %v3256
        %v3258 = vrot.slane %v3257, 1
        %v3259 = vadd.f32 %v3257, %v3258
        %v3260 = vmul.f32 %v3226, %v3224
        %v3261 = vsel %vm3229, %v3260, 0.0
        %v3262 = vrot.slane %v3261, 4
        %v3263 = vadd.f32 %v3261, %v3262
        %v3264 = vrot.slane %v3263, 2
        %v3265 = vadd.f32 %v3263, %v3264
        %v3266 = vrot.slane %v3265, 1
        %v3267 = vadd.f32 %v3265, %v3266
        %v3268 = vadd.f32 %v3259, %v3267
        %v3269 = vmax.f32 %v3268, 0.0
        %v3270 = vmul.f32 %v3269, %v3227
        %v3271 = vsel %vm3248, %v3270, 0.0
        %3272 = vadd.xlane.f32.xlu0 %v3271
        %v3273 = vpop.xlane.xlu0 %3272
        %v3274 = vadd.f32 %v3251, %v3273
        %v3275 = vsub.f32 0.0, %v3274
        %v3276 = vmul.f32 %v3275, 1.442695
        %v3277 = vpow.pop %v3276
        %v3278 = vadd.f32 %v3277, 1.0
        %v3279 = vrcp.pop %v3278
        %v3280 = vmul.f32 1.0, %v3279
        %v3281 = vlaneseq
        %v3282 = vshrl.u32 %v3281, 7
        %v3283 = vsub.s32 0, %v3282
        %v3284 = vrot.slane %v3280, %v3283
        %v3285 = vmul.f32 %v1892, %v3284
        %v3286 = vmul.f32 %v1893, %v3284
        %v3289 = vcombine.low %v3285, %v3286
        %v3291 = vadd.f32 %v454, %v3289
        %v3292 = vsub.f32 1.0, %v3280
        %v3293 = vlaneseq
        %v3294 = vshrl.u32 %v3293, 7
        %v3295 = vsub.s32 0, %v3294
        %v3296 = vrot.slane %v3292, %v3295
        %v3297 = vmul.f32 %v3200, %v3296
        %v3298 = vmul.f32 %v3201, %v3296
        %v3301 = vcombine.low %v3297, %v3298
        %v3303 = vadd.f32 %v3291, %v3301
        %3304 = vst [vmem:[%s448] sm:$0xff] %v3303
        %s3305 = sand.u32 %s314, 1
        %s3306 = scalar_lea.sflag [#allocation4], %s3305
        %s3307 = sand.u32 %s314, 1
        %s3308 = smul.addr %s3307, 8
        %s3309 = scalar_lea.vmem [#allocation5], %s3308
        // Predicated region
        $region77: #{tpu_custom_call.1} parent=71 // pred_check
          %p3310 = pneg %p324
        $region78: #{tpu_custom_call.1} parent=71 // pred_check_branch
          %3312 = sbr.rel (%p3310) target = $region80
        $region79: #{tpu_custom_call.1} parent=71 // pred_region
          %s3314 = ssub.s32 128, 128
          %3315 = vsyncadd %s3306, %s3314
          %s3316 = smul.addr %s28, 2
          %s3317 = smul.addr %s3316, 64
          %s3318 = scalar_lea.hbm %s13, %s3317
          %s3320 = sshll.u32 %s3309, 4
          %s3321 = int_to_ptr.vmem [resolvable:$true] %s3320
          %3323 = dma.vmem_to_hbm [thread:$0]  %s3321, 128, %s3318, %s3306
        $region80: #{tpu_custom_call.1} parent=71 // pred_fallthru
          _
      $region72: #{tpu_custom_call.1} parent=5 // pred_fallthru
        _
      %p3324 = scmp.le.s32.totalorder 2, %s23
      // Predicated region
      $region81: #{tpu_custom_call.1} parent=5 // pred_check
        %p3325 = pneg %p3324
      $region82: #{tpu_custom_call.1} parent=5 // pred_check_branch
        %3327 = sbr.rel (%p3325) target = $region84
      $region83: #{tpu_custom_call.1} parent=5 // pred_region
        %s3328 = ssub.s32 %s23, 2
        // Predicated region
        $region85: #{tpu_custom_call.1} parent=83 // pred_check
          %p3329 = pneg %p330
        $region86: #{tpu_custom_call.1} parent=83 // pred_check_branch
          %3331 = sbr.rel (%p3329) target = $region88
        $region87: #{tpu_custom_call.1} parent=83 // pred_region
          %s3332 = sand.u32 %s315, 1
          %s3333 = scalar_lea.sflag [#allocation4], %s3332
          %s3334 = sand.u32 %s315, 1
          %s3335 = smul.addr %s3334, 8
          %s3336 = scalar_lea.vmem [#allocation5], %s3335
          %3337 = dma.done %s3333, 128
        $region88: #{tpu_custom_call.1} parent=83 // pred_fallthru
          _
      $region84: #{tpu_custom_call.1} parent=5 // pred_fallthru
        _
    $region6: #{tpu_custom_call.1} parent=1 // loop_footer
      %s27 = sadd.s32 1, %s23
    $region7: #{tpu_custom_call.1} parent=1 // loop_footer_branch
      %22 = sbr.rel target = $region3
    $region8: #{tpu_custom_call.1} parent=1 // loop_exit
      _
    %3338 = vsyncpa [#allocation3], 1
    %s3339 = scalar_lea.sflag [#allocation3], 1
    %3340 = vsyncpa %s3339, 1
    %3341 = vsyncpa [#allocation4], 1
    %s3342 = scalar_lea.sflag [#allocation4], 1
    %3343 = vsyncpa %s3342, 1

</llo_original>
